<compile_context>
chip_gen: v6e
topology: v6e:2x2x1
jax: 0.10.0
libtpu: 0.0.40
codegen_flags: <defaults>
</compile_context>

<pallas_src>
import jax
import jax.numpy as jnp
from jax.experimental import pallas as pl
from jax.experimental.pallas import tpu as pltpu


# ------------------------------ fused kernel ---------------------------------

def _lstm_cell(gates, c_prev, H):
    """One LSTM cell update from pre-activation gates (B, 4H), f32 math."""
    # Transcendentals only on the gate groups that need them (lane-aligned).
    if_sig = jax.nn.sigmoid(gates[:, : 2 * H])        # [i | f]
    i_g = if_sig[:, :H]
    f_g = if_sig[:, H:]
    g_g = jnp.tanh(gates[:, 2 * H: 3 * H])            # [g]
    o_g = jax.nn.sigmoid(gates[:, 3 * H:])            # [o]
    c_new = f_g * c_prev + i_g * g_g
    h_new = o_g * jnp.tanh(c_new)
    return h_new, c_new


def _fused_lstm_kernel(x_ref, w_ih1_ref, w_hh1_ref, b1_ref,
                       w_ih2_ref, w_hh2_ref, b2_ref,
                       fc1_w_ref, fc1_b_ref, fc2_w_ref, fc2_b_ref,
                       out_ref):
    T, BB, D = x_ref.shape
    H = w_hh1_ref.shape[0]

    # Weights arrive pre-cast (default bf16) from the wrapper; read them ONCE.
    w_ih1 = w_ih1_ref[...]
    w_hh1 = w_hh1_ref[...]
    w_ih2 = w_ih2_ref[...]
    w_hh2 = w_hh2_ref[...]
    b1 = b1_ref[...]                                   # f32 (1, 4H)
    b2 = b2_ref[...]                                   # f32 (1, 4H)

    def mm(a, w):
        # MXU matmul: activation cast to the weight dtype, f32 accumulation.
        return jnp.dot(a.astype(w.dtype), w, preferred_element_type=jnp.float32)

    # ---- Layer 1: hoisted, time-major input projection (one matmul) --------
    gx1 = (mm(x_ref[...].reshape(T * BB, D), w_ih1) + b1).reshape(T, BB, 4 * H)

    h1 = jnp.zeros((BB, H), jnp.float32)
    c1 = jnp.zeros((BB, H), jnp.float32)
    h2 = jnp.zeros((BB, H), jnp.float32)
    c2 = jnp.zeros((BB, H), jnp.float32)

    # Fully unrolled, interleaved recurrence: layer-2 step t follows layer-1
    # step t; layer-1 step t+1 is independent of layer-2 step t, giving the
    # scheduler two chains to overlap (MXU fill/drain, MRF pop, EUP latency).
    for t in range(T):
        gates1 = gx1[t] + mm(h1, w_hh1)                # (BB, 4H), f32
        h1, c1 = _lstm_cell(gates1, c1, H)
        gates2 = mm(h1, w_ih2) + b2 + mm(h2, w_hh2)    # per-step input proj
        h2, c2 = _lstm_cell(gates2, c2, H)

    # ---- FC head on the last hidden state (dropout = identity, eval mode) ---
    z = mm(h2, fc1_w_ref[...]) + fc1_b_ref[...]        # (BB, 64)
    z = jnp.maximum(z, 0.0)                            # ReLU
    # fc2 has out_features=1: VPU multiply + lane reduce instead of N=1 matmul.
    y = jnp.sum(z * fc2_w_ref[...], axis=-1, keepdims=True) + fc2_b_ref[...]
    out_ref[...] = jax.nn.sigmoid(y)                   # (BB, 1)


# ------------------------------ model wrapper --------------------------------

def _round_up(n, m):
    return ((n + m - 1) // m) * m


def _choose_batch_tile(B):
    """Batch tile: multiple of 8, capped at 128; >=2 tiles when batch allows
    (so v7x's two TensorCores both get work via 'parallel' semantics)."""
    b8 = _round_up(B, 8)
    bb = min(b8, 128)
    if b8 >= 16:
        bb = min(bb, _round_up(pl.cdiv(b8, 2), 8))
    b_pad = _round_up(b8, bb)
    return bb, b_pad


def simple_lstm_forward(params, x_btd, matmul_dtype=jnp.bfloat16):
    """x_btd: (B, T, D_in) batch-first, as in PyTorch. Returns (B, 1) float32.

    matmul_dtype controls MXU operand dtype only (accumulation and all
    elementwise gate math stay f32). Use jnp.float32 for exact parity tests.
    """
    x_btd = x_btd.astype(jnp.float32)
    B, T, D = x_btd.shape
    H = params["w_hh1_t"].shape[0]

    BB, B_pad = _choose_batch_tile(B)
    if B_pad != B:
        x_btd = jnp.pad(x_btd, ((0, B_pad - B), (0, 0), (0, 0)))

    # Time-major layout so the per-step gate slice inside the kernel is a
    # contiguous (BB, 4H) tile (cheap one-off transpose of a tiny array).
    x_tbd = jnp.transpose(x_btd, (1, 0, 2))            # (T, B_pad, D)

    # Pre-cast MXU weight operands once (also halves weight DMA / VMEM).
    md = matmul_dtype
    w_ih1 = params["w_ih1_t"].astype(md)
    w_hh1 = params["w_hh1_t"].astype(md)
    w_ih2 = params["w_ih2_t"].astype(md)
    w_hh2 = params["w_hh2_t"].astype(md)
    fc1_w = params["fc1_w_t"].astype(md)

    rep2d = lambda b: (0, 0)                           # replicated weights

    out = pl.pallas_call(
        _fused_lstm_kernel,
        out_shape=jax.ShapeDtypeStruct((B_pad, 1), jnp.float32),
        grid_spec=pltpu.PrefetchScalarGridSpec(
            num_scalar_prefetch=0,
            grid=(B_pad // BB,),                       # independent batch tiles
            in_specs=[
                pl.BlockSpec((T, BB, D), lambda b: (0, b, 0)),   # x (t-major)
                pl.BlockSpec((D, 4 * H), rep2d),                 # w_ih1^T
                pl.BlockSpec((H, 4 * H), rep2d),                 # w_hh1^T
                pl.BlockSpec((1, 4 * H), rep2d),                 # b1
                pl.BlockSpec((H, 4 * H), rep2d),                 # w_ih2^T
                pl.BlockSpec((H, 4 * H), rep2d),                 # w_hh2^T
                pl.BlockSpec((1, 4 * H), rep2d),                 # b2
                pl.BlockSpec((H, 64), rep2d),                    # fc1_w^T
                pl.BlockSpec((1, 64), rep2d),                    # fc1_b
                pl.BlockSpec((1, 64), rep2d),                    # fc2_w row
                pl.BlockSpec((1, 1), rep2d),                     # fc2_b
            ],
            out_specs=pl.BlockSpec((BB, 1), lambda b: (b, 0)),
        ),
        compiler_params=pltpu.CompilerParams(
            # Batch tiles are independent → shardable across v7x's two TCs.
            dimension_semantics=("parallel",)),
    )(x_tbd,
      w_ih1, w_hh1, params["b1"],
      w_ih2, w_hh2, params["b2"],
      fc1_w, params["fc1_b"], params["fc2_w_row"], params["fc2_b"])

    return out[:B]


def init_params(key, input_size, hidden_size):
    """Deterministic PyTorch-style init (2 LSTM layers + fc1 + fc2)."""
    H = hidden_size

    def uniform(k, shape, bound):
        return jax.random.uniform(k, shape, jnp.float32, -bound, bound)

    params = {}
    lstm_bound = 1.0 / (H ** 0.5)
    for layer, d_in in ((1, input_size), (2, H)):
        key, k1, k2, k3, k4 = jax.random.split(key, 5)
        w_ih = uniform(k1, (4 * H, d_in), lstm_bound)   # PyTorch layout
        w_hh = uniform(k2, (4 * H, H), lstm_bound)
        b_ih = uniform(k3, (4 * H,), lstm_bound)
        b_hh = uniform(k4, (4 * H,), lstm_bound)
        params[f"w_ih{layer}_t"] = w_ih.T               # (d_in, 4H)
        params[f"w_hh{layer}_t"] = w_hh.T               # (H, 4H)
        params[f"b{layer}"] = (b_ih + b_hh)[None, :]    # (1, 4H)

    b1 = 1.0 / (H ** 0.5)
    key, k1, k2 = jax.random.split(key, 3)
    params["fc1_w_t"] = uniform(k1, (H, 64), b1)        # (H, 64)
    params["fc1_b"] = uniform(k2, (1, 64), b1)
    b2 = 1.0 / (64 ** 0.5)
    key, k1, k2 = jax.random.split(key, 3)
    params["fc2_w_row"] = uniform(k1, (1, 64), b2)      # row vector of fc2
    params["fc2_b"] = uniform(k2, (1, 1), b2)
    return params


if __name__ == "__main__":
    INPUT_SIZE, HIDDEN, B, T = 16, 128, 4, 8   # hidden=128 = module default
    key = jax.random.PRNGKey(0)
    pkey, xkey = jax.random.split(key)

    params = init_params(pkey, input_size=INPUT_SIZE, hidden_size=HIDDEN)
    x = jax.random.normal(xkey, (B, T, INPUT_SIZE), jnp.float32)

    fwd = jax.jit(simple_lstm_forward)
    out = jax.block_until_ready(fwd(params, x))

    assert out.shape == (B, 1)
    assert bool(jnp.all((out >= 0.0) & (out <= 1.0)))
    print("KERNEL_OK")
</pallas_src>

<mosaic_0001>
module attributes {stable_mosaic.version = 11 : i64} {
  func.func @_fused_lstm_kernel(%arg0: i32, %arg1: memref<8x8x16xf32, #tpu.memory_space<vmem>>, %arg2: memref<16x512xbf16, #tpu.memory_space<vmem>>, %arg3: memref<128x512xbf16, #tpu.memory_space<vmem>>, %arg4: memref<1x512xf32, #tpu.memory_space<vmem>>, %arg5: memref<128x512xbf16, #tpu.memory_space<vmem>>, %arg6: memref<128x512xbf16, #tpu.memory_space<vmem>>, %arg7: memref<1x512xf32, #tpu.memory_space<vmem>>, %arg8: memref<128x64xbf16, #tpu.memory_space<vmem>>, %arg9: memref<1x64xf32, #tpu.memory_space<vmem>>, %arg10: memref<1x64xf32, #tpu.memory_space<vmem>>, %arg11: memref<1x1xf32, #tpu.memory_space<vmem>>, %arg12: memref<8x1xf32, #tpu.memory_space<vmem>>) attributes {dimension_semantics = [#tpu.dimension_semantics<parallel>], iteration_bounds = array<i64: 1>, scalar_prefetch = 0 : i64, scratch_operands = 0 : i64, tpu.core_type = #tpu.core_type<tc>, window_params = [{transform_indices = @transform_0, window_bounds = array<i64: 8, 8, 16>}, {pipeline_mode = #tpu.pipeline_mode<synchronous>, transform_indices = @transform_1, window_bounds = array<i64: 16, 512>}, {pipeline_mode = #tpu.pipeline_mode<synchronous>, transform_indices = @transform_2, window_bounds = array<i64: 128, 512>}, {pipeline_mode = #tpu.pipeline_mode<synchronous>, transform_indices = @transform_3, window_bounds = array<i64: 1, 512>}, {pipeline_mode = #tpu.pipeline_mode<synchronous>, transform_indices = @transform_4, window_bounds = array<i64: 128, 512>}, {pipeline_mode = #tpu.pipeline_mode<synchronous>, transform_indices = @transform_5, window_bounds = array<i64: 128, 512>}, {pipeline_mode = #tpu.pipeline_mode<synchronous>, transform_indices = @transform_6, window_bounds = array<i64: 1, 512>}, {pipeline_mode = #tpu.pipeline_mode<synchronous>, transform_indices = @transform_7, window_bounds = array<i64: 128, 64>}, {pipeline_mode = #tpu.pipeline_mode<synchronous>, transform_indices = @transform_8, window_bounds = array<i64: 1, 64>}, {pipeline_mode = #tpu.pipeline_mode<synchronous>, transform_indices = @transform_9, window_bounds = array<i64: 1, 64>}, {pipeline_mode = #tpu.pipeline_mode<synchronous>, transform_indices = @transform_10, window_bounds = array<i64: 1, 1>}, {transform_indices = @transform_11, window_bounds = array<i64: 8, 1>}]} {
    %c0 = arith.constant 0 : index
    %c0_0 = arith.constant 0 : index
    %0 = vector.load %arg2[%c0, %c0_0] : memref<16x512xbf16, #tpu.memory_space<vmem>>, vector<16x512xbf16>
    %c0_1 = arith.constant 0 : index
    %c0_2 = arith.constant 0 : index
    %1 = vector.load %arg3[%c0_1, %c0_2] : memref<128x512xbf16, #tpu.memory_space<vmem>>, vector<128x512xbf16>
    %c0_3 = arith.constant 0 : index
    %c0_4 = arith.constant 0 : index
    %2 = vector.load %arg5[%c0_3, %c0_4] : memref<128x512xbf16, #tpu.memory_space<vmem>>, vector<128x512xbf16>
    %c0_5 = arith.constant 0 : index
    %c0_6 = arith.constant 0 : index
    %3 = vector.load %arg6[%c0_5, %c0_6] : memref<128x512xbf16, #tpu.memory_space<vmem>>, vector<128x512xbf16>
    %c0_7 = arith.constant 0 : index
    %c0_8 = arith.constant 0 : index
    %4 = vector.load %arg4[%c0_7, %c0_8] : memref<1x512xf32, #tpu.memory_space<vmem>>, vector<1x512xf32>
    %c0_9 = arith.constant 0 : index
    %c0_10 = arith.constant 0 : index
    %5 = vector.load %arg7[%c0_9, %c0_10] : memref<1x512xf32, #tpu.memory_space<vmem>>, vector<1x512xf32>
    %c0_11 = arith.constant 0 : index
    %c0_12 = arith.constant 0 : index
    %c0_13 = arith.constant 0 : index
    %6 = vector.load %arg1[%c0_11, %c0_12, %c0_13] : memref<8x8x16xf32, #tpu.memory_space<vmem>>, vector<8x8x16xf32>
    %7 = vector.shape_cast %6 : vector<8x8x16xf32> to vector<64x16xf32>
    %8 = arith.truncf %7 : vector<64x16xf32> to vector<64x16xbf16>
    %cst = arith.constant dense<0.000000e+00> : vector<64x512xf32>
    %9 = tpu.matmul %8, %0, %cst {dimension_numbers = #tpu.dot_dimension_numbers<[1], [0], [0], [1], [0, 0, 1, 1], [], []>} : vector<64x16xbf16>, vector<16x512xbf16>, vector<64x512xf32> -> vector<64x512xf32>
    %10 = vector.broadcast %4 : vector<1x512xf32> to vector<64x512xf32>
    %11 = arith.addf %9, %10 : vector<64x512xf32>
    %12 = vector.shape_cast %11 : vector<64x512xf32> to vector<8x8x512xf32>
    %cst_14 = arith.constant 0.000000e+00 : f32
    %13 = vector.broadcast %cst_14 : f32 to vector<8x128xf32>
    %cst_15 = arith.constant 0.000000e+00 : f32
    %14 = vector.broadcast %cst_15 : f32 to vector<8x128xf32>
    %cst_16 = arith.constant 0.000000e+00 : f32
    %15 = vector.broadcast %cst_16 : f32 to vector<8x128xf32>
    %cst_17 = arith.constant 0.000000e+00 : f32
    %16 = vector.broadcast %cst_17 : f32 to vector<8x128xf32>
    %17 = vector.extract_strided_slice %12 {offsets = [0, 0, 0], sizes = [1, 8, 512], strides = [1, 1, 1]} : vector<8x8x512xf32> to vector<1x8x512xf32>
    %18 = vector.shape_cast %17 : vector<1x8x512xf32> to vector<8x512xf32>
    %19 = arith.truncf %13 : vector<8x128xf32> to vector<8x128xbf16>
    %cst_18 = arith.constant dense<0.000000e+00> : vector<8x512xf32>
    %20 = tpu.matmul %19, %1, %cst_18 {dimension_numbers = #tpu.dot_dimension_numbers<[1], [0], [0], [1], [0, 0, 1, 1], [], []>} : vector<8x128xbf16>, vector<128x512xbf16>, vector<8x512xf32> -> vector<8x512xf32>
    %21 = arith.addf %18, %20 : vector<8x512xf32>
    %22 = vector.extract_strided_slice %21 {offsets = [0, 0], sizes = [8, 256], strides = [1, 1]} : vector<8x512xf32> to vector<8x256xf32>
    %23 = arith.negf %22 : vector<8x256xf32>
    %24 = math.exp %23 : vector<8x256xf32>
    %cst_19 = arith.constant 1.000000e+00 : f32
    %25 = vector.broadcast %cst_19 : f32 to vector<8x256xf32>
    %26 = arith.addf %25, %24 : vector<8x256xf32>
    %27 = arith.divf %25, %26 : vector<8x256xf32>
    %28 = vector.extract_strided_slice %27 {offsets = [0, 0], sizes = [8, 128], strides = [1, 1]} : vector<8x256xf32> to vector<8x128xf32>
    %29 = vector.extract_strided_slice %27 {offsets = [0, 128], sizes = [8, 128], strides = [1, 1]} : vector<8x256xf32> to vector<8x128xf32>
    %30 = vector.extract_strided_slice %21 {offsets = [0, 256], sizes = [8, 128], strides = [1, 1]} : vector<8x512xf32> to vector<8x128xf32>
    %31 = math.tanh %30 : vector<8x128xf32>
    %32 = vector.extract_strided_slice %21 {offsets = [0, 384], sizes = [8, 128], strides = [1, 1]} : vector<8x512xf32> to vector<8x128xf32>
    %33 = arith.negf %32 : vector<8x128xf32>
    %34 = math.exp %33 : vector<8x128xf32>
    %cst_20 = arith.constant 1.000000e+00 : f32
    %35 = vector.broadcast %cst_20 : f32 to vector<8x128xf32>
    %36 = arith.addf %35, %34 : vector<8x128xf32>
    %37 = arith.divf %35, %36 : vector<8x128xf32>
    %38 = arith.mulf %29, %14 : vector<8x128xf32>
    %39 = arith.mulf %28, %31 : vector<8x128xf32>
    %40 = arith.addf %38, %39 : vector<8x128xf32>
    %41 = math.tanh %40 : vector<8x128xf32>
    %42 = arith.mulf %37, %41 : vector<8x128xf32>
    %43 = arith.truncf %42 : vector<8x128xf32> to vector<8x128xbf16>
    %cst_21 = arith.constant dense<0.000000e+00> : vector<8x512xf32>
    %44 = tpu.matmul %43, %2, %cst_21 {dimension_numbers = #tpu.dot_dimension_numbers<[1], [0], [0], [1], [0, 0, 1, 1], [], []>} : vector<8x128xbf16>, vector<128x512xbf16>, vector<8x512xf32> -> vector<8x512xf32>
    %45 = vector.broadcast %5 : vector<1x512xf32> to vector<8x512xf32>
    %46 = arith.addf %44, %45 : vector<8x512xf32>
    %47 = arith.truncf %15 : vector<8x128xf32> to vector<8x128xbf16>
    %cst_22 = arith.constant dense<0.000000e+00> : vector<8x512xf32>
    %48 = tpu.matmul %47, %3, %cst_22 {dimension_numbers = #tpu.dot_dimension_numbers<[1], [0], [0], [1], [0, 0, 1, 1], [], []>} : vector<8x128xbf16>, vector<128x512xbf16>, vector<8x512xf32> -> vector<8x512xf32>
    %49 = arith.addf %46, %48 : vector<8x512xf32>
    %50 = vector.extract_strided_slice %49 {offsets = [0, 0], sizes = [8, 256], strides = [1, 1]} : vector<8x512xf32> to vector<8x256xf32>
    %51 = arith.negf %50 : vector<8x256xf32>
    %52 = math.exp %51 : vector<8x256xf32>
    %cst_23 = arith.constant 1.000000e+00 : f32
    %53 = vector.broadcast %cst_23 : f32 to vector<8x256xf32>
    %54 = arith.addf %53, %52 : vector<8x256xf32>
    %55 = arith.divf %53, %54 : vector<8x256xf32>
    %56 = vector.extract_strided_slice %55 {offsets = [0, 0], sizes = [8, 128], strides = [1, 1]} : vector<8x256xf32> to vector<8x128xf32>
    %57 = vector.extract_strided_slice %55 {offsets = [0, 128], sizes = [8, 128], strides = [1, 1]} : vector<8x256xf32> to vector<8x128xf32>
    %58 = vector.extract_strided_slice %49 {offsets = [0, 256], sizes = [8, 128], strides = [1, 1]} : vector<8x512xf32> to vector<8x128xf32>
    %59 = math.tanh %58 : vector<8x128xf32>
    %60 = vector.extract_strided_slice %49 {offsets = [0, 384], sizes = [8, 128], strides = [1, 1]} : vector<8x512xf32> to vector<8x128xf32>
    %61 = arith.negf %60 : vector<8x128xf32>
    %62 = math.exp %61 : vector<8x128xf32>
    %cst_24 = arith.constant 1.000000e+00 : f32
    %63 = vector.broadcast %cst_24 : f32 to vector<8x128xf32>
    %64 = arith.addf %63, %62 : vector<8x128xf32>
    %65 = arith.divf %63, %64 : vector<8x128xf32>
    %66 = arith.mulf %57, %16 : vector<8x128xf32>
    %67 = arith.mulf %56, %59 : vector<8x128xf32>
    %68 = arith.addf %66, %67 : vector<8x128xf32>
    %69 = math.tanh %68 : vector<8x128xf32>
    %70 = arith.mulf %65, %69 : vector<8x128xf32>
    %71 = vector.extract_strided_slice %12 {offsets = [1, 0, 0], sizes = [1, 8, 512], strides = [1, 1, 1]} : vector<8x8x512xf32> to vector<1x8x512xf32>
    %72 = vector.shape_cast %71 : vector<1x8x512xf32> to vector<8x512xf32>
    %73 = arith.truncf %42 : vector<8x128xf32> to vector<8x128xbf16>
    %cst_25 = arith.constant dense<0.000000e+00> : vector<8x512xf32>
    %74 = tpu.matmul %73, %1, %cst_25 {dimension_numbers = #tpu.dot_dimension_numbers<[1], [0], [0], [1], [0, 0, 1, 1], [], []>} : vector<8x128xbf16>, vector<128x512xbf16>, vector<8x512xf32> -> vector<8x512xf32>
    %75 = arith.addf %72, %74 : vector<8x512xf32>
    %76 = vector.extract_strided_slice %75 {offsets = [0, 0], sizes = [8, 256], strides = [1, 1]} : vector<8x512xf32> to vector<8x256xf32>
    %77 = arith.negf %76 : vector<8x256xf32>
    %78 = math.exp %77 : vector<8x256xf32>
    %cst_26 = arith.constant 1.000000e+00 : f32
    %79 = vector.broadcast %cst_26 : f32 to vector<8x256xf32>
    %80 = arith.addf %79, %78 : vector<8x256xf32>
    %81 = arith.divf %79, %80 : vector<8x256xf32>
    %82 = vector.extract_strided_slice %81 {offsets = [0, 0], sizes = [8, 128], strides = [1, 1]} : vector<8x256xf32> to vector<8x128xf32>
    %83 = vector.extract_strided_slice %81 {offsets = [0, 128], sizes = [8, 128], strides = [1, 1]} : vector<8x256xf32> to vector<8x128xf32>
    %84 = vector.extract_strided_slice %75 {offsets = [0, 256], sizes = [8, 128], strides = [1, 1]} : vector<8x512xf32> to vector<8x128xf32>
    %85 = math.tanh %84 : vector<8x128xf32>
    %86 = vector.extract_strided_slice %75 {offsets = [0, 384], sizes = [8, 128], strides = [1, 1]} : vector<8x512xf32> to vector<8x128xf32>
    %87 = arith.negf %86 : vector<8x128xf32>
    %88 = math.exp %87 : vector<8x128xf32>
    %cst_27 = arith.constant 1.000000e+00 : f32
    %89 = vector.broadcast %cst_27 : f32 to vector<8x128xf32>
    %90 = arith.addf %89, %88 : vector<8x128xf32>
    %91 = arith.divf %89, %90 : vector<8x128xf32>
    %92 = arith.mulf %83, %40 : vector<8x128xf32>
    %93 = arith.mulf %82, %85 : vector<8x128xf32>
    %94 = arith.addf %92, %93 : vector<8x128xf32>
    %95 = math.tanh %94 : vector<8x128xf32>
    %96 = arith.mulf %91, %95 : vector<8x128xf32>
    %97 = arith.truncf %96 : vector<8x128xf32> to vector<8x128xbf16>
    %cst_28 = arith.constant dense<0.000000e+00> : vector<8x512xf32>
    %98 = tpu.matmul %97, %2, %cst_28 {dimension_numbers = #tpu.dot_dimension_numbers<[1], [0], [0], [1], [0, 0, 1, 1], [], []>} : vector<8x128xbf16>, vector<128x512xbf16>, vector<8x512xf32> -> vector<8x512xf32>
    %99 = vector.broadcast %5 : vector<1x512xf32> to vector<8x512xf32>
    %100 = arith.addf %98, %99 : vector<8x512xf32>
    %101 = arith.truncf %70 : vector<8x128xf32> to vector<8x128xbf16>
    %cst_29 = arith.constant dense<0.000000e+00> : vector<8x512xf32>
    %102 = tpu.matmul %101, %3, %cst_29 {dimension_numbers = #tpu.dot_dimension_numbers<[1], [0], [0], [1], [0, 0, 1, 1], [], []>} : vector<8x128xbf16>, vector<128x512xbf16>, vector<8x512xf32> -> vector<8x512xf32>
    %103 = arith.addf %100, %102 : vector<8x512xf32>
    %104 = vector.extract_strided_slice %103 {offsets = [0, 0], sizes = [8, 256], strides = [1, 1]} : vector<8x512xf32> to vector<8x256xf32>
    %105 = arith.negf %104 : vector<8x256xf32>
    %106 = math.exp %105 : vector<8x256xf32>
    %cst_30 = arith.constant 1.000000e+00 : f32
    %107 = vector.broadcast %cst_30 : f32 to vector<8x256xf32>
    %108 = arith.addf %107, %106 : vector<8x256xf32>
    %109 = arith.divf %107, %108 : vector<8x256xf32>
    %110 = vector.extract_strided_slice %109 {offsets = [0, 0], sizes = [8, 128], strides = [1, 1]} : vector<8x256xf32> to vector<8x128xf32>
    %111 = vector.extract_strided_slice %109 {offsets = [0, 128], sizes = [8, 128], strides = [1, 1]} : vector<8x256xf32> to vector<8x128xf32>
    %112 = vector.extract_strided_slice %103 {offsets = [0, 256], sizes = [8, 128], strides = [1, 1]} : vector<8x512xf32> to vector<8x128xf32>
    %113 = math.tanh %112 : vector<8x128xf32>
    %114 = vector.extract_strided_slice %103 {offsets = [0, 384], sizes = [8, 128], strides = [1, 1]} : vector<8x512xf32> to vector<8x128xf32>
    %115 = arith.negf %114 : vector<8x128xf32>
    %116 = math.exp %115 : vector<8x128xf32>
    %cst_31 = arith.constant 1.000000e+00 : f32
    %117 = vector.broadcast %cst_31 : f32 to vector<8x128xf32>
    %118 = arith.addf %117, %116 : vector<8x128xf32>
    %119 = arith.divf %117, %118 : vector<8x128xf32>
    %120 = arith.mulf %111, %68 : vector<8x128xf32>
    %121 = arith.mulf %110, %113 : vector<8x128xf32>
    %122 = arith.addf %120, %121 : vector<8x128xf32>
    %123 = math.tanh %122 : vector<8x128xf32>
    %124 = arith.mulf %119, %123 : vector<8x128xf32>
    %125 = vector.extract_strided_slice %12 {offsets = [2, 0, 0], sizes = [1, 8, 512], strides = [1, 1, 1]} : vector<8x8x512xf32> to vector<1x8x512xf32>
    %126 = vector.shape_cast %125 : vector<1x8x512xf32> to vector<8x512xf32>
    %127 = arith.truncf %96 : vector<8x128xf32> to vector<8x128xbf16>
    %cst_32 = arith.constant dense<0.000000e+00> : vector<8x512xf32>
    %128 = tpu.matmul %127, %1, %cst_32 {dimension_numbers = #tpu.dot_dimension_numbers<[1], [0], [0], [1], [0, 0, 1, 1], [], []>} : vector<8x128xbf16>, vector<128x512xbf16>, vector<8x512xf32> -> vector<8x512xf32>
    %129 = arith.addf %126, %128 : vector<8x512xf32>
    %130 = vector.extract_strided_slice %129 {offsets = [0, 0], sizes = [8, 256], strides = [1, 1]} : vector<8x512xf32> to vector<8x256xf32>
    %131 = arith.negf %130 : vector<8x256xf32>
    %132 = math.exp %131 : vector<8x256xf32>
    %cst_33 = arith.constant 1.000000e+00 : f32
    %133 = vector.broadcast %cst_33 : f32 to vector<8x256xf32>
    %134 = arith.addf %133, %132 : vector<8x256xf32>
    %135 = arith.divf %133, %134 : vector<8x256xf32>
    %136 = vector.extract_strided_slice %135 {offsets = [0, 0], sizes = [8, 128], strides = [1, 1]} : vector<8x256xf32> to vector<8x128xf32>
    %137 = vector.extract_strided_slice %135 {offsets = [0, 128], sizes = [8, 128], strides = [1, 1]} : vector<8x256xf32> to vector<8x128xf32>
    %138 = vector.extract_strided_slice %129 {offsets = [0, 256], sizes = [8, 128], strides = [1, 1]} : vector<8x512xf32> to vector<8x128xf32>
    %139 = math.tanh %138 : vector<8x128xf32>
    %140 = vector.extract_strided_slice %129 {offsets = [0, 384], sizes = [8, 128], strides = [1, 1]} : vector<8x512xf32> to vector<8x128xf32>
    %141 = arith.negf %140 : vector<8x128xf32>
    %142 = math.exp %141 : vector<8x128xf32>
    %cst_34 = arith.constant 1.000000e+00 : f32
    %143 = vector.broadcast %cst_34 : f32 to vector<8x128xf32>
    %144 = arith.addf %143, %142 : vector<8x128xf32>
    %145 = arith.divf %143, %144 : vector<8x128xf32>
    %146 = arith.mulf %137, %94 : vector<8x128xf32>
    %147 = arith.mulf %136, %139 : vector<8x128xf32>
    %148 = arith.addf %146, %147 : vector<8x128xf32>
    %149 = math.tanh %148 : vector<8x128xf32>
    %150 = arith.mulf %145, %149 : vector<8x128xf32>
    %151 = arith.truncf %150 : vector<8x128xf32> to vector<8x128xbf16>
    %cst_35 = arith.constant dense<0.000000e+00> : vector<8x512xf32>
    %152 = tpu.matmul %151, %2, %cst_35 {dimension_numbers = #tpu.dot_dimension_numbers<[1], [0], [0], [1], [0, 0, 1, 1], [], []>} : vector<8x128xbf16>, vector<128x512xbf16>, vector<8x512xf32> -> vector<8x512xf32>
    %153 = vector.broadcast %5 : vector<1x512xf32> to vector<8x512xf32>
    %154 = arith.addf %152, %153 : vector<8x512xf32>
    %155 = arith.truncf %124 : vector<8x128xf32> to vector<8x128xbf16>
    %cst_36 = arith.constant dense<0.000000e+00> : vector<8x512xf32>
    %156 = tpu.matmul %155, %3, %cst_36 {dimension_numbers = #tpu.dot_dimension_numbers<[1], [0], [0], [1], [0, 0, 1, 1], [], []>} : vector<8x128xbf16>, vector<128x512xbf16>, vector<8x512xf32> -> vector<8x512xf32>
    %157 = arith.addf %154, %156 : vector<8x512xf32>
    %158 = vector.extract_strided_slice %157 {offsets = [0, 0], sizes = [8, 256], strides = [1, 1]} : vector<8x512xf32> to vector<8x256xf32>
    %159 = arith.negf %158 : vector<8x256xf32>
    %160 = math.exp %159 : vector<8x256xf32>
    %cst_37 = arith.constant 1.000000e+00 : f32
    %161 = vector.broadcast %cst_37 : f32 to vector<8x256xf32>
    %162 = arith.addf %161, %160 : vector<8x256xf32>
    %163 = arith.divf %161, %162 : vector<8x256xf32>
    %164 = vector.extract_strided_slice %163 {offsets = [0, 0], sizes = [8, 128], strides = [1, 1]} : vector<8x256xf32> to vector<8x128xf32>
    %165 = vector.extract_strided_slice %163 {offsets = [0, 128], sizes = [8, 128], strides = [1, 1]} : vector<8x256xf32> to vector<8x128xf32>
    %166 = vector.extract_strided_slice %157 {offsets = [0, 256], sizes = [8, 128], strides = [1, 1]} : vector<8x512xf32> to vector<8x128xf32>
    %167 = math.tanh %166 : vector<8x128xf32>
    %168 = vector.extract_strided_slice %157 {offsets = [0, 384], sizes = [8, 128], strides = [1, 1]} : vector<8x512xf32> to vector<8x128xf32>
    %169 = arith.negf %168 : vector<8x128xf32>
    %170 = math.exp %169 : vector<8x128xf32>
    %cst_38 = arith.constant 1.000000e+00 : f32
    %171 = vector.broadcast %cst_38 : f32 to vector<8x128xf32>
    %172 = arith.addf %171, %170 : vector<8x128xf32>
    %173 = arith.divf %171, %172 : vector<8x128xf32>
    %174 = arith.mulf %165, %122 : vector<8x128xf32>
    %175 = arith.mulf %164, %167 : vector<8x128xf32>
    %176 = arith.addf %174, %175 : vector<8x128xf32>
    %177 = math.tanh %176 : vector<8x128xf32>
    %178 = arith.mulf %173, %177 : vector<8x128xf32>
    %179 = vector.extract_strided_slice %12 {offsets = [3, 0, 0], sizes = [1, 8, 512], strides = [1, 1, 1]} : vector<8x8x512xf32> to vector<1x8x512xf32>
    %180 = vector.shape_cast %179 : vector<1x8x512xf32> to vector<8x512xf32>
    %181 = arith.truncf %150 : vector<8x128xf32> to vector<8x128xbf16>
    %cst_39 = arith.constant dense<0.000000e+00> : vector<8x512xf32>
    %182 = tpu.matmul %181, %1, %cst_39 {dimension_numbers = #tpu.dot_dimension_numbers<[1], [0], [0], [1], [0, 0, 1, 1], [], []>} : vector<8x128xbf16>, vector<128x512xbf16>, vector<8x512xf32> -> vector<8x512xf32>
    %183 = arith.addf %180, %182 : vector<8x512xf32>
    %184 = vector.extract_strided_slice %183 {offsets = [0, 0], sizes = [8, 256], strides = [1, 1]} : vector<8x512xf32> to vector<8x256xf32>
    %185 = arith.negf %184 : vector<8x256xf32>
    %186 = math.exp %185 : vector<8x256xf32>
    %cst_40 = arith.constant 1.000000e+00 : f32
    %187 = vector.broadcast %cst_40 : f32 to vector<8x256xf32>
    %188 = arith.addf %187, %186 : vector<8x256xf32>
    %189 = arith.divf %187, %188 : vector<8x256xf32>
    %190 = vector.extract_strided_slice %189 {offsets = [0, 0], sizes = [8, 128], strides = [1, 1]} : vector<8x256xf32> to vector<8x128xf32>
    %191 = vector.extract_strided_slice %189 {offsets = [0, 128], sizes = [8, 128], strides = [1, 1]} : vector<8x256xf32> to vector<8x128xf32>
    %192 = vector.extract_strided_slice %183 {offsets = [0, 256], sizes = [8, 128], strides = [1, 1]} : vector<8x512xf32> to vector<8x128xf32>
    %193 = math.tanh %192 : vector<8x128xf32>
    %194 = vector.extract_strided_slice %183 {offsets = [0, 384], sizes = [8, 128], strides = [1, 1]} : vector<8x512xf32> to vector<8x128xf32>
    %195 = arith.negf %194 : vector<8x128xf32>
    %196 = math.exp %195 : vector<8x128xf32>
    %cst_41 = arith.constant 1.000000e+00 : f32
    %197 = vector.broadcast %cst_41 : f32 to vector<8x128xf32>
    %198 = arith.addf %197, %196 : vector<8x128xf32>
    %199 = arith.divf %197, %198 : vector<8x128xf32>
    %200 = arith.mulf %191, %148 : vector<8x128xf32>
    %201 = arith.mulf %190, %193 : vector<8x128xf32>
    %202 = arith.addf %200, %201 : vector<8x128xf32>
    %203 = math.tanh %202 : vector<8x128xf32>
    %204 = arith.mulf %199, %203 : vector<8x128xf32>
    %205 = arith.truncf %204 : vector<8x128xf32> to vector<8x128xbf16>
    %cst_42 = arith.constant dense<0.000000e+00> : vector<8x512xf32>
    %206 = tpu.matmul %205, %2, %cst_42 {dimension_numbers = #tpu.dot_dimension_numbers<[1], [0], [0], [1], [0, 0, 1, 1], [], []>} : vector<8x128xbf16>, vector<128x512xbf16>, vector<8x512xf32> -> vector<8x512xf32>
    %207 = vector.broadcast %5 : vector<1x512xf32> to vector<8x512xf32>
    %208 = arith.addf %206, %207 : vector<8x512xf32>
    %209 = arith.truncf %178 : vector<8x128xf32> to vector<8x128xbf16>
    %cst_43 = arith.constant dense<0.000000e+00> : vector<8x512xf32>
    %210 = tpu.matmul %209, %3, %cst_43 {dimension_numbers = #tpu.dot_dimension_numbers<[1], [0], [0], [1], [0, 0, 1, 1], [], []>} : vector<8x128xbf16>, vector<128x512xbf16>, vector<8x512xf32> -> vector<8x512xf32>
    %211 = arith.addf %208, %210 : vector<8x512xf32>
    %212 = vector.extract_strided_slice %211 {offsets = [0, 0], sizes = [8, 256], strides = [1, 1]} : vector<8x512xf32> to vector<8x256xf32>
    %213 = arith.negf %212 : vector<8x256xf32>
    %214 = math.exp %213 : vector<8x256xf32>
    %cst_44 = arith.constant 1.000000e+00 : f32
    %215 = vector.broadcast %cst_44 : f32 to vector<8x256xf32>
    %216 = arith.addf %215, %214 : vector<8x256xf32>
    %217 = arith.divf %215, %216 : vector<8x256xf32>
    %218 = vector.extract_strided_slice %217 {offsets = [0, 0], sizes = [8, 128], strides = [1, 1]} : vector<8x256xf32> to vector<8x128xf32>
    %219 = vector.extract_strided_slice %217 {offsets = [0, 128], sizes = [8, 128], strides = [1, 1]} : vector<8x256xf32> to vector<8x128xf32>
    %220 = vector.extract_strided_slice %211 {offsets = [0, 256], sizes = [8, 128], strides = [1, 1]} : vector<8x512xf32> to vector<8x128xf32>
    %221 = math.tanh %220 : vector<8x128xf32>
    %222 = vector.extract_strided_slice %211 {offsets = [0, 384], sizes = [8, 128], strides = [1, 1]} : vector<8x512xf32> to vector<8x128xf32>
    %223 = arith.negf %222 : vector<8x128xf32>
    %224 = math.exp %223 : vector<8x128xf32>
    %cst_45 = arith.constant 1.000000e+00 : f32
    %225 = vector.broadcast %cst_45 : f32 to vector<8x128xf32>
    %226 = arith.addf %225, %224 : vector<8x128xf32>
    %227 = arith.divf %225, %226 : vector<8x128xf32>
    %228 = arith.mulf %219, %176 : vector<8x128xf32>
    %229 = arith.mulf %218, %221 : vector<8x128xf32>
    %230 = arith.addf %228, %229 : vector<8x128xf32>
    %231 = math.tanh %230 : vector<8x128xf32>
    %232 = arith.mulf %227, %231 : vector<8x128xf32>
    %233 = vector.extract_strided_slice %12 {offsets = [4, 0, 0], sizes = [1, 8, 512], strides = [1, 1, 1]} : vector<8x8x512xf32> to vector<1x8x512xf32>
    %234 = vector.shape_cast %233 : vector<1x8x512xf32> to vector<8x512xf32>
    %235 = arith.truncf %204 : vector<8x128xf32> to vector<8x128xbf16>
    %cst_46 = arith.constant dense<0.000000e+00> : vector<8x512xf32>
    %236 = tpu.matmul %235, %1, %cst_46 {dimension_numbers = #tpu.dot_dimension_numbers<[1], [0], [0], [1], [0, 0, 1, 1], [], []>} : vector<8x128xbf16>, vector<128x512xbf16>, vector<8x512xf32> -> vector<8x512xf32>
    %237 = arith.addf %234, %236 : vector<8x512xf32>
    %238 = vector.extract_strided_slice %237 {offsets = [0, 0], sizes = [8, 256], strides = [1, 1]} : vector<8x512xf32> to vector<8x256xf32>
    %239 = arith.negf %238 : vector<8x256xf32>
    %240 = math.exp %239 : vector<8x256xf32>
    %cst_47 = arith.constant 1.000000e+00 : f32
    %241 = vector.broadcast %cst_47 : f32 to vector<8x256xf32>
    %242 = arith.addf %241, %240 : vector<8x256xf32>
    %243 = arith.divf %241, %242 : vector<8x256xf32>
    %244 = vector.extract_strided_slice %243 {offsets = [0, 0], sizes = [8, 128], strides = [1, 1]} : vector<8x256xf32> to vector<8x128xf32>
    %245 = vector.extract_strided_slice %243 {offsets = [0, 128], sizes = [8, 128], strides = [1, 1]} : vector<8x256xf32> to vector<8x128xf32>
    %246 = vector.extract_strided_slice %237 {offsets = [0, 256], sizes = [8, 128], strides = [1, 1]} : vector<8x512xf32> to vector<8x128xf32>
    %247 = math.tanh %246 : vector<8x128xf32>
    %248 = vector.extract_strided_slice %237 {offsets = [0, 384], sizes = [8, 128], strides = [1, 1]} : vector<8x512xf32> to vector<8x128xf32>
    %249 = arith.negf %248 : vector<8x128xf32>
    %250 = math.exp %249 : vector<8x128xf32>
    %cst_48 = arith.constant 1.000000e+00 : f32
    %251 = vector.broadcast %cst_48 : f32 to vector<8x128xf32>
    %252 = arith.addf %251, %250 : vector<8x128xf32>
    %253 = arith.divf %251, %252 : vector<8x128xf32>
    %254 = arith.mulf %245, %202 : vector<8x128xf32>
    %255 = arith.mulf %244, %247 : vector<8x128xf32>
    %256 = arith.addf %254, %255 : vector<8x128xf32>
    %257 = math.tanh %256 : vector<8x128xf32>
    %258 = arith.mulf %253, %257 : vector<8x128xf32>
    %259 = arith.truncf %258 : vector<8x128xf32> to vector<8x128xbf16>
    %cst_49 = arith.constant dense<0.000000e+00> : vector<8x512xf32>
    %260 = tpu.matmul %259, %2, %cst_49 {dimension_numbers = #tpu.dot_dimension_numbers<[1], [0], [0], [1], [0, 0, 1, 1], [], []>} : vector<8x128xbf16>, vector<128x512xbf16>, vector<8x512xf32> -> vector<8x512xf32>
    %261 = vector.broadcast %5 : vector<1x512xf32> to vector<8x512xf32>
    %262 = arith.addf %260, %261 : vector<8x512xf32>
    %263 = arith.truncf %232 : vector<8x128xf32> to vector<8x128xbf16>
    %cst_50 = arith.constant dense<0.000000e+00> : vector<8x512xf32>
    %264 = tpu.matmul %263, %3, %cst_50 {dimension_numbers = #tpu.dot_dimension_numbers<[1], [0], [0], [1], [0, 0, 1, 1], [], []>} : vector<8x128xbf16>, vector<128x512xbf16>, vector<8x512xf32> -> vector<8x512xf32>
    %265 = arith.addf %262, %264 : vector<8x512xf32>
    %266 = vector.extract_strided_slice %265 {offsets = [0, 0], sizes = [8, 256], strides = [1, 1]} : vector<8x512xf32> to vector<8x256xf32>
    %267 = arith.negf %266 : vector<8x256xf32>
    %268 = math.exp %267 : vector<8x256xf32>
    %cst_51 = arith.constant 1.000000e+00 : f32
    %269 = vector.broadcast %cst_51 : f32 to vector<8x256xf32>
    %270 = arith.addf %269, %268 : vector<8x256xf32>
    %271 = arith.divf %269, %270 : vector<8x256xf32>
    %272 = vector.extract_strided_slice %271 {offsets = [0, 0], sizes = [8, 128], strides = [1, 1]} : vector<8x256xf32> to vector<8x128xf32>
    %273 = vector.extract_strided_slice %271 {offsets = [0, 128], sizes = [8, 128], strides = [1, 1]} : vector<8x256xf32> to vector<8x128xf32>
    %274 = vector.extract_strided_slice %265 {offsets = [0, 256], sizes = [8, 128], strides = [1, 1]} : vector<8x512xf32> to vector<8x128xf32>
    %275 = math.tanh %274 : vector<8x128xf32>
    %276 = vector.extract_strided_slice %265 {offsets = [0, 384], sizes = [8, 128], strides = [1, 1]} : vector<8x512xf32> to vector<8x128xf32>
    %277 = arith.negf %276 : vector<8x128xf32>
    %278 = math.exp %277 : vector<8x128xf32>
    %cst_52 = arith.constant 1.000000e+00 : f32
    %279 = vector.broadcast %cst_52 : f32 to vector<8x128xf32>
    %280 = arith.addf %279, %278 : vector<8x128xf32>
    %281 = arith.divf %279, %280 : vector<8x128xf32>
    %282 = arith.mulf %273, %230 : vector<8x128xf32>
    %283 = arith.mulf %272, %275 : vector<8x128xf32>
    %284 = arith.addf %282, %283 : vector<8x128xf32>
    %285 = math.tanh %284 : vector<8x128xf32>
    %286 = arith.mulf %281, %285 : vector<8x128xf32>
    %287 = vector.extract_strided_slice %12 {offsets = [5, 0, 0], sizes = [1, 8, 512], strides = [1, 1, 1]} : vector<8x8x512xf32> to vector<1x8x512xf32>
    %288 = vector.shape_cast %287 : vector<1x8x512xf32> to vector<8x512xf32>
    %289 = arith.truncf %258 : vector<8x128xf32> to vector<8x128xbf16>
    %cst_53 = arith.constant dense<0.000000e+00> : vector<8x512xf32>
    %290 = tpu.matmul %289, %1, %cst_53 {dimension_numbers = #tpu.dot_dimension_numbers<[1], [0], [0], [1], [0, 0, 1, 1], [], []>} : vector<8x128xbf16>, vector<128x512xbf16>, vector<8x512xf32> -> vector<8x512xf32>
    %291 = arith.addf %288, %290 : vector<8x512xf32>
    %292 = vector.extract_strided_slice %291 {offsets = [0, 0], sizes = [8, 256], strides = [1, 1]} : vector<8x512xf32> to vector<8x256xf32>
    %293 = arith.negf %292 : vector<8x256xf32>
    %294 = math.exp %293 : vector<8x256xf32>
    %cst_54 = arith.constant 1.000000e+00 : f32
    %295 = vector.broadcast %cst_54 : f32 to vector<8x256xf32>
    %296 = arith.addf %295, %294 : vector<8x256xf32>
    %297 = arith.divf %295, %296 : vector<8x256xf32>
    %298 = vector.extract_strided_slice %297 {offsets = [0, 0], sizes = [8, 128], strides = [1, 1]} : vector<8x256xf32> to vector<8x128xf32>
    %299 = vector.extract_strided_slice %297 {offsets = [0, 128], sizes = [8, 128], strides = [1, 1]} : vector<8x256xf32> to vector<8x128xf32>
    %300 = vector.extract_strided_slice %291 {offsets = [0, 256], sizes = [8, 128], strides = [1, 1]} : vector<8x512xf32> to vector<8x128xf32>
    %301 = math.tanh %300 : vector<8x128xf32>
    %302 = vector.extract_strided_slice %291 {offsets = [0, 384], sizes = [8, 128], strides = [1, 1]} : vector<8x512xf32> to vector<8x128xf32>
    %303 = arith.negf %302 : vector<8x128xf32>
    %304 = math.exp %303 : vector<8x128xf32>
    %cst_55 = arith.constant 1.000000e+00 : f32
    %305 = vector.broadcast %cst_55 : f32 to vector<8x128xf32>
    %306 = arith.addf %305, %304 : vector<8x128xf32>
    %307 = arith.divf %305, %306 : vector<8x128xf32>
    %308 = arith.mulf %299, %256 : vector<8x128xf32>
    %309 = arith.mulf %298, %301 : vector<8x128xf32>
    %310 = arith.addf %308, %309 : vector<8x128xf32>
    %311 = math.tanh %310 : vector<8x128xf32>
    %312 = arith.mulf %307, %311 : vector<8x128xf32>
    %313 = arith.truncf %312 : vector<8x128xf32> to vector<8x128xbf16>
    %cst_56 = arith.constant dense<0.000000e+00> : vector<8x512xf32>
    %314 = tpu.matmul %313, %2, %cst_56 {dimension_numbers = #tpu.dot_dimension_numbers<[1], [0], [0], [1], [0, 0, 1, 1], [], []>} : vector<8x128xbf16>, vector<128x512xbf16>, vector<8x512xf32> -> vector<8x512xf32>
    %315 = vector.broadcast %5 : vector<1x512xf32> to vector<8x512xf32>
    %316 = arith.addf %314, %315 : vector<8x512xf32>
    %317 = arith.truncf %286 : vector<8x128xf32> to vector<8x128xbf16>
    %cst_57 = arith.constant dense<0.000000e+00> : vector<8x512xf32>
    %318 = tpu.matmul %317, %3, %cst_57 {dimension_numbers = #tpu.dot_dimension_numbers<[1], [0], [0], [1], [0, 0, 1, 1], [], []>} : vector<8x128xbf16>, vector<128x512xbf16>, vector<8x512xf32> -> vector<8x512xf32>
    %319 = arith.addf %316, %318 : vector<8x512xf32>
    %320 = vector.extract_strided_slice %319 {offsets = [0, 0], sizes = [8, 256], strides = [1, 1]} : vector<8x512xf32> to vector<8x256xf32>
    %321 = arith.negf %320 : vector<8x256xf32>
    %322 = math.exp %321 : vector<8x256xf32>
    %cst_58 = arith.constant 1.000000e+00 : f32
    %323 = vector.broadcast %cst_58 : f32 to vector<8x256xf32>
    %324 = arith.addf %323, %322 : vector<8x256xf32>
    %325 = arith.divf %323, %324 : vector<8x256xf32>
    %326 = vector.extract_strided_slice %325 {offsets = [0, 0], sizes = [8, 128], strides = [1, 1]} : vector<8x256xf32> to vector<8x128xf32>
    %327 = vector.extract_strided_slice %325 {offsets = [0, 128], sizes = [8, 128], strides = [1, 1]} : vector<8x256xf32> to vector<8x128xf32>
    %328 = vector.extract_strided_slice %319 {offsets = [0, 256], sizes = [8, 128], strides = [1, 1]} : vector<8x512xf32> to vector<8x128xf32>
    %329 = math.tanh %328 : vector<8x128xf32>
    %330 = vector.extract_strided_slice %319 {offsets = [0, 384], sizes = [8, 128], strides = [1, 1]} : vector<8x512xf32> to vector<8x128xf32>
    %331 = arith.negf %330 : vector<8x128xf32>
    %332 = math.exp %331 : vector<8x128xf32>
    %cst_59 = arith.constant 1.000000e+00 : f32
    %333 = vector.broadcast %cst_59 : f32 to vector<8x128xf32>
    %334 = arith.addf %333, %332 : vector<8x128xf32>
    %335 = arith.divf %333, %334 : vector<8x128xf32>
    %336 = arith.mulf %327, %284 : vector<8x128xf32>
    %337 = arith.mulf %326, %329 : vector<8x128xf32>
    %338 = arith.addf %336, %337 : vector<8x128xf32>
    %339 = math.tanh %338 : vector<8x128xf32>
    %340 = arith.mulf %335, %339 : vector<8x128xf32>
    %341 = vector.extract_strided_slice %12 {offsets = [6, 0, 0], sizes = [1, 8, 512], strides = [1, 1, 1]} : vector<8x8x512xf32> to vector<1x8x512xf32>
    %342 = vector.shape_cast %341 : vector<1x8x512xf32> to vector<8x512xf32>
    %343 = arith.truncf %312 : vector<8x128xf32> to vector<8x128xbf16>
    %cst_60 = arith.constant dense<0.000000e+00> : vector<8x512xf32>
    %344 = tpu.matmul %343, %1, %cst_60 {dimension_numbers = #tpu.dot_dimension_numbers<[1], [0], [0], [1], [0, 0, 1, 1], [], []>} : vector<8x128xbf16>, vector<128x512xbf16>, vector<8x512xf32> -> vector<8x512xf32>
    %345 = arith.addf %342, %344 : vector<8x512xf32>
    %346 = vector.extract_strided_slice %345 {offsets = [0, 0], sizes = [8, 256], strides = [1, 1]} : vector<8x512xf32> to vector<8x256xf32>
    %347 = arith.negf %346 : vector<8x256xf32>
    %348 = math.exp %347 : vector<8x256xf32>
    %cst_61 = arith.constant 1.000000e+00 : f32
    %349 = vector.broadcast %cst_61 : f32 to vector<8x256xf32>
    %350 = arith.addf %349, %348 : vector<8x256xf32>
    %351 = arith.divf %349, %350 : vector<8x256xf32>
    %352 = vector.extract_strided_slice %351 {offsets = [0, 0], sizes = [8, 128], strides = [1, 1]} : vector<8x256xf32> to vector<8x128xf32>
    %353 = vector.extract_strided_slice %351 {offsets = [0, 128], sizes = [8, 128], strides = [1, 1]} : vector<8x256xf32> to vector<8x128xf32>
    %354 = vector.extract_strided_slice %345 {offsets = [0, 256], sizes = [8, 128], strides = [1, 1]} : vector<8x512xf32> to vector<8x128xf32>
    %355 = math.tanh %354 : vector<8x128xf32>
    %356 = vector.extract_strided_slice %345 {offsets = [0, 384], sizes = [8, 128], strides = [1, 1]} : vector<8x512xf32> to vector<8x128xf32>
    %357 = arith.negf %356 : vector<8x128xf32>
    %358 = math.exp %357 : vector<8x128xf32>
    %cst_62 = arith.constant 1.000000e+00 : f32
    %359 = vector.broadcast %cst_62 : f32 to vector<8x128xf32>
    %360 = arith.addf %359, %358 : vector<8x128xf32>
    %361 = arith.divf %359, %360 : vector<8x128xf32>
    %362 = arith.mulf %353, %310 : vector<8x128xf32>
    %363 = arith.mulf %352, %355 : vector<8x128xf32>
    %364 = arith.addf %362, %363 : vector<8x128xf32>
    %365 = math.tanh %364 : vector<8x128xf32>
    %366 = arith.mulf %361, %365 : vector<8x128xf32>
    %367 = arith.truncf %366 : vector<8x128xf32> to vector<8x128xbf16>
    %cst_63 = arith.constant dense<0.000000e+00> : vector<8x512xf32>
    %368 = tpu.matmul %367, %2, %cst_63 {dimension_numbers = #tpu.dot_dimension_numbers<[1], [0], [0], [1], [0, 0, 1, 1], [], []>} : vector<8x128xbf16>, vector<128x512xbf16>, vector<8x512xf32> -> vector<8x512xf32>
    %369 = vector.broadcast %5 : vector<1x512xf32> to vector<8x512xf32>
    %370 = arith.addf %368, %369 : vector<8x512xf32>
    %371 = arith.truncf %340 : vector<8x128xf32> to vector<8x128xbf16>
    %cst_64 = arith.constant dense<0.000000e+00> : vector<8x512xf32>
    %372 = tpu.matmul %371, %3, %cst_64 {dimension_numbers = #tpu.dot_dimension_numbers<[1], [0], [0], [1], [0, 0, 1, 1], [], []>} : vector<8x128xbf16>, vector<128x512xbf16>, vector<8x512xf32> -> vector<8x512xf32>
    %373 = arith.addf %370, %372 : vector<8x512xf32>
    %374 = vector.extract_strided_slice %373 {offsets = [0, 0], sizes = [8, 256], strides = [1, 1]} : vector<8x512xf32> to vector<8x256xf32>
    %375 = arith.negf %374 : vector<8x256xf32>
    %376 = math.exp %375 : vector<8x256xf32>
    %cst_65 = arith.constant 1.000000e+00 : f32
    %377 = vector.broadcast %cst_65 : f32 to vector<8x256xf32>
    %378 = arith.addf %377, %376 : vector<8x256xf32>
    %379 = arith.divf %377, %378 : vector<8x256xf32>
    %380 = vector.extract_strided_slice %379 {offsets = [0, 0], sizes = [8, 128], strides = [1, 1]} : vector<8x256xf32> to vector<8x128xf32>
    %381 = vector.extract_strided_slice %379 {offsets = [0, 128], sizes = [8, 128], strides = [1, 1]} : vector<8x256xf32> to vector<8x128xf32>
    %382 = vector.extract_strided_slice %373 {offsets = [0, 256], sizes = [8, 128], strides = [1, 1]} : vector<8x512xf32> to vector<8x128xf32>
    %383 = math.tanh %382 : vector<8x128xf32>
    %384 = vector.extract_strided_slice %373 {offsets = [0, 384], sizes = [8, 128], strides = [1, 1]} : vector<8x512xf32> to vector<8x128xf32>
    %385 = arith.negf %384 : vector<8x128xf32>
    %386 = math.exp %385 : vector<8x128xf32>
    %cst_66 = arith.constant 1.000000e+00 : f32
    %387 = vector.broadcast %cst_66 : f32 to vector<8x128xf32>
    %388 = arith.addf %387, %386 : vector<8x128xf32>
    %389 = arith.divf %387, %388 : vector<8x128xf32>
    %390 = arith.mulf %381, %338 : vector<8x128xf32>
    %391 = arith.mulf %380, %383 : vector<8x128xf32>
    %392 = arith.addf %390, %391 : vector<8x128xf32>
    %393 = math.tanh %392 : vector<8x128xf32>
    %394 = arith.mulf %389, %393 : vector<8x128xf32>
    %395 = vector.extract_strided_slice %12 {offsets = [7, 0, 0], sizes = [1, 8, 512], strides = [1, 1, 1]} : vector<8x8x512xf32> to vector<1x8x512xf32>
    %396 = vector.shape_cast %395 : vector<1x8x512xf32> to vector<8x512xf32>
    %397 = arith.truncf %366 : vector<8x128xf32> to vector<8x128xbf16>
    %cst_67 = arith.constant dense<0.000000e+00> : vector<8x512xf32>
    %398 = tpu.matmul %397, %1, %cst_67 {dimension_numbers = #tpu.dot_dimension_numbers<[1], [0], [0], [1], [0, 0, 1, 1], [], []>} : vector<8x128xbf16>, vector<128x512xbf16>, vector<8x512xf32> -> vector<8x512xf32>
    %399 = arith.addf %396, %398 : vector<8x512xf32>
    %400 = vector.extract_strided_slice %399 {offsets = [0, 0], sizes = [8, 256], strides = [1, 1]} : vector<8x512xf32> to vector<8x256xf32>
    %401 = arith.negf %400 : vector<8x256xf32>
    %402 = math.exp %401 : vector<8x256xf32>
    %cst_68 = arith.constant 1.000000e+00 : f32
    %403 = vector.broadcast %cst_68 : f32 to vector<8x256xf32>
    %404 = arith.addf %403, %402 : vector<8x256xf32>
    %405 = arith.divf %403, %404 : vector<8x256xf32>
    %406 = vector.extract_strided_slice %405 {offsets = [0, 0], sizes = [8, 128], strides = [1, 1]} : vector<8x256xf32> to vector<8x128xf32>
    %407 = vector.extract_strided_slice %405 {offsets = [0, 128], sizes = [8, 128], strides = [1, 1]} : vector<8x256xf32> to vector<8x128xf32>
    %408 = vector.extract_strided_slice %399 {offsets = [0, 256], sizes = [8, 128], strides = [1, 1]} : vector<8x512xf32> to vector<8x128xf32>
    %409 = math.tanh %408 : vector<8x128xf32>
    %410 = vector.extract_strided_slice %399 {offsets = [0, 384], sizes = [8, 128], strides = [1, 1]} : vector<8x512xf32> to vector<8x128xf32>
    %411 = arith.negf %410 : vector<8x128xf32>
    %412 = math.exp %411 : vector<8x128xf32>
    %cst_69 = arith.constant 1.000000e+00 : f32
    %413 = vector.broadcast %cst_69 : f32 to vector<8x128xf32>
    %414 = arith.addf %413, %412 : vector<8x128xf32>
    %415 = arith.divf %413, %414 : vector<8x128xf32>
    %416 = arith.mulf %407, %364 : vector<8x128xf32>
    %417 = arith.mulf %406, %409 : vector<8x128xf32>
    %418 = arith.addf %416, %417 : vector<8x128xf32>
    %419 = math.tanh %418 : vector<8x128xf32>
    %420 = arith.mulf %415, %419 : vector<8x128xf32>
    %421 = arith.truncf %420 : vector<8x128xf32> to vector<8x128xbf16>
    %cst_70 = arith.constant dense<0.000000e+00> : vector<8x512xf32>
    %422 = tpu.matmul %421, %2, %cst_70 {dimension_numbers = #tpu.dot_dimension_numbers<[1], [0], [0], [1], [0, 0, 1, 1], [], []>} : vector<8x128xbf16>, vector<128x512xbf16>, vector<8x512xf32> -> vector<8x512xf32>
    %423 = vector.broadcast %5 : vector<1x512xf32> to vector<8x512xf32>
    %424 = arith.addf %422, %423 : vector<8x512xf32>
    %425 = arith.truncf %394 : vector<8x128xf32> to vector<8x128xbf16>
    %cst_71 = arith.constant dense<0.000000e+00> : vector<8x512xf32>
    %426 = tpu.matmul %425, %3, %cst_71 {dimension_numbers = #tpu.dot_dimension_numbers<[1], [0], [0], [1], [0, 0, 1, 1], [], []>} : vector<8x128xbf16>, vector<128x512xbf16>, vector<8x512xf32> -> vector<8x512xf32>
    %427 = arith.addf %424, %426 : vector<8x512xf32>
    %428 = vector.extract_strided_slice %427 {offsets = [0, 0], sizes = [8, 256], strides = [1, 1]} : vector<8x512xf32> to vector<8x256xf32>
    %429 = arith.negf %428 : vector<8x256xf32>
    %430 = math.exp %429 : vector<8x256xf32>
    %cst_72 = arith.constant 1.000000e+00 : f32
    %431 = vector.broadcast %cst_72 : f32 to vector<8x256xf32>
    %432 = arith.addf %431, %430 : vector<8x256xf32>
    %433 = arith.divf %431, %432 : vector<8x256xf32>
    %434 = vector.extract_strided_slice %433 {offsets = [0, 0], sizes = [8, 128], strides = [1, 1]} : vector<8x256xf32> to vector<8x128xf32>
    %435 = vector.extract_strided_slice %433 {offsets = [0, 128], sizes = [8, 128], strides = [1, 1]} : vector<8x256xf32> to vector<8x128xf32>
    %436 = vector.extract_strided_slice %427 {offsets = [0, 256], sizes = [8, 128], strides = [1, 1]} : vector<8x512xf32> to vector<8x128xf32>
    %437 = math.tanh %436 : vector<8x128xf32>
    %438 = vector.extract_strided_slice %427 {offsets = [0, 384], sizes = [8, 128], strides = [1, 1]} : vector<8x512xf32> to vector<8x128xf32>
    %439 = arith.negf %438 : vector<8x128xf32>
    %440 = math.exp %439 : vector<8x128xf32>
    %cst_73 = arith.constant 1.000000e+00 : f32
    %441 = vector.broadcast %cst_73 : f32 to vector<8x128xf32>
    %442 = arith.addf %441, %440 : vector<8x128xf32>
    %443 = arith.divf %441, %442 : vector<8x128xf32>
    %444 = arith.mulf %435, %392 : vector<8x128xf32>
    %445 = arith.mulf %434, %437 : vector<8x128xf32>
    %446 = arith.addf %444, %445 : vector<8x128xf32>
    %447 = math.tanh %446 : vector<8x128xf32>
    %448 = arith.mulf %443, %447 : vector<8x128xf32>
    %c0_74 = arith.constant 0 : index
    %c0_75 = arith.constant 0 : index
    %449 = vector.load %arg8[%c0_74, %c0_75] : memref<128x64xbf16, #tpu.memory_space<vmem>>, vector<128x64xbf16>
    %450 = arith.truncf %448 : vector<8x128xf32> to vector<8x128xbf16>
    %cst_76 = arith.constant dense<0.000000e+00> : vector<8x64xf32>
    %451 = tpu.matmul %450, %449, %cst_76 {dimension_numbers = #tpu.dot_dimension_numbers<[1], [0], [0], [1], [0, 0, 1, 1], [], []>} : vector<8x128xbf16>, vector<128x64xbf16>, vector<8x64xf32> -> vector<8x64xf32>
    %c0_77 = arith.constant 0 : index
    %c0_78 = arith.constant 0 : index
    %452 = vector.load %arg9[%c0_77, %c0_78] : memref<1x64xf32, #tpu.memory_space<vmem>>, vector<1x64xf32>
    %453 = vector.broadcast %452 : vector<1x64xf32> to vector<8x64xf32>
    %454 = arith.addf %451, %453 : vector<8x64xf32>
    %cst_79 = arith.constant 0.000000e+00 : f32
    %455 = vector.broadcast %cst_79 : f32 to vector<8x64xf32>
    %456 = arith.maximumf %454, %455 : vector<8x64xf32>
    %c0_80 = arith.constant 0 : index
    %c0_81 = arith.constant 0 : index
    %457 = vector.load %arg10[%c0_80, %c0_81] : memref<1x64xf32, #tpu.memory_space<vmem>>, vector<1x64xf32>
    %458 = vector.broadcast %457 : vector<1x64xf32> to vector<8x64xf32>
    %459 = arith.mulf %456, %458 : vector<8x64xf32>
    %cst_82 = arith.constant dense<0.000000e+00> : vector<8xf32>
    %460 = vector.multi_reduction <add>, %459, %cst_82 [1] : vector<8x64xf32> to vector<8xf32>
    %461 = vector.shape_cast %460 : vector<8xf32> to vector<8x1xf32>
    %c0_83 = arith.constant 0 : index
    %c0_84 = arith.constant 0 : index
    %462 = vector.load %arg11[%c0_83, %c0_84] : memref<1x1xf32, #tpu.memory_space<vmem>>, vector<1x1xf32>
    %463 = vector.broadcast %462 : vector<1x1xf32> to vector<8x1xf32>
    %464 = arith.addf %461, %463 : vector<8x1xf32>
    %465 = arith.negf %464 : vector<8x1xf32>
    %466 = math.exp %465 : vector<8x1xf32>
    %cst_85 = arith.constant 1.000000e+00 : f32
    %467 = vector.broadcast %cst_85 : f32 to vector<8x1xf32>
    %468 = arith.addf %467, %466 : vector<8x1xf32>
    %469 = arith.divf %467, %468 : vector<8x1xf32>
    %c0_86 = arith.constant 0 : index
    %c0_87 = arith.constant 0 : index
    %470 = vector.load %arg12[%c0_86, %c0_87] : memref<8x1xf32, #tpu.memory_space<vmem>>, vector<8x1xf32>
    tpu.vector_store %arg12[%c0_86, %c0_87], %469 {strides = array<i32>} : memref<8x1xf32, #tpu.memory_space<vmem>>, vector<8x1xf32>,
    return
  }
  func.func @transform_0(%arg0: i32) -> (i32, i32, i32) {
    %c0_i32 = arith.constant 0 : i32
    %c0_i32_0 = arith.constant 0 : i32
    %c0_i32_1 = arith.constant 0 : i32
    return %c0_i32, %arg0, %c0_i32_0 : i32, i32, i32
  }
  func.func @transform_1(%arg0: i32) -> (i32, i32) {
    %c0_i32 = arith.constant 0 : i32
    %c0_i32_0 = arith.constant 0 : i32
    %c0_i32_1 = arith.constant 0 : i32
    return %c0_i32, %c0_i32_0 : i32, i32
  }
  func.func @transform_2(%arg0: i32) -> (i32, i32) {
    %c0_i32 = arith.constant 0 : i32
    %c0_i32_0 = arith.constant 0 : i32
    %c0_i32_1 = arith.constant 0 : i32
    return %c0_i32, %c0_i32_0 : i32, i32
  }
  func.func @transform_3(%arg0: i32) -> (i32, i32) {
    %c0_i32 = arith.constant 0 : i32
    %c0_i32_0 = arith.constant 0 : i32
    %c0_i32_1 = arith.constant 0 : i32
    return %c0_i32, %c0_i32_0 : i32, i32
  }
  func.func @transform_4(%arg0: i32) -> (i32, i32) {
    %c0_i32 = arith.constant 0 : i32
    %c0_i32_0 = arith.constant 0 : i32
    %c0_i32_1 = arith.constant 0 : i32
    return %c0_i32, %c0_i32_0 : i32, i32
  }
  func.func @transform_5(%arg0: i32) -> (i32, i32) {
    %c0_i32 = arith.constant 0 : i32
    %c0_i32_0 = arith.constant 0 : i32
    %c0_i32_1 = arith.constant 0 : i32
    return %c0_i32, %c0_i32_0 : i32, i32
  }
  func.func @transform_6(%arg0: i32) -> (i32, i32) {
    %c0_i32 = arith.constant 0 : i32
    %c0_i32_0 = arith.constant 0 : i32
    %c0_i32_1 = arith.constant 0 : i32
    return %c0_i32, %c0_i32_0 : i32, i32
  }
  func.func @transform_7(%arg0: i32) -> (i32, i32) {
    %c0_i32 = arith.constant 0 : i32
    %c0_i32_0 = arith.constant 0 : i32
    %c0_i32_1 = arith.constant 0 : i32
    return %c0_i32, %c0_i32_0 : i32, i32
  }
  func.func @transform_8(%arg0: i32) -> (i32, i32) {
    %c0_i32 = arith.constant 0 : i32
    %c0_i32_0 = arith.constant 0 : i32
    %c0_i32_1 = arith.constant 0 : i32
    return %c0_i32, %c0_i32_0 : i32, i32
  }
  func.func @transform_9(%arg0: i32) -> (i32, i32) {
    %c0_i32 = arith.constant 0 : i32
    %c0_i32_0 = arith.constant 0 : i32
    %c0_i32_1 = arith.constant 0 : i32
    return %c0_i32, %c0_i32_0 : i32, i32
  }
  func.func @transform_10(%arg0: i32) -> (i32, i32) {
    %c0_i32 = arith.constant 0 : i32
    %c0_i32_0 = arith.constant 0 : i32
    %c0_i32_1 = arith.constant 0 : i32
    return %c0_i32, %c0_i32_0 : i32, i32
  }
  func.func @transform_11(%arg0: i32) -> (i32, i32) {
    %c0_i32 = arith.constant 0 : i32
    %c0_i32_0 = arith.constant 0 : i32
    return %arg0, %c0_i32 : i32, i32
  }
}

</mosaic_0001>

<llo_original>
// kernel: simple_lstm_forward.1
$region0: #{simple_lstm_forward.1}
  #allocation0 [shape = 'u32[]', space=smem, size = 0x4, offset = 0x4, fixed_abs, tag = 'smem constant byte address 0x4 - core index']
  #allocation1 [shape = 'u32[144,128]{1,0:T(1,128)}', space=vmem, size = 0x12000, scoped, tag = 'internal scratch']
  #allocation2 [shape = 'f32[1,1]{1,0:T(1,128)S(1)}', space=vmem, size = 0x200, scoped, tag = 'scoped memory for simple_lstm_forward.1']
  %s0 = inlined_call_operand.vmem [shape: f32[8,8,16], index: 0, kind: input, shape index: {}]
  %s1 = inlined_call_operand.vmem [shape: bf16[16,512], index: 1, kind: input, shape index: {}]
  %s2 = inlined_call_operand.vmem [shape: bf16[128,512], index: 2, kind: input, shape index: {}]
  %s3 = inlined_call_operand.vmem [shape: f32[1,512], index: 3, kind: input, shape index: {}]
  %s4 = inlined_call_operand.vmem [shape: bf16[128,512], index: 4, kind: input, shape index: {}]
  %s5 = inlined_call_operand.vmem [shape: bf16[128,512], index: 5, kind: input, shape index: {}]
  %s6 = inlined_call_operand.vmem [shape: f32[1,512], index: 6, kind: input, shape index: {}]
  %s7 = inlined_call_operand.vmem [shape: bf16[128,64], index: 7, kind: input, shape index: {}]
  %s8 = inlined_call_operand.vmem [shape: f32[1,64], index: 8, kind: input, shape index: {}]
  %s9 = inlined_call_operand.vmem [shape: f32[1,64], index: 9, kind: input, shape index: {}]
  %s10 = inlined_call_operand.<no memory space> [shape: f32[1,1], index: 10, kind: input, shape index: {}]
  %s11 = inlined_call_operand.vmem [shape: f32[8,1], index: 11, kind: output, shape index: {}]
  %s12 = sld [smem:[#allocation0]]
  $region54: #{simple_lstm_forward.1} parent=0
    _
  %s14 = ssub.s32 1, %s12
  %s15 = scalar_select 0, %s14, %s12
  %v16 = vstv %s10
  %17 = vst [vmem:[#allocation2] sm:$0x1] %v16
  // Predicated region
  $region2: #{simple_lstm_forward.1} parent=0 // pred_check
    _
  $region3: #{simple_lstm_forward.1} parent=0 // pred_check_branch
    %19 = sbr.rel (0) target = $region5
  $region4: #{simple_lstm_forward.1} parent=0 // pred_region
    _
  $region5: #{simple_lstm_forward.1} parent=0 // pred_fallthru
    _
  // Predicated region
  $region6: #{simple_lstm_forward.1} parent=0 // pred_check
    _
  $region7: #{simple_lstm_forward.1} parent=0 // pred_check_branch
    %21 = sbr.rel (0) target = $region9
  $region8: #{simple_lstm_forward.1} parent=0 // pred_region
    _
  $region9: #{simple_lstm_forward.1} parent=0 // pred_fallthru
    _
  // Predicated region
  $region10: #{simple_lstm_forward.1} parent=0 // pred_check
    _
  $region11: #{simple_lstm_forward.1} parent=0 // pred_check_branch
    %23 = sbr.rel (0) target = $region13
  $region12: #{simple_lstm_forward.1} parent=0 // pred_region
    _
  $region13: #{simple_lstm_forward.1} parent=0 // pred_fallthru
    _
  // Predicated region
  $region14: #{simple_lstm_forward.1} parent=0 // pred_check
    _
  $region15: #{simple_lstm_forward.1} parent=0 // pred_check_branch
    %25 = sbr.rel (0) target = $region17
  $region16: #{simple_lstm_forward.1} parent=0 // pred_region
    _
  $region17: #{simple_lstm_forward.1} parent=0 // pred_fallthru
    _
  // Predicated region
  $region18: #{simple_lstm_forward.1} parent=0 // pred_check
    _
  $region19: #{simple_lstm_forward.1} parent=0 // pred_check_branch
    %27 = sbr.rel (0) target = $region21
  $region20: #{simple_lstm_forward.1} parent=0 // pred_region
    _
  $region21: #{simple_lstm_forward.1} parent=0 // pred_fallthru
    _
  // Predicated region
  $region22: #{simple_lstm_forward.1} parent=0 // pred_check
    _
  $region23: #{simple_lstm_forward.1} parent=0 // pred_check_branch
    %29 = sbr.rel (0) target = $region25
  $region24: #{simple_lstm_forward.1} parent=0 // pred_region
    _
  $region25: #{simple_lstm_forward.1} parent=0 // pred_fallthru
    _
  // Predicated region
  $region26: #{simple_lstm_forward.1} parent=0 // pred_check
    _
  $region27: #{simple_lstm_forward.1} parent=0 // pred_check_branch
    %31 = sbr.rel (0) target = $region29
  $region28: #{simple_lstm_forward.1} parent=0 // pred_region
    _
  $region29: #{simple_lstm_forward.1} parent=0 // pred_fallthru
    _
  // Predicated region
  $region30: #{simple_lstm_forward.1} parent=0 // pred_check
    _
  $region31: #{simple_lstm_forward.1} parent=0 // pred_check_branch
    %33 = sbr.rel (0) target = $region33
  $region32: #{simple_lstm_forward.1} parent=0 // pred_region
    _
  $region33: #{simple_lstm_forward.1} parent=0 // pred_fallthru
    _
  // Predicated region
  $region34: #{simple_lstm_forward.1} parent=0 // pred_check
    _
  $region35: #{simple_lstm_forward.1} parent=0 // pred_check_branch
    %35 = sbr.rel (0) target = $region37
  $region36: #{simple_lstm_forward.1} parent=0 // pred_region
    _
  $region37: #{simple_lstm_forward.1} parent=0 // pred_fallthru
    _
  // Predicated region
  $region38: #{simple_lstm_forward.1} parent=0 // pred_check
    _
  $region39: #{simple_lstm_forward.1} parent=0 // pred_check_branch
    %37 = sbr.rel (0) target = $region41
  $region40: #{simple_lstm_forward.1} parent=0 // pred_region
    _
  $region41: #{simple_lstm_forward.1} parent=0 // pred_fallthru
    _
  // Predicated region
  $region42: #{simple_lstm_forward.1} parent=0 // pred_check
    _
  $region43: #{simple_lstm_forward.1} parent=0 // pred_check_branch
    %39 = sbr.rel (0) target = $region45
  $region44: #{simple_lstm_forward.1} parent=0 // pred_region
    _
  $region45: #{simple_lstm_forward.1} parent=0 // pred_fallthru
    _
  %v41 = vld [vmem:[%s1] sm:$0xff]
  %v42 = vld [vmem:[%s1 + $0x8] sm:$0xff]
  %v43 = vld [vmem:[%s1 + $0x10] sm:$0xff]
  %v44 = vld [vmem:[%s1 + $0x18] sm:$0xff]
  %v45 = vld [vmem:[%s2] sm:$0xff]
  %v46 = vld [vmem:[%s2 + $0x8] sm:$0xff]
  %v47 = vld [vmem:[%s2 + $0x10] sm:$0xff]
  %v48 = vld [vmem:[%s2 + $0x18] sm:$0xff]
  %v49 = vld [vmem:[%s2 + $0x20] sm:$0xff]
  %v50 = vld [vmem:[%s2 + $0x28] sm:$0xff]
  %v51 = vld [vmem:[%s2 + $0x30] sm:$0xff]
  %v52 = vld [vmem:[%s2 + $0x38] sm:$0xff]
  %v53 = vld [vmem:[%s2 + $0x40] sm:$0xff]
  %v54 = vld [vmem:[%s2 + $0x48] sm:$0xff]
  %v55 = vld [vmem:[%s2 + $0x50] sm:$0xff]
  %v56 = vld [vmem:[%s2 + $0x58] sm:$0xff]
  %v57 = vld [vmem:[%s2 + $0x60] sm:$0xff]
  %v58 = vld [vmem:[%s2 + $0x68] sm:$0xff]
  %v59 = vld [vmem:[%s2 + $0x70] sm:$0xff]
  %v60 = vld [vmem:[%s2 + $0x78] sm:$0xff]
  %v61 = vld [vmem:[%s2 + $0x80] sm:$0xff]
  %v62 = vld [vmem:[%s2 + $0x88] sm:$0xff]
  %v63 = vld [vmem:[%s2 + $0x90] sm:$0xff]
  %v64 = vld [vmem:[%s2 + $0x98] sm:$0xff]
  %v65 = vld [vmem:[%s2 + $0xa0] sm:$0xff]
  %v66 = vld [vmem:[%s2 + $0xa8] sm:$0xff]
  %v67 = vld [vmem:[%s2 + $0xb0] sm:$0xff]
  %v68 = vld [vmem:[%s2 + $0xb8] sm:$0xff]
  %v69 = vld [vmem:[%s2 + $0xc0] sm:$0xff]
  %v70 = vld [vmem:[%s2 + $0xc8] sm:$0xff]
  %v71 = vld [vmem:[%s2 + $0xd0] sm:$0xff]
  %v72 = vld [vmem:[%s2 + $0xd8] sm:$0xff]
  %v73 = vld [vmem:[%s2 + $0xe0] sm:$0xff]
  %v74 = vld [vmem:[%s2 + $0xe8] sm:$0xff]
  %v75 = vld [vmem:[%s2 + $0xf0] sm:$0xff]
  %v76 = vld [vmem:[%s2 + $0xf8] sm:$0xff]
  %v77 = vld [vmem:[%s4] sm:$0xff]
  %v78 = vld [vmem:[%s4 + $0x8] sm:$0xff]
  %v79 = vld [vmem:[%s4 + $0x10] sm:$0xff]
  %v80 = vld [vmem:[%s4 + $0x18] sm:$0xff]
  %v81 = vld [vmem:[%s4 + $0x20] sm:$0xff]
  %v82 = vld [vmem:[%s4 + $0x28] sm:$0xff]
  %v83 = vld [vmem:[%s4 + $0x30] sm:$0xff]
  %v84 = vld [vmem:[%s4 + $0x38] sm:$0xff]
  %v85 = vld [vmem:[%s4 + $0x40] sm:$0xff]
  %v86 = vld [vmem:[%s4 + $0x48] sm:$0xff]
  %v87 = vld [vmem:[%s4 + $0x50] sm:$0xff]
  %v88 = vld [vmem:[%s4 + $0x58] sm:$0xff]
  %v89 = vld [vmem:[%s4 + $0x60] sm:$0xff]
  %v90 = vld [vmem:[%s4 + $0x68] sm:$0xff]
  %v91 = vld [vmem:[%s4 + $0x70] sm:$0xff]
  %v92 = vld [vmem:[%s4 + $0x78] sm:$0xff]
  %v93 = vld [vmem:[%s4 + $0x80] sm:$0xff]
  %v94 = vld [vmem:[%s4 + $0x88] sm:$0xff]
  %v95 = vld [vmem:[%s4 + $0x90] sm:$0xff]
  %v96 = vld [vmem:[%s4 + $0x98] sm:$0xff]
  %v97 = vld [vmem:[%s4 + $0xa0] sm:$0xff]
  %v98 = vld [vmem:[%s4 + $0xa8] sm:$0xff]
  %v99 = vld [vmem:[%s4 + $0xb0] sm:$0xff]
  %v100 = vld [vmem:[%s4 + $0xb8] sm:$0xff]
  %v101 = vld [vmem:[%s4 + $0xc0] sm:$0xff]
  %v102 = vld [vmem:[%s4 + $0xc8] sm:$0xff]
  %v103 = vld [vmem:[%s4 + $0xd0] sm:$0xff]
  %v104 = vld [vmem:[%s4 + $0xd8] sm:$0xff]
  %v105 = vld [vmem:[%s4 + $0xe0] sm:$0xff]
  %v106 = vld [vmem:[%s4 + $0xe8] sm:$0xff]
  %v107 = vld [vmem:[%s4 + $0xf0] sm:$0xff]
  %v108 = vld [vmem:[%s4 + $0xf8] sm:$0xff]
  %v109 = vld [vmem:[%s5] sm:$0xff]
  %v110 = vld [vmem:[%s5 + $0x8] sm:$0xff]
  %v111 = vld [vmem:[%s5 + $0x10] sm:$0xff]
  %v112 = vld [vmem:[%s5 + $0x18] sm:$0xff]
  %v113 = vld [vmem:[%s5 + $0x20] sm:$0xff]
  %v114 = vld [vmem:[%s5 + $0x28] sm:$0xff]
  %v115 = vld [vmem:[%s5 + $0x30] sm:$0xff]
  %v116 = vld [vmem:[%s5 + $0x38] sm:$0xff]
  %v117 = vld [vmem:[%s5 + $0x40] sm:$0xff]
  %v118 = vld [vmem:[%s5 + $0x48] sm:$0xff]
  %v119 = vld [vmem:[%s5 + $0x50] sm:$0xff]
  %v120 = vld [vmem:[%s5 + $0x58] sm:$0xff]
  %v121 = vld [vmem:[%s5 + $0x60] sm:$0xff]
  %v122 = vld [vmem:[%s5 + $0x68] sm:$0xff]
  %v123 = vld [vmem:[%s5 + $0x70] sm:$0xff]
  %v124 = vld [vmem:[%s5 + $0x78] sm:$0xff]
  %v125 = vld [vmem:[%s5 + $0x80] sm:$0xff]
  %v126 = vld [vmem:[%s5 + $0x88] sm:$0xff]
  %v127 = vld [vmem:[%s5 + $0x90] sm:$0xff]
  %v128 = vld [vmem:[%s5 + $0x98] sm:$0xff]
  %v129 = vld [vmem:[%s5 + $0xa0] sm:$0xff]
  %v130 = vld [vmem:[%s5 + $0xa8] sm:$0xff]
  %v131 = vld [vmem:[%s5 + $0xb0] sm:$0xff]
  %v132 = vld [vmem:[%s5 + $0xb8] sm:$0xff]
  %v133 = vld [vmem:[%s5 + $0xc0] sm:$0xff]
  %v134 = vld [vmem:[%s5 + $0xc8] sm:$0xff]
  %v135 = vld [vmem:[%s5 + $0xd0] sm:$0xff]
  %v136 = vld [vmem:[%s5 + $0xd8] sm:$0xff]
  %v137 = vld [vmem:[%s5 + $0xe0] sm:$0xff]
  %v138 = vld [vmem:[%s5 + $0xe8] sm:$0xff]
  %v139 = vld [vmem:[%s5 + $0xf0] sm:$0xff]
  %v140 = vld [vmem:[%s5 + $0xf8] sm:$0xff]
  %v141 = vld [vmem:[%s3] sm:$0xf]
  %v142 = vld [vmem:[%s6] sm:$0xf]
  %v143 = vld [vmem:[%s0] sm:$0xff]
  %v144 = vld [vmem:[%s0 + $0x8] sm:$0xff]
  %v145 = vld [vmem:[%s0 + $0x10] sm:$0xff]
  %v146 = vld [vmem:[%s0 + $0x18] sm:$0xff]
  %v147 = vld [vmem:[%s0 + $0x20] sm:$0xff]
  %v148 = vld [vmem:[%s0 + $0x28] sm:$0xff]
  %v149 = vld [vmem:[%s0 + $0x30] sm:$0xff]
  %v150 = vld [vmem:[%s0 + $0x38] sm:$0xff]
  %v151 = vpack.c.bf16 %v144, %v143
  %v152 = vpack.c.bf16 %v146, %v145
  %v153 = vpack.c.bf16 %v148, %v147
  %v154 = vpack.c.bf16 %v150, %v149
  %v156 = vlaneseq
  %v157 = vshrl.u32 %v156, 7
  %v158 = vsub.s32 0, %v157
  %v159 = vrot.slane %v141, %v158
  %v160 = vlaneseq
  %v161 = vshrl.u32 %v160, 7
  %v162 = vsub.s32 1, %v161
  %v163 = vrot.slane %v141, %v162
  %v164 = vlaneseq
  %v165 = vshrl.u32 %v164, 7
  %v166 = vsub.s32 2, %v165
  %v167 = vrot.slane %v141, %v166
  %v168 = vlaneseq
  %v169 = vshrl.u32 %v168, 7
  %v170 = vsub.s32 3, %v169
  %v171 = vrot.slane %v141, %v170
  %v180 = vunpack.c.l.b16 %v41
  %v181 = vunpack.c.h.b16 %v41
  %v182 = vunpack.c.l.b16 %v42
  %v183 = vunpack.c.h.b16 %v42
  %v184 = vunpack.c.l.b16 %v43
  %v185 = vunpack.c.h.b16 %v43
  %v186 = vunpack.c.l.b16 %v44
  %v187 = vunpack.c.h.b16 %v44
  %v188 = vpack.c.b16 %v184, %v180
  %v189 = vpack.c.b16 %v185, %v181
  %v190 = vpack.c.b16 %v186, %v182
  %v191 = vpack.c.b16 %v187, %v183
  %vm196 = vcmask 130048
  %v198 = vsel %vm196, %v151, 0
  %v201 = vsel %vm196, %v152, 0
  %v204 = vsel %vm196, %v153, 0
  %v207 = vsel %vm196, %v154, 0
  %209 = vmatprep.subr.bf16.mxu0 0
  %210 = vmatpush1.bf16.msra.mxu0 0
  %211 = vmatprep.subr.bf16.mxu0 0
  %212 = vmatpush1.bf16.msra.mxu0 0
  %213 = vmatprep.subr.bf16.mxu0 0
  %214 = vmatpush1.bf16.msra.mxu0 0
  %215 = vmatprep.subr.bf16.mxu0 0
  %216 = vmatpush1.bf16.msra.mxu0 0
  %217 = vmatprep.subr.bf16.mxu0 0
  %218 = vmatpush1.bf16.msra.mxu0 0
  %219 = vmatprep.subr.bf16.mxu0 0
  %220 = vmatpush1.bf16.msra.mxu0 0
  %221 = vmatprep.subr.bf16.mxu0 0
  %222 = vmatpush1.bf16.msra.mxu0 0
  %223 = vmatprep.subr.bf16.mxu0 %v189
  %224 = vmatpush1.bf16.msra.mxu0 %v188
  %225 = vmatprep.subr.bf16.mxu0 0
  %226 = vmatpush2.bf16.msra.mxu0 0
  %227 = vmatprep.subr.bf16.mxu0 0
  %228 = vmatpush2.bf16.msra.mxu0 0
  %229 = vmatprep.subr.bf16.mxu0 0
  %230 = vmatpush2.bf16.msra.mxu0 0
  %231 = vmatprep.subr.bf16.mxu0 0
  %232 = vmatpush2.bf16.msra.mxu0 0
  %233 = vmatprep.subr.bf16.mxu0 0
  %234 = vmatpush2.bf16.msra.mxu0 0
  %235 = vmatprep.subr.bf16.mxu0 0
  %236 = vmatpush2.bf16.msra.mxu0 0
  %237 = vmatprep.subr.bf16.mxu0 0
  %238 = vmatpush2.bf16.msra.mxu0 0
  %239 = vmatprep.subr.bf16.mxu0 0
  %240 = vmatpush2.bf16.msra.mxu0 0
  %241 = vmatprep.mubr.bf16.mxu0 0
  %242 = vmatmul.mubr.bf16.gmra.mxu0 %v198
  %v243 = vpop.f32.mrf.mxu0
  %v244 = vadd.f32 %v159, %v243
  %v245 = vpop.f32.mrf.mxu0
  %v246 = vadd.f32 %v163, %v245
  %v247 = vpop.f32.mrf.mxu0
  %v248 = vadd.f32 %v159, %v247
  %v249 = vpop.f32.mrf.mxu0
  %v250 = vadd.f32 %v163, %v249
  %251 = vmatprep.mubr.bf16.mxu0 0
  %252 = vmatmul.mubr.bf16.gmra.mxu0 %v201
  %v253 = vpop.f32.mrf.mxu0
  %v254 = vadd.f32 %v159, %v253
  %v255 = vpop.f32.mrf.mxu0
  %v256 = vadd.f32 %v163, %v255
  %v257 = vpop.f32.mrf.mxu0
  %v258 = vadd.f32 %v159, %v257
  %v259 = vpop.f32.mrf.mxu0
  %v260 = vadd.f32 %v163, %v259
  %261 = vmatprep.mubr.bf16.mxu0 0
  %262 = vmatmul.mubr.bf16.gmra.mxu0 %v204
  %v263 = vpop.f32.mrf.mxu0
  %v264 = vadd.f32 %v159, %v263
  %v265 = vpop.f32.mrf.mxu0
  %v266 = vadd.f32 %v163, %v265
  %v267 = vpop.f32.mrf.mxu0
  %v268 = vadd.f32 %v159, %v267
  %v269 = vpop.f32.mrf.mxu0
  %v270 = vadd.f32 %v163, %v269
  %271 = vmatprep.mubr.bf16.mxu0 0
  %272 = vmatmul.mubr.bf16.gmra.mxu0 %v207
  %v273 = vpop.f32.mrf.mxu0
  %v274 = vadd.f32 %v159, %v273
  %v275 = vpop.f32.mrf.mxu0
  %v276 = vadd.f32 %v163, %v275
  %v277 = vpop.f32.mrf.mxu0
  %v278 = vadd.f32 %v159, %v277
  %v279 = vpop.f32.mrf.mxu0
  %v280 = vadd.f32 %v163, %v279
  %281 = vdwg.mxu0
  %282 = vmatprep.subr.bf16.mxu0 0
  %283 = vmatpush1.bf16.msra.mxu0 0
  %284 = vmatprep.subr.bf16.mxu0 0
  %285 = vmatpush1.bf16.msra.mxu0 0
  %286 = vmatprep.subr.bf16.mxu0 0
  %287 = vmatpush1.bf16.msra.mxu0 0
  %288 = vmatprep.subr.bf16.mxu0 0
  %289 = vmatpush1.bf16.msra.mxu0 0
  %290 = vmatprep.subr.bf16.mxu0 0
  %291 = vmatpush1.bf16.msra.mxu0 0
  %292 = vmatprep.subr.bf16.mxu0 0
  %293 = vmatpush1.bf16.msra.mxu0 0
  %294 = vmatprep.subr.bf16.mxu0 0
  %295 = vmatpush1.bf16.msra.mxu0 0
  %296 = vmatprep.subr.bf16.mxu0 %v191
  %297 = vmatpush1.bf16.msra.mxu0 %v190
  %298 = vmatprep.subr.bf16.mxu0 0
  %299 = vmatpush2.bf16.msra.mxu0 0
  %300 = vmatprep.subr.bf16.mxu0 0
  %301 = vmatpush2.bf16.msra.mxu0 0
  %302 = vmatprep.subr.bf16.mxu0 0
  %303 = vmatpush2.bf16.msra.mxu0 0
  %304 = vmatprep.subr.bf16.mxu0 0
  %305 = vmatpush2.bf16.msra.mxu0 0
  %306 = vmatprep.subr.bf16.mxu0 0
  %307 = vmatpush2.bf16.msra.mxu0 0
  %308 = vmatprep.subr.bf16.mxu0 0
  %309 = vmatpush2.bf16.msra.mxu0 0
  %310 = vmatprep.subr.bf16.mxu0 0
  %311 = vmatpush2.bf16.msra.mxu0 0
  %312 = vmatprep.subr.bf16.mxu0 0
  %313 = vmatpush2.bf16.msra.mxu0 0
  %314 = vmatprep.mubr.bf16.mxu0 0
  %315 = vmatmul.mubr.bf16.gmra.mxu0 %v198
  %v316 = vpop.f32.mrf.mxu0
  %v317 = vadd.f32 %v167, %v316
  %v318 = vpop.f32.mrf.mxu0
  %v319 = vadd.f32 %v171, %v318
  %v320 = vpop.f32.mrf.mxu0
  %v321 = vadd.f32 %v167, %v320
  %v322 = vpop.f32.mrf.mxu0
  %v323 = vadd.f32 %v171, %v322
  %324 = vmatprep.mubr.bf16.mxu0 0
  %325 = vmatmul.mubr.bf16.gmra.mxu0 %v201
  %v326 = vpop.f32.mrf.mxu0
  %v327 = vadd.f32 %v167, %v326
  %v328 = vpop.f32.mrf.mxu0
  %v329 = vadd.f32 %v171, %v328
  %v330 = vpop.f32.mrf.mxu0
  %v331 = vadd.f32 %v167, %v330
  %v332 = vpop.f32.mrf.mxu0
  %v333 = vadd.f32 %v171, %v332
  %334 = vmatprep.mubr.bf16.mxu0 0
  %335 = vmatmul.mubr.bf16.gmra.mxu0 %v204
  %v336 = vpop.f32.mrf.mxu0
  %v337 = vadd.f32 %v167, %v336
  %v338 = vpop.f32.mrf.mxu0
  %v339 = vadd.f32 %v171, %v338
  %v340 = vpop.f32.mrf.mxu0
  %v341 = vadd.f32 %v167, %v340
  %v342 = vpop.f32.mrf.mxu0
  %v343 = vadd.f32 %v171, %v342
  %344 = vmatprep.mubr.bf16.mxu0 0
  %345 = vmatmul.mubr.bf16.gmra.mxu0 %v207
  %v346 = vpop.f32.mrf.mxu0
  %v347 = vadd.f32 %v167, %v346
  %v348 = vpop.f32.mrf.mxu0
  %v349 = vadd.f32 %v171, %v348
  %v350 = vpop.f32.mrf.mxu0
  %v351 = vadd.f32 %v167, %v350
  %v352 = vpop.f32.mrf.mxu0
  %v353 = vadd.f32 %v171, %v352
  %354 = vdwg.mxu0
  %v387 = vunpack.c.l.b16 %v45
  %v388 = vunpack.c.h.b16 %v45
  %v389 = vunpack.c.l.b16 %v46
  %v390 = vunpack.c.h.b16 %v46
  %v391 = vunpack.c.l.b16 %v47
  %v392 = vunpack.c.h.b16 %v47
  %v393 = vunpack.c.l.b16 %v48
  %v394 = vunpack.c.h.b16 %v48
  %v395 = vunpack.c.l.b16 %v49
  %v396 = vunpack.c.h.b16 %v49
  %v397 = vunpack.c.l.b16 %v50
  %v398 = vunpack.c.h.b16 %v50
  %v399 = vunpack.c.l.b16 %v51
  %v400 = vunpack.c.h.b16 %v51
  %v401 = vunpack.c.l.b16 %v52
  %v402 = vunpack.c.h.b16 %v52
  %v403 = vunpack.c.l.b16 %v53
  %v404 = vunpack.c.h.b16 %v53
  %v405 = vunpack.c.l.b16 %v54
  %v406 = vunpack.c.h.b16 %v54
  %v407 = vunpack.c.l.b16 %v55
  %v408 = vunpack.c.h.b16 %v55
  %v409 = vunpack.c.l.b16 %v56
  %v410 = vunpack.c.h.b16 %v56
  %v411 = vunpack.c.l.b16 %v57
  %v412 = vunpack.c.h.b16 %v57
  %v413 = vunpack.c.l.b16 %v58
  %v414 = vunpack.c.h.b16 %v58
  %v415 = vunpack.c.l.b16 %v59
  %v416 = vunpack.c.h.b16 %v59
  %v417 = vunpack.c.l.b16 %v60
  %v418 = vunpack.c.h.b16 %v60
  %v419 = vunpack.c.l.b16 %v61
  %v420 = vunpack.c.h.b16 %v61
  %v421 = vunpack.c.l.b16 %v62
  %v422 = vunpack.c.h.b16 %v62
  %v423 = vunpack.c.l.b16 %v63
  %v424 = vunpack.c.h.b16 %v63
  %v425 = vunpack.c.l.b16 %v64
  %v426 = vunpack.c.h.b16 %v64
  %v427 = vunpack.c.l.b16 %v65
  %v428 = vunpack.c.h.b16 %v65
  %v429 = vunpack.c.l.b16 %v66
  %v430 = vunpack.c.h.b16 %v66
  %v431 = vunpack.c.l.b16 %v67
  %v432 = vunpack.c.h.b16 %v67
  %v433 = vunpack.c.l.b16 %v68
  %v434 = vunpack.c.h.b16 %v68
  %v435 = vunpack.c.l.b16 %v69
  %v436 = vunpack.c.h.b16 %v69
  %v437 = vunpack.c.l.b16 %v70
  %v438 = vunpack.c.h.b16 %v70
  %v439 = vunpack.c.l.b16 %v71
  %v440 = vunpack.c.h.b16 %v71
  %v441 = vunpack.c.l.b16 %v72
  %v442 = vunpack.c.h.b16 %v72
  %v443 = vunpack.c.l.b16 %v73
  %v444 = vunpack.c.h.b16 %v73
  %v445 = vunpack.c.l.b16 %v74
  %v446 = vunpack.c.h.b16 %v74
  %v447 = vunpack.c.l.b16 %v75
  %v448 = vunpack.c.h.b16 %v75
  %v449 = vunpack.c.l.b16 %v76
  %v450 = vunpack.c.h.b16 %v76
  %v451 = vpack.c.b16 %v391, %v387
  %v452 = vpack.c.b16 %v392, %v388
  %v453 = vpack.c.b16 %v393, %v389
  %v454 = vpack.c.b16 %v394, %v390
  %v455 = vpack.c.b16 %v399, %v395
  %v456 = vpack.c.b16 %v400, %v396
  %v457 = vpack.c.b16 %v401, %v397
  %v458 = vpack.c.b16 %v402, %v398
  %v459 = vpack.c.b16 %v407, %v403
  %v460 = vpack.c.b16 %v408, %v404
  %v461 = vpack.c.b16 %v409, %v405
  %v462 = vpack.c.b16 %v410, %v406
  %v463 = vpack.c.b16 %v415, %v411
  %v464 = vpack.c.b16 %v416, %v412
  %v465 = vpack.c.b16 %v417, %v413
  %v466 = vpack.c.b16 %v418, %v414
  %v467 = vpack.c.b16 %v423, %v419
  %v468 = vpack.c.b16 %v424, %v420
  %v469 = vpack.c.b16 %v425, %v421
  %v470 = vpack.c.b16 %v426, %v422
  %v471 = vpack.c.b16 %v431, %v427
  %v472 = vpack.c.b16 %v432, %v428
  %v473 = vpack.c.b16 %v433, %v429
  %v474 = vpack.c.b16 %v434, %v430
  %v475 = vpack.c.b16 %v439, %v435
  %v476 = vpack.c.b16 %v440, %v436
  %v477 = vpack.c.b16 %v441, %v437
  %v478 = vpack.c.b16 %v442, %v438
  %v479 = vpack.c.b16 %v447, %v443
  %v480 = vpack.c.b16 %v448, %v444
  %v481 = vpack.c.b16 %v449, %v445
  %v482 = vpack.c.b16 %v450, %v446
  %515 = vmatprep.subr.bf16.mxu0 %v480
  %516 = vmatpush1.bf16.msra.mxu0 %v479
  %517 = vmatprep.subr.bf16.mxu0 %v476
  %518 = vmatpush1.bf16.msra.mxu0 %v475
  %519 = vmatprep.subr.bf16.mxu0 %v472
  %520 = vmatpush1.bf16.msra.mxu0 %v471
  %521 = vmatprep.subr.bf16.mxu0 %v468
  %522 = vmatpush1.bf16.msra.mxu0 %v467
  %523 = vmatprep.subr.bf16.mxu0 %v464
  %524 = vmatpush1.bf16.msra.mxu0 %v463
  %525 = vmatprep.subr.bf16.mxu0 %v460
  %526 = vmatpush1.bf16.msra.mxu0 %v459
  %527 = vmatprep.subr.bf16.mxu0 %v456
  %528 = vmatpush1.bf16.msra.mxu0 %v455
  %529 = vmatprep.subr.bf16.mxu0 %v452
  %530 = vmatpush1.bf16.msra.mxu0 %v451
  %531 = vmatprep.subr.bf16.mxu0 0
  %532 = vmatpush2.bf16.msra.mxu0 0
  %533 = vmatprep.subr.bf16.mxu0 0
  %534 = vmatpush2.bf16.msra.mxu0 0
  %535 = vmatprep.subr.bf16.mxu0 0
  %536 = vmatpush2.bf16.msra.mxu0 0
  %537 = vmatprep.subr.bf16.mxu0 0
  %538 = vmatpush2.bf16.msra.mxu0 0
  %539 = vmatprep.subr.bf16.mxu0 0
  %540 = vmatpush2.bf16.msra.mxu0 0
  %541 = vmatprep.subr.bf16.mxu0 0
  %542 = vmatpush2.bf16.msra.mxu0 0
  %543 = vmatprep.subr.bf16.mxu0 0
  %544 = vmatpush2.bf16.msra.mxu0 0
  %545 = vmatprep.subr.bf16.mxu0 0
  %546 = vmatpush2.bf16.msra.mxu0 0
  %547 = vmatprep.mubr.bf16.mxu0 0
  %548 = vmatmul.mubr.bf16.gmra.mxu0 0
  %v549 = vpop.f32.mrf.mxu0
  %v550 = vadd.f32 0.0, %v549
  %v551 = vpop.f32.mrf.mxu0
  %v552 = vadd.f32 0.0, %v551
  %v553 = vpop.f32.mrf.mxu0
  %v554 = vpop.f32.mrf.mxu0
  %555 = vdwg.mxu0
  %556 = vmatprep.subr.bf16.mxu0 %v482
  %557 = vmatpush1.bf16.msra.mxu0 %v481
  %558 = vmatprep.subr.bf16.mxu0 %v478
  %559 = vmatpush1.bf16.msra.mxu0 %v477
  %560 = vmatprep.subr.bf16.mxu0 %v474
  %561 = vmatpush1.bf16.msra.mxu0 %v473
  %562 = vmatprep.subr.bf16.mxu0 %v470
  %563 = vmatpush1.bf16.msra.mxu0 %v469
  %564 = vmatprep.subr.bf16.mxu0 %v466
  %565 = vmatpush1.bf16.msra.mxu0 %v465
  %566 = vmatprep.subr.bf16.mxu0 %v462
  %567 = vmatpush1.bf16.msra.mxu0 %v461
  %568 = vmatprep.subr.bf16.mxu0 %v458
  %569 = vmatpush1.bf16.msra.mxu0 %v457
  %570 = vmatprep.subr.bf16.mxu0 %v454
  %571 = vmatpush1.bf16.msra.mxu0 %v453
  %572 = vmatprep.subr.bf16.mxu0 0
  %573 = vmatpush2.bf16.msra.mxu0 0
  %574 = vmatprep.subr.bf16.mxu0 0
  %575 = vmatpush2.bf16.msra.mxu0 0
  %576 = vmatprep.subr.bf16.mxu0 0
  %577 = vmatpush2.bf16.msra.mxu0 0
  %578 = vmatprep.subr.bf16.mxu0 0
  %579 = vmatpush2.bf16.msra.mxu0 0
  %580 = vmatprep.subr.bf16.mxu0 0
  %581 = vmatpush2.bf16.msra.mxu0 0
  %582 = vmatprep.subr.bf16.mxu0 0
  %583 = vmatpush2.bf16.msra.mxu0 0
  %584 = vmatprep.subr.bf16.mxu0 0
  %585 = vmatpush2.bf16.msra.mxu0 0
  %586 = vmatprep.subr.bf16.mxu0 0
  %587 = vmatpush2.bf16.msra.mxu0 0
  %588 = vmatprep.mubr.bf16.mxu0 0
  %589 = vmatmul.mubr.bf16.gmra.mxu0 0
  %v590 = vpop.f32.mrf.mxu0
  %v591 = vadd.f32 0.0, %v590
  %v592 = vpop.f32.mrf.mxu0
  %v593 = vadd.f32 0.0, %v592
  %v594 = vpop.f32.mrf.mxu0
  %v595 = vpop.f32.mrf.mxu0
  %596 = vdwg.mxu0
  %v597 = vadd.f32 %v244, %v550
  %v598 = vadd.f32 %v246, %v552
  %v599 = vadd.f32 %v317, %v591
  %v600 = vadd.f32 %v319, %v593
  %v601 = vxor.u32 %v597, 2147483648
  %v602 = vxor.u32 %v598, 2147483648
  %v603 = vmul.f32 %v601, 1.442695
  %v604 = vpow.pop %v603
  %v605 = vmul.f32 %v602, 1.442695
  %v606 = vpow.pop %v605
  %v607 = vadd.f32 %v604, 1.0
  %v608 = vadd.f32 %v606, 1.0
  %v609 = vrcp.pop %v607
  %v610 = vmul.f32 1.0, %v609
  %v611 = vrcp.pop %v608
  %v612 = vmul.f32 1.0, %v611
  %v613 = vtanh.pop %v599
  %v614 = vxor.u32 %v600, 2147483648
  %v615 = vmul.f32 %v614, 1.442695
  %v616 = vpow.pop %v615
  %v617 = vadd.f32 %v616, 1.0
  %v618 = vrcp.pop %v617
  %v619 = vmul.f32 1.0, %v618
  %v620 = vmul.f32 %v612, 0.0
  %v621 = vmul.f32 %v610, %v613
  %v622 = vadd.f32 %v620, %v621
  %v623 = vtanh.pop %v622
  %v624 = vmul.f32 %v619, %v623
  %v625 = vpack.c.bf16 %v624, %v624
  %v627 = vlaneseq
  %v628 = vshrl.u32 %v627, 7
  %v629 = vsub.s32 0, %v628
  %v630 = vrot.slane %v142, %v629
  %v631 = vlaneseq
  %v632 = vshrl.u32 %v631, 7
  %v633 = vsub.s32 1, %v632
  %v634 = vrot.slane %v142, %v633
  %v635 = vlaneseq
  %v636 = vshrl.u32 %v635, 7
  %v637 = vsub.s32 2, %v636
  %v638 = vrot.slane %v142, %v637
  %v639 = vlaneseq
  %v640 = vshrl.u32 %v639, 7
  %v641 = vsub.s32 3, %v640
  %v642 = vrot.slane %v142, %v641
  %v679 = vunpack.c.l.b16 %v77
  %v680 = vunpack.c.h.b16 %v77
  %v681 = vunpack.c.l.b16 %v78
  %v682 = vunpack.c.h.b16 %v78
  %v683 = vunpack.c.l.b16 %v79
  %v684 = vunpack.c.h.b16 %v79
  %v685 = vunpack.c.l.b16 %v80
  %v686 = vunpack.c.h.b16 %v80
  %v687 = vunpack.c.l.b16 %v81
  %v688 = vunpack.c.h.b16 %v81
  %v689 = vunpack.c.l.b16 %v82
  %v690 = vunpack.c.h.b16 %v82
  %v691 = vunpack.c.l.b16 %v83
  %v692 = vunpack.c.h.b16 %v83
  %v693 = vunpack.c.l.b16 %v84
  %v694 = vunpack.c.h.b16 %v84
  %v695 = vunpack.c.l.b16 %v85
  %v696 = vunpack.c.h.b16 %v85
  %v697 = vunpack.c.l.b16 %v86
  %v698 = vunpack.c.h.b16 %v86
  %v699 = vunpack.c.l.b16 %v87
  %v700 = vunpack.c.h.b16 %v87
  %v701 = vunpack.c.l.b16 %v88
  %v702 = vunpack.c.h.b16 %v88
  %v703 = vunpack.c.l.b16 %v89
  %v704 = vunpack.c.h.b16 %v89
  %v705 = vunpack.c.l.b16 %v90
  %v706 = vunpack.c.h.b16 %v90
  %v707 = vunpack.c.l.b16 %v91
  %v708 = vunpack.c.h.b16 %v91
  %v709 = vunpack.c.l.b16 %v92
  %v710 = vunpack.c.h.b16 %v92
  %v711 = vunpack.c.l.b16 %v93
  %v712 = vunpack.c.h.b16 %v93
  %v713 = vunpack.c.l.b16 %v94
  %v714 = vunpack.c.h.b16 %v94
  %v715 = vunpack.c.l.b16 %v95
  %v716 = vunpack.c.h.b16 %v95
  %v717 = vunpack.c.l.b16 %v96
  %v718 = vunpack.c.h.b16 %v96
  %v719 = vunpack.c.l.b16 %v97
  %v720 = vunpack.c.h.b16 %v97
  %v721 = vunpack.c.l.b16 %v98
  %v722 = vunpack.c.h.b16 %v98
  %v723 = vunpack.c.l.b16 %v99
  %v724 = vunpack.c.h.b16 %v99
  %v725 = vunpack.c.l.b16 %v100
  %v726 = vunpack.c.h.b16 %v100
  %v727 = vunpack.c.l.b16 %v101
  %v728 = vunpack.c.h.b16 %v101
  %v729 = vunpack.c.l.b16 %v102
  %v730 = vunpack.c.h.b16 %v102
  %v731 = vunpack.c.l.b16 %v103
  %v732 = vunpack.c.h.b16 %v103
  %v733 = vunpack.c.l.b16 %v104
  %v734 = vunpack.c.h.b16 %v104
  %v735 = vunpack.c.l.b16 %v105
  %v736 = vunpack.c.h.b16 %v105
  %v737 = vunpack.c.l.b16 %v106
  %v738 = vunpack.c.h.b16 %v106
  %v739 = vunpack.c.l.b16 %v107
  %v740 = vunpack.c.h.b16 %v107
  %v741 = vunpack.c.l.b16 %v108
  %v742 = vunpack.c.h.b16 %v108
  %v743 = vpack.c.b16 %v683, %v679
  %v744 = vpack.c.b16 %v684, %v680
  %v745 = vpack.c.b16 %v685, %v681
  %v746 = vpack.c.b16 %v686, %v682
  %v747 = vpack.c.b16 %v691, %v687
  %v748 = vpack.c.b16 %v692, %v688
  %v749 = vpack.c.b16 %v693, %v689
  %v750 = vpack.c.b16 %v694, %v690
  %v751 = vpack.c.b16 %v699, %v695
  %v752 = vpack.c.b16 %v700, %v696
  %v753 = vpack.c.b16 %v701, %v697
  %v754 = vpack.c.b16 %v702, %v698
  %v755 = vpack.c.b16 %v707, %v703
  %v756 = vpack.c.b16 %v708, %v704
  %v757 = vpack.c.b16 %v709, %v705
  %v758 = vpack.c.b16 %v710, %v706
  %v759 = vpack.c.b16 %v715, %v711
  %v760 = vpack.c.b16 %v716, %v712
  %v761 = vpack.c.b16 %v717, %v713
  %v762 = vpack.c.b16 %v718, %v714
  %v763 = vpack.c.b16 %v723, %v719
  %v764 = vpack.c.b16 %v724, %v720
  %v765 = vpack.c.b16 %v725, %v721
  %v766 = vpack.c.b16 %v726, %v722
  %v767 = vpack.c.b16 %v731, %v727
  %v768 = vpack.c.b16 %v732, %v728
  %v769 = vpack.c.b16 %v733, %v729
  %v770 = vpack.c.b16 %v734, %v730
  %v771 = vpack.c.b16 %v739, %v735
  %v772 = vpack.c.b16 %v740, %v736
  %v773 = vpack.c.b16 %v741, %v737
  %v774 = vpack.c.b16 %v742, %v738
  %807 = vmatprep.subr.bf16.mxu0 %v772
  %808 = vmatpush1.bf16.msra.mxu0 %v771
  %809 = vmatprep.subr.bf16.mxu0 %v768
  %810 = vmatpush1.bf16.msra.mxu0 %v767
  %811 = vmatprep.subr.bf16.mxu0 %v764
  %812 = vmatpush1.bf16.msra.mxu0 %v763
  %813 = vmatprep.subr.bf16.mxu0 %v760
  %814 = vmatpush1.bf16.msra.mxu0 %v759
  %815 = vmatprep.subr.bf16.mxu0 %v756
  %816 = vmatpush1.bf16.msra.mxu0 %v755
  %817 = vmatprep.subr.bf16.mxu0 %v752
  %818 = vmatpush1.bf16.msra.mxu0 %v751
  %819 = vmatprep.subr.bf16.mxu0 %v748
  %820 = vmatpush1.bf16.msra.mxu0 %v747
  %821 = vmatprep.subr.bf16.mxu0 %v744
  %822 = vmatpush1.bf16.msra.mxu0 %v743
  %823 = vmatprep.subr.bf16.mxu0 0
  %824 = vmatpush2.bf16.msra.mxu0 0
  %825 = vmatprep.subr.bf16.mxu0 0
  %826 = vmatpush2.bf16.msra.mxu0 0
  %827 = vmatprep.subr.bf16.mxu0 0
  %828 = vmatpush2.bf16.msra.mxu0 0
  %829 = vmatprep.subr.bf16.mxu0 0
  %830 = vmatpush2.bf16.msra.mxu0 0
  %831 = vmatprep.subr.bf16.mxu0 0
  %832 = vmatpush2.bf16.msra.mxu0 0
  %833 = vmatprep.subr.bf16.mxu0 0
  %834 = vmatpush2.bf16.msra.mxu0 0
  %835 = vmatprep.subr.bf16.mxu0 0
  %836 = vmatpush2.bf16.msra.mxu0 0
  %837 = vmatprep.subr.bf16.mxu0 0
  %838 = vmatpush2.bf16.msra.mxu0 0
  %839 = vmatprep.mubr.bf16.mxu0 0
  %840 = vmatmul.mubr.bf16.gmra.mxu0 %v625
  %v841 = vpop.f32.mrf.mxu0
  %v842 = vadd.f32 %v630, %v841
  %v843 = vpop.f32.mrf.mxu0
  %v844 = vadd.f32 %v634, %v843
  %v845 = vpop.f32.mrf.mxu0
  %v846 = vpop.f32.mrf.mxu0
  %847 = vdwg.mxu0
  %848 = vmatprep.subr.bf16.mxu0 %v774
  %849 = vmatpush1.bf16.msra.mxu0 %v773
  %850 = vmatprep.subr.bf16.mxu0 %v770
  %851 = vmatpush1.bf16.msra.mxu0 %v769
  %852 = vmatprep.subr.bf16.mxu0 %v766
  %853 = vmatpush1.bf16.msra.mxu0 %v765
  %854 = vmatprep.subr.bf16.mxu0 %v762
  %855 = vmatpush1.bf16.msra.mxu0 %v761
  %856 = vmatprep.subr.bf16.mxu0 %v758
  %857 = vmatpush1.bf16.msra.mxu0 %v757
  %858 = vmatprep.subr.bf16.mxu0 %v754
  %859 = vmatpush1.bf16.msra.mxu0 %v753
  %860 = vmatprep.subr.bf16.mxu0 %v750
  %861 = vmatpush1.bf16.msra.mxu0 %v749
  %862 = vmatprep.subr.bf16.mxu0 %v746
  %863 = vmatpush1.bf16.msra.mxu0 %v745
  %864 = vmatprep.subr.bf16.mxu0 0
  %865 = vmatpush2.bf16.msra.mxu0 0
  %866 = vmatprep.subr.bf16.mxu0 0
  %867 = vmatpush2.bf16.msra.mxu0 0
  %868 = vmatprep.subr.bf16.mxu0 0
  %869 = vmatpush2.bf16.msra.mxu0 0
  %870 = vmatprep.subr.bf16.mxu0 0
  %871 = vmatpush2.bf16.msra.mxu0 0
  %872 = vmatprep.subr.bf16.mxu0 0
  %873 = vmatpush2.bf16.msra.mxu0 0
  %874 = vmatprep.subr.bf16.mxu0 0
  %875 = vmatpush2.bf16.msra.mxu0 0
  %876 = vmatprep.subr.bf16.mxu0 0
  %877 = vmatpush2.bf16.msra.mxu0 0
  %878 = vmatprep.subr.bf16.mxu0 0
  %879 = vmatpush2.bf16.msra.mxu0 0
  %880 = vmatprep.mubr.bf16.mxu0 0
  %881 = vmatmul.mubr.bf16.gmra.mxu0 %v625
  %v882 = vpop.f32.mrf.mxu0
  %v883 = vadd.f32 %v638, %v882
  %v884 = vpop.f32.mrf.mxu0
  %v885 = vadd.f32 %v642, %v884
  %v886 = vpop.f32.mrf.mxu0
  %v887 = vpop.f32.mrf.mxu0
  %888 = vdwg.mxu0
  %v921 = vunpack.c.l.b16 %v109
  %v922 = vunpack.c.h.b16 %v109
  %v923 = vunpack.c.l.b16 %v110
  %v924 = vunpack.c.h.b16 %v110
  %v925 = vunpack.c.l.b16 %v111
  %v926 = vunpack.c.h.b16 %v111
  %v927 = vunpack.c.l.b16 %v112
  %v928 = vunpack.c.h.b16 %v112
  %v929 = vunpack.c.l.b16 %v113
  %v930 = vunpack.c.h.b16 %v113
  %v931 = vunpack.c.l.b16 %v114
  %v932 = vunpack.c.h.b16 %v114
  %v933 = vunpack.c.l.b16 %v115
  %v934 = vunpack.c.h.b16 %v115
  %v935 = vunpack.c.l.b16 %v116
  %v936 = vunpack.c.h.b16 %v116
  %v937 = vunpack.c.l.b16 %v117
  %v938 = vunpack.c.h.b16 %v117
  %v939 = vunpack.c.l.b16 %v118
  %v940 = vunpack.c.h.b16 %v118
  %v941 = vunpack.c.l.b16 %v119
  %v942 = vunpack.c.h.b16 %v119
  %v943 = vunpack.c.l.b16 %v120
  %v944 = vunpack.c.h.b16 %v120
  %v945 = vunpack.c.l.b16 %v121
  %v946 = vunpack.c.h.b16 %v121
  %v947 = vunpack.c.l.b16 %v122
  %v948 = vunpack.c.h.b16 %v122
  %v949 = vunpack.c.l.b16 %v123
  %v950 = vunpack.c.h.b16 %v123
  %v951 = vunpack.c.l.b16 %v124
  %v952 = vunpack.c.h.b16 %v124
  %v953 = vunpack.c.l.b16 %v125
  %v954 = vunpack.c.h.b16 %v125
  %v955 = vunpack.c.l.b16 %v126
  %v956 = vunpack.c.h.b16 %v126
  %v957 = vunpack.c.l.b16 %v127
  %v958 = vunpack.c.h.b16 %v127
  %v959 = vunpack.c.l.b16 %v128
  %v960 = vunpack.c.h.b16 %v128
  %v961 = vunpack.c.l.b16 %v129
  %v962 = vunpack.c.h.b16 %v129
  %v963 = vunpack.c.l.b16 %v130
  %v964 = vunpack.c.h.b16 %v130
  %v965 = vunpack.c.l.b16 %v131
  %v966 = vunpack.c.h.b16 %v131
  %v967 = vunpack.c.l.b16 %v132
  %v968 = vunpack.c.h.b16 %v132
  %v969 = vunpack.c.l.b16 %v133
  %v970 = vunpack.c.h.b16 %v133
  %v971 = vunpack.c.l.b16 %v134
  %v972 = vunpack.c.h.b16 %v134
  %v973 = vunpack.c.l.b16 %v135
  %v974 = vunpack.c.h.b16 %v135
  %v975 = vunpack.c.l.b16 %v136
  %v976 = vunpack.c.h.b16 %v136
  %v977 = vunpack.c.l.b16 %v137
  %v978 = vunpack.c.h.b16 %v137
  %v979 = vunpack.c.l.b16 %v138
  %v980 = vunpack.c.h.b16 %v138
  %v981 = vunpack.c.l.b16 %v139
  %v982 = vunpack.c.h.b16 %v139
  %v983 = vunpack.c.l.b16 %v140
  %v984 = vunpack.c.h.b16 %v140
  %v985 = vpack.c.b16 %v925, %v921
  %v986 = vpack.c.b16 %v926, %v922
  %v987 = vpack.c.b16 %v927, %v923
  %v988 = vpack.c.b16 %v928, %v924
  %v989 = vpack.c.b16 %v933, %v929
  %v990 = vpack.c.b16 %v934, %v930
  %v991 = vpack.c.b16 %v935, %v931
  %v992 = vpack.c.b16 %v936, %v932
  %v993 = vpack.c.b16 %v941, %v937
  %v994 = vpack.c.b16 %v942, %v938
  %v995 = vpack.c.b16 %v943, %v939
  %v996 = vpack.c.b16 %v944, %v940
  %v997 = vpack.c.b16 %v949, %v945
  %v998 = vpack.c.b16 %v950, %v946
  %v999 = vpack.c.b16 %v951, %v947
  %v1000 = vpack.c.b16 %v952, %v948
  %v1001 = vpack.c.b16 %v957, %v953
  %v1002 = vpack.c.b16 %v958, %v954
  %v1003 = vpack.c.b16 %v959, %v955
  %v1004 = vpack.c.b16 %v960, %v956
  %v1005 = vpack.c.b16 %v965, %v961
  %v1006 = vpack.c.b16 %v966, %v962
  %v1007 = vpack.c.b16 %v967, %v963
  %v1008 = vpack.c.b16 %v968, %v964
  %v1009 = vpack.c.b16 %v973, %v969
  %v1010 = vpack.c.b16 %v974, %v970
  %v1011 = vpack.c.b16 %v975, %v971
  %v1012 = vpack.c.b16 %v976, %v972
  %v1013 = vpack.c.b16 %v981, %v977
  %v1014 = vpack.c.b16 %v982, %v978
  %v1015 = vpack.c.b16 %v983, %v979
  %v1016 = vpack.c.b16 %v984, %v980
  %1049 = vmatprep.subr.bf16.mxu0 %v1014
  %1050 = vmatpush1.bf16.msra.mxu0 %v1013
  %1051 = vmatprep.subr.bf16.mxu0 %v1010
  %1052 = vmatpush1.bf16.msra.mxu0 %v1009
  %1053 = vmatprep.subr.bf16.mxu0 %v1006
  %1054 = vmatpush1.bf16.msra.mxu0 %v1005
  %1055 = vmatprep.subr.bf16.mxu0 %v1002
  %1056 = vmatpush1.bf16.msra.mxu0 %v1001
  %1057 = vmatprep.subr.bf16.mxu0 %v998
  %1058 = vmatpush1.bf16.msra.mxu0 %v997
  %1059 = vmatprep.subr.bf16.mxu0 %v994
  %1060 = vmatpush1.bf16.msra.mxu0 %v993
  %1061 = vmatprep.subr.bf16.mxu0 %v990
  %1062 = vmatpush1.bf16.msra.mxu0 %v989
  %1063 = vmatprep.subr.bf16.mxu0 %v986
  %1064 = vmatpush1.bf16.msra.mxu0 %v985
  %1065 = vmatprep.subr.bf16.mxu0 0
  %1066 = vmatpush2.bf16.msra.mxu0 0
  %1067 = vmatprep.subr.bf16.mxu0 0
  %1068 = vmatpush2.bf16.msra.mxu0 0
  %1069 = vmatprep.subr.bf16.mxu0 0
  %1070 = vmatpush2.bf16.msra.mxu0 0
  %1071 = vmatprep.subr.bf16.mxu0 0
  %1072 = vmatpush2.bf16.msra.mxu0 0
  %1073 = vmatprep.subr.bf16.mxu0 0
  %1074 = vmatpush2.bf16.msra.mxu0 0
  %1075 = vmatprep.subr.bf16.mxu0 0
  %1076 = vmatpush2.bf16.msra.mxu0 0
  %1077 = vmatprep.subr.bf16.mxu0 0
  %1078 = vmatpush2.bf16.msra.mxu0 0
  %1079 = vmatprep.subr.bf16.mxu0 0
  %1080 = vmatpush2.bf16.msra.mxu0 0
  %1081 = vmatprep.mubr.bf16.mxu0 0
  %1082 = vmatmul.mubr.bf16.gmra.mxu0 0
  %v1083 = vpop.f32.mrf.mxu0
  %v1084 = vadd.f32 0.0, %v1083
  %v1085 = vpop.f32.mrf.mxu0
  %v1086 = vadd.f32 0.0, %v1085
  %v1087 = vpop.f32.mrf.mxu0
  %v1088 = vpop.f32.mrf.mxu0
  %1089 = vdwg.mxu0
  %1090 = vmatprep.subr.bf16.mxu0 %v1016
  %1091 = vmatpush1.bf16.msra.mxu0 %v1015
  %1092 = vmatprep.subr.bf16.mxu0 %v1012
  %1093 = vmatpush1.bf16.msra.mxu0 %v1011
  %1094 = vmatprep.subr.bf16.mxu0 %v1008
  %1095 = vmatpush1.bf16.msra.mxu0 %v1007
  %1096 = vmatprep.subr.bf16.mxu0 %v1004
  %1097 = vmatpush1.bf16.msra.mxu0 %v1003
  %1098 = vmatprep.subr.bf16.mxu0 %v1000
  %1099 = vmatpush1.bf16.msra.mxu0 %v999
  %1100 = vmatprep.subr.bf16.mxu0 %v996
  %1101 = vmatpush1.bf16.msra.mxu0 %v995
  %1102 = vmatprep.subr.bf16.mxu0 %v992
  %1103 = vmatpush1.bf16.msra.mxu0 %v991
  %1104 = vmatprep.subr.bf16.mxu0 %v988
  %1105 = vmatpush1.bf16.msra.mxu0 %v987
  %1106 = vmatprep.subr.bf16.mxu0 0
  %1107 = vmatpush2.bf16.msra.mxu0 0
  %1108 = vmatprep.subr.bf16.mxu0 0
  %1109 = vmatpush2.bf16.msra.mxu0 0
  %1110 = vmatprep.subr.bf16.mxu0 0
  %1111 = vmatpush2.bf16.msra.mxu0 0
  %1112 = vmatprep.subr.bf16.mxu0 0
  %1113 = vmatpush2.bf16.msra.mxu0 0
  %1114 = vmatprep.subr.bf16.mxu0 0
  %1115 = vmatpush2.bf16.msra.mxu0 0
  %1116 = vmatprep.subr.bf16.mxu0 0
  %1117 = vmatpush2.bf16.msra.mxu0 0
  %1118 = vmatprep.subr.bf16.mxu0 0
  %1119 = vmatpush2.bf16.msra.mxu0 0
  %1120 = vmatprep.subr.bf16.mxu0 0
  %1121 = vmatpush2.bf16.msra.mxu0 0
  %1122 = vmatprep.mubr.bf16.mxu0 0
  %1123 = vmatmul.mubr.bf16.gmra.mxu0 0
  %v1124 = vpop.f32.mrf.mxu0
  %v1125 = vadd.f32 0.0, %v1124
  %v1126 = vpop.f32.mrf.mxu0
  %v1127 = vadd.f32 0.0, %v1126
  %v1128 = vpop.f32.mrf.mxu0
  %v1129 = vpop.f32.mrf.mxu0
  %1130 = vdwg.mxu0
  %v1131 = vadd.f32 %v842, %v1084
  %v1132 = vadd.f32 %v844, %v1086
  %v1133 = vadd.f32 %v883, %v1125
  %v1134 = vadd.f32 %v885, %v1127
  %v1135 = vxor.u32 %v1131, 2147483648
  %v1136 = vxor.u32 %v1132, 2147483648
  %v1137 = vmul.f32 %v1135, 1.442695
  %v1138 = vpow.pop %v1137
  %v1139 = vmul.f32 %v1136, 1.442695
  %v1140 = vpow.pop %v1139
  %v1141 = vadd.f32 %v1138, 1.0
  %v1142 = vadd.f32 %v1140, 1.0
  %v1143 = vrcp.pop %v1141
  %v1144 = vmul.f32 1.0, %v1143
  %v1145 = vrcp.pop %v1142
  %v1146 = vmul.f32 1.0, %v1145
  %v1147 = vtanh.pop %v1133
  %v1148 = vxor.u32 %v1134, 2147483648
  %v1149 = vmul.f32 %v1148, 1.442695
  %v1150 = vpow.pop %v1149
  %v1151 = vadd.f32 %v1150, 1.0
  %v1152 = vrcp.pop %v1151
  %v1153 = vmul.f32 1.0, %v1152
  %v1154 = vmul.f32 %v1146, 0.0
  %v1155 = vmul.f32 %v1144, %v1147
  %v1156 = vadd.f32 %v1154, %v1155
  %v1157 = vtanh.pop %v1156
  %v1158 = vmul.f32 %v1153, %v1157
  %1159 = vmatprep.subr.bf16.mxu0 %v480
  %1160 = vmatpush1.bf16.msra.mxu0 %v479
  %1161 = vmatprep.subr.bf16.mxu0 %v476
  %1162 = vmatpush1.bf16.msra.mxu0 %v475
  %1163 = vmatprep.subr.bf16.mxu0 %v472
  %1164 = vmatpush1.bf16.msra.mxu0 %v471
  %1165 = vmatprep.subr.bf16.mxu0 %v468
  %1166 = vmatpush1.bf16.msra.mxu0 %v467
  %1167 = vmatprep.subr.bf16.mxu0 %v464
  %1168 = vmatpush1.bf16.msra.mxu0 %v463
  %1169 = vmatprep.subr.bf16.mxu0 %v460
  %1170 = vmatpush1.bf16.msra.mxu0 %v459
  %1171 = vmatprep.subr.bf16.mxu0 %v456
  %1172 = vmatpush1.bf16.msra.mxu0 %v455
  %1173 = vmatprep.subr.bf16.mxu0 %v452
  %1174 = vmatpush1.bf16.msra.mxu0 %v451
  %1175 = vmatprep.subr.bf16.mxu0 0
  %1176 = vmatpush2.bf16.msra.mxu0 0
  %1177 = vmatprep.subr.bf16.mxu0 0
  %1178 = vmatpush2.bf16.msra.mxu0 0
  %1179 = vmatprep.subr.bf16.mxu0 0
  %1180 = vmatpush2.bf16.msra.mxu0 0
  %1181 = vmatprep.subr.bf16.mxu0 0
  %1182 = vmatpush2.bf16.msra.mxu0 0
  %1183 = vmatprep.subr.bf16.mxu0 0
  %1184 = vmatpush2.bf16.msra.mxu0 0
  %1185 = vmatprep.subr.bf16.mxu0 0
  %1186 = vmatpush2.bf16.msra.mxu0 0
  %1187 = vmatprep.subr.bf16.mxu0 0
  %1188 = vmatpush2.bf16.msra.mxu0 0
  %1189 = vmatprep.subr.bf16.mxu0 0
  %1190 = vmatpush2.bf16.msra.mxu0 0
  %1191 = vmatprep.mubr.bf16.mxu0 0
  %1192 = vmatmul.mubr.bf16.gmra.mxu0 %v625
  %v1193 = vpop.f32.mrf.mxu0
  %v1194 = vadd.f32 0.0, %v1193
  %v1195 = vpop.f32.mrf.mxu0
  %v1196 = vadd.f32 0.0, %v1195
  %v1197 = vpop.f32.mrf.mxu0
  %v1198 = vpop.f32.mrf.mxu0
  %1199 = vdwg.mxu0
  %1200 = vmatprep.subr.bf16.mxu0 %v482
  %1201 = vmatpush1.bf16.msra.mxu0 %v481
  %1202 = vmatprep.subr.bf16.mxu0 %v478
  %1203 = vmatpush1.bf16.msra.mxu0 %v477
  %1204 = vmatprep.subr.bf16.mxu0 %v474
  %1205 = vmatpush1.bf16.msra.mxu0 %v473
  %1206 = vmatprep.subr.bf16.mxu0 %v470
  %1207 = vmatpush1.bf16.msra.mxu0 %v469
  %1208 = vmatprep.subr.bf16.mxu0 %v466
  %1209 = vmatpush1.bf16.msra.mxu0 %v465
  %1210 = vmatprep.subr.bf16.mxu0 %v462
  %1211 = vmatpush1.bf16.msra.mxu0 %v461
  %1212 = vmatprep.subr.bf16.mxu0 %v458
  %1213 = vmatpush1.bf16.msra.mxu0 %v457
  %1214 = vmatprep.subr.bf16.mxu0 %v454
  %1215 = vmatpush1.bf16.msra.mxu0 %v453
  %1216 = vmatprep.subr.bf16.mxu0 0
  %1217 = vmatpush2.bf16.msra.mxu0 0
  %1218 = vmatprep.subr.bf16.mxu0 0
  %1219 = vmatpush2.bf16.msra.mxu0 0
  %1220 = vmatprep.subr.bf16.mxu0 0
  %1221 = vmatpush2.bf16.msra.mxu0 0
  %1222 = vmatprep.subr.bf16.mxu0 0
  %1223 = vmatpush2.bf16.msra.mxu0 0
  %1224 = vmatprep.subr.bf16.mxu0 0
  %1225 = vmatpush2.bf16.msra.mxu0 0
  %1226 = vmatprep.subr.bf16.mxu0 0
  %1227 = vmatpush2.bf16.msra.mxu0 0
  %1228 = vmatprep.subr.bf16.mxu0 0
  %1229 = vmatpush2.bf16.msra.mxu0 0
  %1230 = vmatprep.subr.bf16.mxu0 0
  %1231 = vmatpush2.bf16.msra.mxu0 0
  %1232 = vmatprep.mubr.bf16.mxu0 0
  %1233 = vmatmul.mubr.bf16.gmra.mxu0 %v625
  %v1234 = vpop.f32.mrf.mxu0
  %v1235 = vadd.f32 0.0, %v1234
  %v1236 = vpop.f32.mrf.mxu0
  %v1237 = vadd.f32 0.0, %v1236
  %v1238 = vpop.f32.mrf.mxu0
  %v1239 = vpop.f32.mrf.mxu0
  %1240 = vdwg.mxu0
  %v1241 = vadd.f32 %v248, %v1194
  %v1242 = vadd.f32 %v250, %v1196
  %v1243 = vadd.f32 %v321, %v1235
  %v1244 = vadd.f32 %v323, %v1237
  %v1245 = vxor.u32 %v1241, 2147483648
  %v1246 = vxor.u32 %v1242, 2147483648
  %v1247 = vmul.f32 %v1245, 1.442695
  %v1248 = vpow.pop %v1247
  %v1249 = vmul.f32 %v1246, 1.442695
  %v1250 = vpow.pop %v1249
  %v1251 = vadd.f32 %v1248, 1.0
  %v1252 = vadd.f32 %v1250, 1.0
  %v1253 = vrcp.pop %v1251
  %v1254 = vmul.f32 1.0, %v1253
  %v1255 = vrcp.pop %v1252
  %v1256 = vmul.f32 1.0, %v1255
  %v1257 = vtanh.pop %v1243
  %v1258 = vxor.u32 %v1244, 2147483648
  %v1259 = vmul.f32 %v1258, 1.442695
  %v1260 = vpow.pop %v1259
  %v1261 = vadd.f32 %v1260, 1.0
  %v1262 = vrcp.pop %v1261
  %v1263 = vmul.f32 1.0, %v1262
  %v1264 = vmul.f32 %v1256, %v622
  %v1265 = vmul.f32 %v1254, %v1257
  %v1266 = vadd.f32 %v1264, %v1265
  %v1267 = vtanh.pop %v1266
  %v1268 = vmul.f32 %v1263, %v1267
  %v1269 = vpack.c.bf16 %v1268, %v1268
  %1270 = vmatprep.subr.bf16.mxu0 %v772
  %1271 = vmatpush1.bf16.msra.mxu0 %v771
  %1272 = vmatprep.subr.bf16.mxu0 %v768
  %1273 = vmatpush1.bf16.msra.mxu0 %v767
  %1274 = vmatprep.subr.bf16.mxu0 %v764
  %1275 = vmatpush1.bf16.msra.mxu0 %v763
  %1276 = vmatprep.subr.bf16.mxu0 %v760
  %1277 = vmatpush1.bf16.msra.mxu0 %v759
  %1278 = vmatprep.subr.bf16.mxu0 %v756
  %1279 = vmatpush1.bf16.msra.mxu0 %v755
  %1280 = vmatprep.subr.bf16.mxu0 %v752
  %1281 = vmatpush1.bf16.msra.mxu0 %v751
  %1282 = vmatprep.subr.bf16.mxu0 %v748
  %1283 = vmatpush1.bf16.msra.mxu0 %v747
  %1284 = vmatprep.subr.bf16.mxu0 %v744
  %1285 = vmatpush1.bf16.msra.mxu0 %v743
  %1286 = vmatprep.subr.bf16.mxu0 0
  %1287 = vmatpush2.bf16.msra.mxu0 0
  %1288 = vmatprep.subr.bf16.mxu0 0
  %1289 = vmatpush2.bf16.msra.mxu0 0
  %1290 = vmatprep.subr.bf16.mxu0 0
  %1291 = vmatpush2.bf16.msra.mxu0 0
  %1292 = vmatprep.subr.bf16.mxu0 0
  %1293 = vmatpush2.bf16.msra.mxu0 0
  %1294 = vmatprep.subr.bf16.mxu0 0
  %1295 = vmatpush2.bf16.msra.mxu0 0
  %1296 = vmatprep.subr.bf16.mxu0 0
  %1297 = vmatpush2.bf16.msra.mxu0 0
  %1298 = vmatprep.subr.bf16.mxu0 0
  %1299 = vmatpush2.bf16.msra.mxu0 0
  %1300 = vmatprep.subr.bf16.mxu0 0
  %1301 = vmatpush2.bf16.msra.mxu0 0
  %1302 = vmatprep.mubr.bf16.mxu0 0
  %1303 = vmatmul.mubr.bf16.gmra.mxu0 %v1269
  %v1304 = vpop.f32.mrf.mxu0
  %v1305 = vadd.f32 %v630, %v1304
  %v1306 = vpop.f32.mrf.mxu0
  %v1307 = vadd.f32 %v634, %v1306
  %v1308 = vpop.f32.mrf.mxu0
  %v1309 = vpop.f32.mrf.mxu0
  %1310 = vdwg.mxu0
  %1311 = vmatprep.subr.bf16.mxu0 %v774
  %1312 = vmatpush1.bf16.msra.mxu0 %v773
  %1313 = vmatprep.subr.bf16.mxu0 %v770
  %1314 = vmatpush1.bf16.msra.mxu0 %v769
  %1315 = vmatprep.subr.bf16.mxu0 %v766
  %1316 = vmatpush1.bf16.msra.mxu0 %v765
  %1317 = vmatprep.subr.bf16.mxu0 %v762
  %1318 = vmatpush1.bf16.msra.mxu0 %v761
  %1319 = vmatprep.subr.bf16.mxu0 %v758
  %1320 = vmatpush1.bf16.msra.mxu0 %v757
  %1321 = vmatprep.subr.bf16.mxu0 %v754
  %1322 = vmatpush1.bf16.msra.mxu0 %v753
  %1323 = vmatprep.subr.bf16.mxu0 %v750
  %1324 = vmatpush1.bf16.msra.mxu0 %v749
  %1325 = vmatprep.subr.bf16.mxu0 %v746
  %1326 = vmatpush1.bf16.msra.mxu0 %v745
  %1327 = vmatprep.subr.bf16.mxu0 0
  %1328 = vmatpush2.bf16.msra.mxu0 0
  %1329 = vmatprep.subr.bf16.mxu0 0
  %1330 = vmatpush2.bf16.msra.mxu0 0
  %1331 = vmatprep.subr.bf16.mxu0 0
  %1332 = vmatpush2.bf16.msra.mxu0 0
  %1333 = vmatprep.subr.bf16.mxu0 0
  %1334 = vmatpush2.bf16.msra.mxu0 0
  %1335 = vmatprep.subr.bf16.mxu0 0
  %1336 = vmatpush2.bf16.msra.mxu0 0
  %1337 = vmatprep.subr.bf16.mxu0 0
  %1338 = vmatpush2.bf16.msra.mxu0 0
  %1339 = vmatprep.subr.bf16.mxu0 0
  %1340 = vmatpush2.bf16.msra.mxu0 0
  %1341 = vmatprep.subr.bf16.mxu0 0
  %1342 = vmatpush2.bf16.msra.mxu0 0
  %1343 = vmatprep.mubr.bf16.mxu0 0
  %1344 = vmatmul.mubr.bf16.gmra.mxu0 %v1269
  %v1345 = vpop.f32.mrf.mxu0
  %v1346 = vadd.f32 %v638, %v1345
  %v1347 = vpop.f32.mrf.mxu0
  %v1348 = vadd.f32 %v642, %v1347
  %v1349 = vpop.f32.mrf.mxu0
  %v1350 = vpop.f32.mrf.mxu0
  %1351 = vdwg.mxu0
  %v1352 = vpack.c.bf16 %v1158, %v1158
  %1353 = vmatprep.subr.bf16.mxu0 %v1014
  %1354 = vmatpush1.bf16.msra.mxu0 %v1013
  %1355 = vmatprep.subr.bf16.mxu0 %v1010
  %1356 = vmatpush1.bf16.msra.mxu0 %v1009
  %1357 = vmatprep.subr.bf16.mxu0 %v1006
  %1358 = vmatpush1.bf16.msra.mxu0 %v1005
  %1359 = vmatprep.subr.bf16.mxu0 %v1002
  %1360 = vmatpush1.bf16.msra.mxu0 %v1001
  %1361 = vmatprep.subr.bf16.mxu0 %v998
  %1362 = vmatpush1.bf16.msra.mxu0 %v997
  %1363 = vmatprep.subr.bf16.mxu0 %v994
  %1364 = vmatpush1.bf16.msra.mxu0 %v993
  %1365 = vmatprep.subr.bf16.mxu0 %v990
  %1366 = vmatpush1.bf16.msra.mxu0 %v989
  %1367 = vmatprep.subr.bf16.mxu0 %v986
  %1368 = vmatpush1.bf16.msra.mxu0 %v985
  %1369 = vmatprep.subr.bf16.mxu0 0
  %1370 = vmatpush2.bf16.msra.mxu0 0
  %1371 = vmatprep.subr.bf16.mxu0 0
  %1372 = vmatpush2.bf16.msra.mxu0 0
  %1373 = vmatprep.subr.bf16.mxu0 0
  %1374 = vmatpush2.bf16.msra.mxu0 0
  %1375 = vmatprep.subr.bf16.mxu0 0
  %1376 = vmatpush2.bf16.msra.mxu0 0
  %1377 = vmatprep.subr.bf16.mxu0 0
  %1378 = vmatpush2.bf16.msra.mxu0 0
  %1379 = vmatprep.subr.bf16.mxu0 0
  %1380 = vmatpush2.bf16.msra.mxu0 0
  %1381 = vmatprep.subr.bf16.mxu0 0
  %1382 = vmatpush2.bf16.msra.mxu0 0
  %1383 = vmatprep.subr.bf16.mxu0 0
  %1384 = vmatpush2.bf16.msra.mxu0 0
  %1385 = vmatprep.mubr.bf16.mxu0 0
  %1386 = vmatmul.mubr.bf16.gmra.mxu0 %v1352
  %v1387 = vpop.f32.mrf.mxu0
  %v1388 = vadd.f32 0.0, %v1387
  %v1389 = vpop.f32.mrf.mxu0
  %v1390 = vadd.f32 0.0, %v1389
  %v1391 = vpop.f32.mrf.mxu0
  %v1392 = vpop.f32.mrf.mxu0
  %1393 = vdwg.mxu0
  %1394 = vmatprep.subr.bf16.mxu0 %v1016
  %1395 = vmatpush1.bf16.msra.mxu0 %v1015
  %1396 = vmatprep.subr.bf16.mxu0 %v1012
  %1397 = vmatpush1.bf16.msra.mxu0 %v1011
  %1398 = vmatprep.subr.bf16.mxu0 %v1008
  %1399 = vmatpush1.bf16.msra.mxu0 %v1007
  %1400 = vmatprep.subr.bf16.mxu0 %v1004
  %1401 = vmatpush1.bf16.msra.mxu0 %v1003
  %1402 = vmatprep.subr.bf16.mxu0 %v1000
  %1403 = vmatpush1.bf16.msra.mxu0 %v999
  %1404 = vmatprep.subr.bf16.mxu0 %v996
  %1405 = vmatpush1.bf16.msra.mxu0 %v995
  %1406 = vmatprep.subr.bf16.mxu0 %v992
  %1407 = vmatpush1.bf16.msra.mxu0 %v991
  %1408 = vmatprep.subr.bf16.mxu0 %v988
  %1409 = vmatpush1.bf16.msra.mxu0 %v987
  %1410 = vmatprep.subr.bf16.mxu0 0
  %1411 = vmatpush2.bf16.msra.mxu0 0
  %1412 = vmatprep.subr.bf16.mxu0 0
  %1413 = vmatpush2.bf16.msra.mxu0 0
  %1414 = vmatprep.subr.bf16.mxu0 0
  %1415 = vmatpush2.bf16.msra.mxu0 0
  %1416 = vmatprep.subr.bf16.mxu0 0
  %1417 = vmatpush2.bf16.msra.mxu0 0
  %1418 = vmatprep.subr.bf16.mxu0 0
  %1419 = vmatpush2.bf16.msra.mxu0 0
  %1420 = vmatprep.subr.bf16.mxu0 0
  %1421 = vmatpush2.bf16.msra.mxu0 0
  %1422 = vmatprep.subr.bf16.mxu0 0
  %1423 = vmatpush2.bf16.msra.mxu0 0
  %1424 = vmatprep.subr.bf16.mxu0 0
  %1425 = vmatpush2.bf16.msra.mxu0 0
  %1426 = vmatprep.mubr.bf16.mxu0 0
  %1427 = vmatmul.mubr.bf16.gmra.mxu0 %v1352
  %v1428 = vpop.f32.mrf.mxu0
  %v1429 = vadd.f32 0.0, %v1428
  %v1430 = vpop.f32.mrf.mxu0
  %v1431 = vadd.f32 0.0, %v1430
  %v1432 = vpop.f32.mrf.mxu0
  %v1433 = vpop.f32.mrf.mxu0
  %1434 = vdwg.mxu0
  %v1435 = vadd.f32 %v1305, %v1388
  %v1436 = vadd.f32 %v1307, %v1390
  %v1437 = vadd.f32 %v1346, %v1429
  %v1438 = vadd.f32 %v1348, %v1431
  %v1439 = vxor.u32 %v1435, 2147483648
  %v1440 = vxor.u32 %v1436, 2147483648
  %v1441 = vmul.f32 %v1439, 1.442695
  %v1442 = vpow.pop %v1441
  %v1443 = vmul.f32 %v1440, 1.442695
  %v1444 = vpow.pop %v1443
  %v1445 = vadd.f32 %v1442, 1.0
  %v1446 = vadd.f32 %v1444, 1.0
  %v1447 = vrcp.pop %v1445
  %v1448 = vmul.f32 1.0, %v1447
  %v1449 = vrcp.pop %v1446
  %v1450 = vmul.f32 1.0, %v1449
  %v1451 = vtanh.pop %v1437
  %v1452 = vxor.u32 %v1438, 2147483648
  %v1453 = vmul.f32 %v1452, 1.442695
  %v1454 = vpow.pop %v1453
  %v1455 = vadd.f32 %v1454, 1.0
  %v1456 = vrcp.pop %v1455
  %v1457 = vmul.f32 1.0, %v1456
  %v1458 = vmul.f32 %v1450, %v1156
  %v1459 = vmul.f32 %v1448, %v1451
  %v1460 = vadd.f32 %v1458, %v1459
  %v1461 = vtanh.pop %v1460
  %v1462 = vmul.f32 %v1457, %v1461
  %1463 = vmatprep.subr.bf16.mxu0 %v480
  %1464 = vmatpush1.bf16.msra.mxu0 %v479
  %1465 = vmatprep.subr.bf16.mxu0 %v476
  %1466 = vmatpush1.bf16.msra.mxu0 %v475
  %1467 = vmatprep.subr.bf16.mxu0 %v472
  %1468 = vmatpush1.bf16.msra.mxu0 %v471
  %1469 = vmatprep.subr.bf16.mxu0 %v468
  %1470 = vmatpush1.bf16.msra.mxu0 %v467
  %1471 = vmatprep.subr.bf16.mxu0 %v464
  %1472 = vmatpush1.bf16.msra.mxu0 %v463
  %1473 = vmatprep.subr.bf16.mxu0 %v460
  %1474 = vmatpush1.bf16.msra.mxu0 %v459
  %1475 = vmatprep.subr.bf16.mxu0 %v456
  %1476 = vmatpush1.bf16.msra.mxu0 %v455
  %1477 = vmatprep.subr.bf16.mxu0 %v452
  %1478 = vmatpush1.bf16.msra.mxu0 %v451
  %1479 = vmatprep.subr.bf16.mxu0 0
  %1480 = vmatpush2.bf16.msra.mxu0 0
  %1481 = vmatprep.subr.bf16.mxu0 0
  %1482 = vmatpush2.bf16.msra.mxu0 0
  %1483 = vmatprep.subr.bf16.mxu0 0
  %1484 = vmatpush2.bf16.msra.mxu0 0
  %1485 = vmatprep.subr.bf16.mxu0 0
  %1486 = vmatpush2.bf16.msra.mxu0 0
  %1487 = vmatprep.subr.bf16.mxu0 0
  %1488 = vmatpush2.bf16.msra.mxu0 0
  %1489 = vmatprep.subr.bf16.mxu0 0
  %1490 = vmatpush2.bf16.msra.mxu0 0
  %1491 = vmatprep.subr.bf16.mxu0 0
  %1492 = vmatpush2.bf16.msra.mxu0 0
  %1493 = vmatprep.subr.bf16.mxu0 0
  %1494 = vmatpush2.bf16.msra.mxu0 0
  %1495 = vmatprep.mubr.bf16.mxu0 0
  %1496 = vmatmul.mubr.bf16.gmra.mxu0 %v1269
  %v1497 = vpop.f32.mrf.mxu0
  %v1498 = vadd.f32 0.0, %v1497
  %v1499 = vpop.f32.mrf.mxu0
  %v1500 = vadd.f32 0.0, %v1499
  %v1501 = vpop.f32.mrf.mxu0
  %v1502 = vpop.f32.mrf.mxu0
  %1503 = vdwg.mxu0
  %1504 = vmatprep.subr.bf16.mxu0 %v482
  %1505 = vmatpush1.bf16.msra.mxu0 %v481
  %1506 = vmatprep.subr.bf16.mxu0 %v478
  %1507 = vmatpush1.bf16.msra.mxu0 %v477
  %1508 = vmatprep.subr.bf16.mxu0 %v474
  %1509 = vmatpush1.bf16.msra.mxu0 %v473
  %1510 = vmatprep.subr.bf16.mxu0 %v470
  %1511 = vmatpush1.bf16.msra.mxu0 %v469
  %1512 = vmatprep.subr.bf16.mxu0 %v466
  %1513 = vmatpush1.bf16.msra.mxu0 %v465
  %1514 = vmatprep.subr.bf16.mxu0 %v462
  %1515 = vmatpush1.bf16.msra.mxu0 %v461
  %1516 = vmatprep.subr.bf16.mxu0 %v458
  %1517 = vmatpush1.bf16.msra.mxu0 %v457
  %1518 = vmatprep.subr.bf16.mxu0 %v454
  %1519 = vmatpush1.bf16.msra.mxu0 %v453
  %1520 = vmatprep.subr.bf16.mxu0 0
  %1521 = vmatpush2.bf16.msra.mxu0 0
  %1522 = vmatprep.subr.bf16.mxu0 0
  %1523 = vmatpush2.bf16.msra.mxu0 0
  %1524 = vmatprep.subr.bf16.mxu0 0
  %1525 = vmatpush2.bf16.msra.mxu0 0
  %1526 = vmatprep.subr.bf16.mxu0 0
  %1527 = vmatpush2.bf16.msra.mxu0 0
  %1528 = vmatprep.subr.bf16.mxu0 0
  %1529 = vmatpush2.bf16.msra.mxu0 0
  %1530 = vmatprep.subr.bf16.mxu0 0
  %1531 = vmatpush2.bf16.msra.mxu0 0
  %1532 = vmatprep.subr.bf16.mxu0 0
  %1533 = vmatpush2.bf16.msra.mxu0 0
  %1534 = vmatprep.subr.bf16.mxu0 0
  %1535 = vmatpush2.bf16.msra.mxu0 0
  %1536 = vmatprep.mubr.bf16.mxu0 0
  %1537 = vmatmul.mubr.bf16.gmra.mxu0 %v1269
  %v1538 = vpop.f32.mrf.mxu0
  %v1539 = vadd.f32 0.0, %v1538
  %v1540 = vpop.f32.mrf.mxu0
  %v1541 = vadd.f32 0.0, %v1540
  %v1542 = vpop.f32.mrf.mxu0
  %v1543 = vpop.f32.mrf.mxu0
  %1544 = vdwg.mxu0
  %v1545 = vadd.f32 %v254, %v1498
  %v1546 = vadd.f32 %v256, %v1500
  %v1547 = vadd.f32 %v327, %v1539
  %v1548 = vadd.f32 %v329, %v1541
  %v1549 = vxor.u32 %v1545, 2147483648
  %v1550 = vxor.u32 %v1546, 2147483648
  %v1551 = vmul.f32 %v1549, 1.442695
  %v1552 = vpow.pop %v1551
  %v1553 = vmul.f32 %v1550, 1.442695
  %v1554 = vpow.pop %v1553
  %v1555 = vadd.f32 %v1552, 1.0
  %v1556 = vadd.f32 %v1554, 1.0
  %v1557 = vrcp.pop %v1555
  %v1558 = vmul.f32 1.0, %v1557
  %v1559 = vrcp.pop %v1556
  %v1560 = vmul.f32 1.0, %v1559
  %v1561 = vtanh.pop %v1547
  %v1562 = vxor.u32 %v1548, 2147483648
  %v1563 = vmul.f32 %v1562, 1.442695
  %v1564 = vpow.pop %v1563
  %v1565 = vadd.f32 %v1564, 1.0
  %v1566 = vrcp.pop %v1565
  %v1567 = vmul.f32 1.0, %v1566
  %v1568 = vmul.f32 %v1560, %v1266
  %v1569 = vmul.f32 %v1558, %v1561
  %v1570 = vadd.f32 %v1568, %v1569
  %v1571 = vtanh.pop %v1570
  %v1572 = vmul.f32 %v1567, %v1571
  %v1573 = vpack.c.bf16 %v1572, %v1572
  %1574 = vmatprep.subr.bf16.mxu0 %v772
  %1575 = vmatpush1.bf16.msra.mxu0 %v771
  %1576 = vmatprep.subr.bf16.mxu0 %v768
  %1577 = vmatpush1.bf16.msra.mxu0 %v767
  %1578 = vmatprep.subr.bf16.mxu0 %v764
  %1579 = vmatpush1.bf16.msra.mxu0 %v763
  %1580 = vmatprep.subr.bf16.mxu0 %v760
  %1581 = vmatpush1.bf16.msra.mxu0 %v759
  %1582 = vmatprep.subr.bf16.mxu0 %v756
  %1583 = vmatpush1.bf16.msra.mxu0 %v755
  %1584 = vmatprep.subr.bf16.mxu0 %v752
  %1585 = vmatpush1.bf16.msra.mxu0 %v751
  %1586 = vmatprep.subr.bf16.mxu0 %v748
  %1587 = vmatpush1.bf16.msra.mxu0 %v747
  %1588 = vmatprep.subr.bf16.mxu0 %v744
  %1589 = vmatpush1.bf16.msra.mxu0 %v743
  %1590 = vmatprep.subr.bf16.mxu0 0
  %1591 = vmatpush2.bf16.msra.mxu0 0
  %1592 = vmatprep.subr.bf16.mxu0 0
  %1593 = vmatpush2.bf16.msra.mxu0 0
  %1594 = vmatprep.subr.bf16.mxu0 0
  %1595 = vmatpush2.bf16.msra.mxu0 0
  %1596 = vmatprep.subr.bf16.mxu0 0
  %1597 = vmatpush2.bf16.msra.mxu0 0
  %1598 = vmatprep.subr.bf16.mxu0 0
  %1599 = vmatpush2.bf16.msra.mxu0 0
  %1600 = vmatprep.subr.bf16.mxu0 0
  %1601 = vmatpush2.bf16.msra.mxu0 0
  %1602 = vmatprep.subr.bf16.mxu0 0
  %1603 = vmatpush2.bf16.msra.mxu0 0
  %1604 = vmatprep.subr.bf16.mxu0 0
  %1605 = vmatpush2.bf16.msra.mxu0 0
  %1606 = vmatprep.mubr.bf16.mxu0 0
  %1607 = vmatmul.mubr.bf16.gmra.mxu0 %v1573
  %v1608 = vpop.f32.mrf.mxu0
  %v1609 = vadd.f32 %v630, %v1608
  %v1610 = vpop.f32.mrf.mxu0
  %v1611 = vadd.f32 %v634, %v1610
  %v1612 = vpop.f32.mrf.mxu0
  %v1613 = vpop.f32.mrf.mxu0
  %1614 = vdwg.mxu0
  %1615 = vmatprep.subr.bf16.mxu0 %v774
  %1616 = vmatpush1.bf16.msra.mxu0 %v773
  %1617 = vmatprep.subr.bf16.mxu0 %v770
  %1618 = vmatpush1.bf16.msra.mxu0 %v769
  %1619 = vmatprep.subr.bf16.mxu0 %v766
  %1620 = vmatpush1.bf16.msra.mxu0 %v765
  %1621 = vmatprep.subr.bf16.mxu0 %v762
  %1622 = vmatpush1.bf16.msra.mxu0 %v761
  %1623 = vmatprep.subr.bf16.mxu0 %v758
  %1624 = vmatpush1.bf16.msra.mxu0 %v757
  %1625 = vmatprep.subr.bf16.mxu0 %v754
  %1626 = vmatpush1.bf16.msra.mxu0 %v753
  %1627 = vmatprep.subr.bf16.mxu0 %v750
  %1628 = vmatpush1.bf16.msra.mxu0 %v749
  %1629 = vmatprep.subr.bf16.mxu0 %v746
  %1630 = vmatpush1.bf16.msra.mxu0 %v745
  %1631 = vmatprep.subr.bf16.mxu0 0
  %1632 = vmatpush2.bf16.msra.mxu0 0
  %1633 = vmatprep.subr.bf16.mxu0 0
  %1634 = vmatpush2.bf16.msra.mxu0 0
  %1635 = vmatprep.subr.bf16.mxu0 0
  %1636 = vmatpush2.bf16.msra.mxu0 0
  %1637 = vmatprep.subr.bf16.mxu0 0
  %1638 = vmatpush2.bf16.msra.mxu0 0
  %1639 = vmatprep.subr.bf16.mxu0 0
  %1640 = vmatpush2.bf16.msra.mxu0 0
  %1641 = vmatprep.subr.bf16.mxu0 0
  %1642 = vmatpush2.bf16.msra.mxu0 0
  %1643 = vmatprep.subr.bf16.mxu0 0
  %1644 = vmatpush2.bf16.msra.mxu0 0
  %1645 = vmatprep.subr.bf16.mxu0 0
  %1646 = vmatpush2.bf16.msra.mxu0 0
  %1647 = vmatprep.mubr.bf16.mxu0 0
  %1648 = vmatmul.mubr.bf16.gmra.mxu0 %v1573
  %v1649 = vpop.f32.mrf.mxu0
  %v1650 = vadd.f32 %v638, %v1649
  %v1651 = vpop.f32.mrf.mxu0
  %v1652 = vadd.f32 %v642, %v1651
  %v1653 = vpop.f32.mrf.mxu0
  %v1654 = vpop.f32.mrf.mxu0
  %1655 = vdwg.mxu0
  %v1656 = vpack.c.bf16 %v1462, %v1462
  %1657 = vmatprep.subr.bf16.mxu0 %v1014
  %1658 = vmatpush1.bf16.msra.mxu0 %v1013
  %1659 = vmatprep.subr.bf16.mxu0 %v1010
  %1660 = vmatpush1.bf16.msra.mxu0 %v1009
  %1661 = vmatprep.subr.bf16.mxu0 %v1006
  %1662 = vmatpush1.bf16.msra.mxu0 %v1005
  %1663 = vmatprep.subr.bf16.mxu0 %v1002
  %1664 = vmatpush1.bf16.msra.mxu0 %v1001
  %1665 = vmatprep.subr.bf16.mxu0 %v998
  %1666 = vmatpush1.bf16.msra.mxu0 %v997
  %1667 = vmatprep.subr.bf16.mxu0 %v994
  %1668 = vmatpush1.bf16.msra.mxu0 %v993
  %1669 = vmatprep.subr.bf16.mxu0 %v990
  %1670 = vmatpush1.bf16.msra.mxu0 %v989
  %1671 = vmatprep.subr.bf16.mxu0 %v986
  %1672 = vmatpush1.bf16.msra.mxu0 %v985
  %1673 = vmatprep.subr.bf16.mxu0 0
  %1674 = vmatpush2.bf16.msra.mxu0 0
  %1675 = vmatprep.subr.bf16.mxu0 0
  %1676 = vmatpush2.bf16.msra.mxu0 0
  %1677 = vmatprep.subr.bf16.mxu0 0
  %1678 = vmatpush2.bf16.msra.mxu0 0
  %1679 = vmatprep.subr.bf16.mxu0 0
  %1680 = vmatpush2.bf16.msra.mxu0 0
  %1681 = vmatprep.subr.bf16.mxu0 0
  %1682 = vmatpush2.bf16.msra.mxu0 0
  %1683 = vmatprep.subr.bf16.mxu0 0
  %1684 = vmatpush2.bf16.msra.mxu0 0
  %1685 = vmatprep.subr.bf16.mxu0 0
  %1686 = vmatpush2.bf16.msra.mxu0 0
  %1687 = vmatprep.subr.bf16.mxu0 0
  %1688 = vmatpush2.bf16.msra.mxu0 0
  %1689 = vmatprep.mubr.bf16.mxu0 0
  %1690 = vmatmul.mubr.bf16.gmra.mxu0 %v1656
  %v1691 = vpop.f32.mrf.mxu0
  %v1692 = vadd.f32 0.0, %v1691
  %v1693 = vpop.f32.mrf.mxu0
  %v1694 = vadd.f32 0.0, %v1693
  %v1695 = vpop.f32.mrf.mxu0
  %v1696 = vpop.f32.mrf.mxu0
  %1697 = vdwg.mxu0
  %1698 = vmatprep.subr.bf16.mxu0 %v1016
  %1699 = vmatpush1.bf16.msra.mxu0 %v1015
  %1700 = vmatprep.subr.bf16.mxu0 %v1012
  %1701 = vmatpush1.bf16.msra.mxu0 %v1011
  %1702 = vmatprep.subr.bf16.mxu0 %v1008
  %1703 = vmatpush1.bf16.msra.mxu0 %v1007
  %1704 = vmatprep.subr.bf16.mxu0 %v1004
  %1705 = vmatpush1.bf16.msra.mxu0 %v1003
  %1706 = vmatprep.subr.bf16.mxu0 %v1000
  %1707 = vmatpush1.bf16.msra.mxu0 %v999
  %1708 = vmatprep.subr.bf16.mxu0 %v996
  %1709 = vmatpush1.bf16.msra.mxu0 %v995
  %1710 = vmatprep.subr.bf16.mxu0 %v992
  %1711 = vmatpush1.bf16.msra.mxu0 %v991
  %1712 = vmatprep.subr.bf16.mxu0 %v988
  %1713 = vmatpush1.bf16.msra.mxu0 %v987
  %1714 = vmatprep.subr.bf16.mxu0 0
  %1715 = vmatpush2.bf16.msra.mxu0 0
  %1716 = vmatprep.subr.bf16.mxu0 0
  %1717 = vmatpush2.bf16.msra.mxu0 0
  %1718 = vmatprep.subr.bf16.mxu0 0
  %1719 = vmatpush2.bf16.msra.mxu0 0
  %1720 = vmatprep.subr.bf16.mxu0 0
  %1721 = vmatpush2.bf16.msra.mxu0 0
  %1722 = vmatprep.subr.bf16.mxu0 0
  %1723 = vmatpush2.bf16.msra.mxu0 0
  %1724 = vmatprep.subr.bf16.mxu0 0
  %1725 = vmatpush2.bf16.msra.mxu0 0
  %1726 = vmatprep.subr.bf16.mxu0 0
  %1727 = vmatpush2.bf16.msra.mxu0 0
  %1728 = vmatprep.subr.bf16.mxu0 0
  %1729 = vmatpush2.bf16.msra.mxu0 0
  %1730 = vmatprep.mubr.bf16.mxu0 0
  %1731 = vmatmul.mubr.bf16.gmra.mxu0 %v1656
  %v1732 = vpop.f32.mrf.mxu0
  %v1733 = vadd.f32 0.0, %v1732
  %v1734 = vpop.f32.mrf.mxu0
  %v1735 = vadd.f32 0.0, %v1734
  %v1736 = vpop.f32.mrf.mxu0
  %v1737 = vpop.f32.mrf.mxu0
  %1738 = vdwg.mxu0
  %v1739 = vadd.f32 %v1609, %v1692
  %v1740 = vadd.f32 %v1611, %v1694
  %v1741 = vadd.f32 %v1650, %v1733
  %v1742 = vadd.f32 %v1652, %v1735
  %v1743 = vxor.u32 %v1739, 2147483648
  %v1744 = vxor.u32 %v1740, 2147483648
  %v1745 = vmul.f32 %v1743, 1.442695
  %v1746 = vpow.pop %v1745
  %v1747 = vmul.f32 %v1744, 1.442695
  %v1748 = vpow.pop %v1747
  %v1749 = vadd.f32 %v1746, 1.0
  %v1750 = vadd.f32 %v1748, 1.0
  %v1751 = vrcp.pop %v1749
  %v1752 = vmul.f32 1.0, %v1751
  %v1753 = vrcp.pop %v1750
  %v1754 = vmul.f32 1.0, %v1753
  %v1755 = vtanh.pop %v1741
  %v1756 = vxor.u32 %v1742, 2147483648
  %v1757 = vmul.f32 %v1756, 1.442695
  %v1758 = vpow.pop %v1757
  %v1759 = vadd.f32 %v1758, 1.0
  %v1760 = vrcp.pop %v1759
  %v1761 = vmul.f32 1.0, %v1760
  %v1762 = vmul.f32 %v1754, %v1460
  %v1763 = vmul.f32 %v1752, %v1755
  %v1764 = vadd.f32 %v1762, %v1763
  %v1765 = vtanh.pop %v1764
  %v1766 = vmul.f32 %v1761, %v1765
  %1767 = vmatprep.subr.bf16.mxu0 %v480
  %1768 = vmatpush1.bf16.msra.mxu0 %v479
  %1769 = vmatprep.subr.bf16.mxu0 %v476
  %1770 = vmatpush1.bf16.msra.mxu0 %v475
  %1771 = vmatprep.subr.bf16.mxu0 %v472
  %1772 = vmatpush1.bf16.msra.mxu0 %v471
  %1773 = vmatprep.subr.bf16.mxu0 %v468
  %1774 = vmatpush1.bf16.msra.mxu0 %v467
  %1775 = vmatprep.subr.bf16.mxu0 %v464
  %1776 = vmatpush1.bf16.msra.mxu0 %v463
  %1777 = vmatprep.subr.bf16.mxu0 %v460
  %1778 = vmatpush1.bf16.msra.mxu0 %v459
  %1779 = vmatprep.subr.bf16.mxu0 %v456
  %1780 = vmatpush1.bf16.msra.mxu0 %v455
  %1781 = vmatprep.subr.bf16.mxu0 %v452
  %1782 = vmatpush1.bf16.msra.mxu0 %v451
  %1783 = vmatprep.subr.bf16.mxu0 0
  %1784 = vmatpush2.bf16.msra.mxu0 0
  %1785 = vmatprep.subr.bf16.mxu0 0
  %1786 = vmatpush2.bf16.msra.mxu0 0
  %1787 = vmatprep.subr.bf16.mxu0 0
  %1788 = vmatpush2.bf16.msra.mxu0 0
  %1789 = vmatprep.subr.bf16.mxu0 0
  %1790 = vmatpush2.bf16.msra.mxu0 0
  %1791 = vmatprep.subr.bf16.mxu0 0
  %1792 = vmatpush2.bf16.msra.mxu0 0
  %1793 = vmatprep.subr.bf16.mxu0 0
  %1794 = vmatpush2.bf16.msra.mxu0 0
  %1795 = vmatprep.subr.bf16.mxu0 0
  %1796 = vmatpush2.bf16.msra.mxu0 0
  %1797 = vmatprep.subr.bf16.mxu0 0
  %1798 = vmatpush2.bf16.msra.mxu0 0
  %1799 = vmatprep.mubr.bf16.mxu0 0
  %1800 = vmatmul.mubr.bf16.gmra.mxu0 %v1573
  %v1801 = vpop.f32.mrf.mxu0
  %v1802 = vadd.f32 0.0, %v1801
  %v1803 = vpop.f32.mrf.mxu0
  %v1804 = vadd.f32 0.0, %v1803
  %v1805 = vpop.f32.mrf.mxu0
  %v1806 = vpop.f32.mrf.mxu0
  %1807 = vdwg.mxu0
  %1808 = vmatprep.subr.bf16.mxu0 %v482
  %1809 = vmatpush1.bf16.msra.mxu0 %v481
  %1810 = vmatprep.subr.bf16.mxu0 %v478
  %1811 = vmatpush1.bf16.msra.mxu0 %v477
  %1812 = vmatprep.subr.bf16.mxu0 %v474
  %1813 = vmatpush1.bf16.msra.mxu0 %v473
  %1814 = vmatprep.subr.bf16.mxu0 %v470
  %1815 = vmatpush1.bf16.msra.mxu0 %v469
  %1816 = vmatprep.subr.bf16.mxu0 %v466
  %1817 = vmatpush1.bf16.msra.mxu0 %v465
  %1818 = vmatprep.subr.bf16.mxu0 %v462
  %1819 = vmatpush1.bf16.msra.mxu0 %v461
  %1820 = vmatprep.subr.bf16.mxu0 %v458
  %1821 = vmatpush1.bf16.msra.mxu0 %v457
  %1822 = vmatprep.subr.bf16.mxu0 %v454
  %1823 = vmatpush1.bf16.msra.mxu0 %v453
  %1824 = vmatprep.subr.bf16.mxu0 0
  %1825 = vmatpush2.bf16.msra.mxu0 0
  %1826 = vmatprep.subr.bf16.mxu0 0
  %1827 = vmatpush2.bf16.msra.mxu0 0
  %1828 = vmatprep.subr.bf16.mxu0 0
  %1829 = vmatpush2.bf16.msra.mxu0 0
  %1830 = vmatprep.subr.bf16.mxu0 0
  %1831 = vmatpush2.bf16.msra.mxu0 0
  %1832 = vmatprep.subr.bf16.mxu0 0
  %1833 = vmatpush2.bf16.msra.mxu0 0
  %1834 = vmatprep.subr.bf16.mxu0 0
  %1835 = vmatpush2.bf16.msra.mxu0 0
  %1836 = vmatprep.subr.bf16.mxu0 0
  %1837 = vmatpush2.bf16.msra.mxu0 0
  %1838 = vmatprep.subr.bf16.mxu0 0
  %1839 = vmatpush2.bf16.msra.mxu0 0
  %1840 = vmatprep.mubr.bf16.mxu0 0
  %1841 = vmatmul.mubr.bf16.gmra.mxu0 %v1573
  %v1842 = vpop.f32.mrf.mxu0
  %v1843 = vadd.f32 0.0, %v1842
  %v1844 = vpop.f32.mrf.mxu0
  %v1845 = vadd.f32 0.0, %v1844
  %v1846 = vpop.f32.mrf.mxu0
  %v1847 = vpop.f32.mrf.mxu0
  %1848 = vdwg.mxu0
  %v1849 = vadd.f32 %v258, %v1802
  %v1850 = vadd.f32 %v260, %v1804
  %v1851 = vadd.f32 %v331, %v1843
  %v1852 = vadd.f32 %v333, %v1845
  %v1853 = vxor.u32 %v1849, 2147483648
  %v1854 = vxor.u32 %v1850, 2147483648
  %v1855 = vmul.f32 %v1853, 1.442695
  %v1856 = vpow.pop %v1855
  %v1857 = vmul.f32 %v1854, 1.442695
  %v1858 = vpow.pop %v1857
  %v1859 = vadd.f32 %v1856, 1.0
  %v1860 = vadd.f32 %v1858, 1.0
  %v1861 = vrcp.pop %v1859
  %v1862 = vmul.f32 1.0, %v1861
  %v1863 = vrcp.pop %v1860
  %v1864 = vmul.f32 1.0, %v1863
  %v1865 = vtanh.pop %v1851
  %v1866 = vxor.u32 %v1852, 2147483648
  %v1867 = vmul.f32 %v1866, 1.442695
  %v1868 = vpow.pop %v1867
  %v1869 = vadd.f32 %v1868, 1.0
  %v1870 = vrcp.pop %v1869
  %v1871 = vmul.f32 1.0, %v1870
  %v1872 = vmul.f32 %v1864, %v1570
  %v1873 = vmul.f32 %v1862, %v1865
  %v1874 = vadd.f32 %v1872, %v1873
  %v1875 = vtanh.pop %v1874
  %v1876 = vmul.f32 %v1871, %v1875
  %v1877 = vpack.c.bf16 %v1876, %v1876
  %1878 = vmatprep.subr.bf16.mxu0 %v772
  %1879 = vmatpush1.bf16.msra.mxu0 %v771
  %1880 = vmatprep.subr.bf16.mxu0 %v768
  %1881 = vmatpush1.bf16.msra.mxu0 %v767
  %1882 = vmatprep.subr.bf16.mxu0 %v764
  %1883 = vmatpush1.bf16.msra.mxu0 %v763
  %1884 = vmatprep.subr.bf16.mxu0 %v760
  %1885 = vmatpush1.bf16.msra.mxu0 %v759
  %1886 = vmatprep.subr.bf16.mxu0 %v756
  %1887 = vmatpush1.bf16.msra.mxu0 %v755
  %1888 = vmatprep.subr.bf16.mxu0 %v752
  %1889 = vmatpush1.bf16.msra.mxu0 %v751
  %1890 = vmatprep.subr.bf16.mxu0 %v748
  %1891 = vmatpush1.bf16.msra.mxu0 %v747
  %1892 = vmatprep.subr.bf16.mxu0 %v744
  %1893 = vmatpush1.bf16.msra.mxu0 %v743
  %1894 = vmatprep.subr.bf16.mxu0 0
  %1895 = vmatpush2.bf16.msra.mxu0 0
  %1896 = vmatprep.subr.bf16.mxu0 0
  %1897 = vmatpush2.bf16.msra.mxu0 0
  %1898 = vmatprep.subr.bf16.mxu0 0
  %1899 = vmatpush2.bf16.msra.mxu0 0
  %1900 = vmatprep.subr.bf16.mxu0 0
  %1901 = vmatpush2.bf16.msra.mxu0 0
  %1902 = vmatprep.subr.bf16.mxu0 0
  %1903 = vmatpush2.bf16.msra.mxu0 0
  %1904 = vmatprep.subr.bf16.mxu0 0
  %1905 = vmatpush2.bf16.msra.mxu0 0
  %1906 = vmatprep.subr.bf16.mxu0 0
  %1907 = vmatpush2.bf16.msra.mxu0 0
  %1908 = vmatprep.subr.bf16.mxu0 0
  %1909 = vmatpush2.bf16.msra.mxu0 0
  %1910 = vmatprep.mubr.bf16.mxu0 0
  %1911 = vmatmul.mubr.bf16.gmra.mxu0 %v1877
  %v1912 = vpop.f32.mrf.mxu0
  %v1913 = vadd.f32 %v630, %v1912
  %v1914 = vpop.f32.mrf.mxu0
  %v1915 = vadd.f32 %v634, %v1914
  %v1916 = vpop.f32.mrf.mxu0
  %v1917 = vpop.f32.mrf.mxu0
  %1918 = vdwg.mxu0
  %1919 = vmatprep.subr.bf16.mxu0 %v774
  %1920 = vmatpush1.bf16.msra.mxu0 %v773
  %1921 = vmatprep.subr.bf16.mxu0 %v770
  %1922 = vmatpush1.bf16.msra.mxu0 %v769
  %1923 = vmatprep.subr.bf16.mxu0 %v766
  %1924 = vmatpush1.bf16.msra.mxu0 %v765
  %1925 = vmatprep.subr.bf16.mxu0 %v762
  %1926 = vmatpush1.bf16.msra.mxu0 %v761
  %1927 = vmatprep.subr.bf16.mxu0 %v758
  %1928 = vmatpush1.bf16.msra.mxu0 %v757
  %1929 = vmatprep.subr.bf16.mxu0 %v754
  %1930 = vmatpush1.bf16.msra.mxu0 %v753
  %1931 = vmatprep.subr.bf16.mxu0 %v750
  %1932 = vmatpush1.bf16.msra.mxu0 %v749
  %1933 = vmatprep.subr.bf16.mxu0 %v746
  %1934 = vmatpush1.bf16.msra.mxu0 %v745
  %1935 = vmatprep.subr.bf16.mxu0 0
  %1936 = vmatpush2.bf16.msra.mxu0 0
  %1937 = vmatprep.subr.bf16.mxu0 0
  %1938 = vmatpush2.bf16.msra.mxu0 0
  %1939 = vmatprep.subr.bf16.mxu0 0
  %1940 = vmatpush2.bf16.msra.mxu0 0
  %1941 = vmatprep.subr.bf16.mxu0 0
  %1942 = vmatpush2.bf16.msra.mxu0 0
  %1943 = vmatprep.subr.bf16.mxu0 0
  %1944 = vmatpush2.bf16.msra.mxu0 0
  %1945 = vmatprep.subr.bf16.mxu0 0
  %1946 = vmatpush2.bf16.msra.mxu0 0
  %1947 = vmatprep.subr.bf16.mxu0 0
  %1948 = vmatpush2.bf16.msra.mxu0 0
  %1949 = vmatprep.subr.bf16.mxu0 0
  %1950 = vmatpush2.bf16.msra.mxu0 0
  %1951 = vmatprep.mubr.bf16.mxu0 0
  %1952 = vmatmul.mubr.bf16.gmra.mxu0 %v1877
  %v1953 = vpop.f32.mrf.mxu0
  %v1954 = vadd.f32 %v638, %v1953
  %v1955 = vpop.f32.mrf.mxu0
  %v1956 = vadd.f32 %v642, %v1955
  %v1957 = vpop.f32.mrf.mxu0
  %v1958 = vpop.f32.mrf.mxu0
  %1959 = vdwg.mxu0
  %v1960 = vpack.c.bf16 %v1766, %v1766
  %1961 = vmatprep.subr.bf16.mxu0 %v1014
  %1962 = vmatpush1.bf16.msra.mxu0 %v1013
  %1963 = vmatprep.subr.bf16.mxu0 %v1010
  %1964 = vmatpush1.bf16.msra.mxu0 %v1009
  %1965 = vmatprep.subr.bf16.mxu0 %v1006
  %1966 = vmatpush1.bf16.msra.mxu0 %v1005
  %1967 = vmatprep.subr.bf16.mxu0 %v1002
  %1968 = vmatpush1.bf16.msra.mxu0 %v1001
  %1969 = vmatprep.subr.bf16.mxu0 %v998
  %1970 = vmatpush1.bf16.msra.mxu0 %v997
  %1971 = vmatprep.subr.bf16.mxu0 %v994
  %1972 = vmatpush1.bf16.msra.mxu0 %v993
  %1973 = vmatprep.subr.bf16.mxu0 %v990
  %1974 = vmatpush1.bf16.msra.mxu0 %v989
  %1975 = vmatprep.subr.bf16.mxu0 %v986
  %1976 = vmatpush1.bf16.msra.mxu0 %v985
  %1977 = vmatprep.subr.bf16.mxu0 0
  %1978 = vmatpush2.bf16.msra.mxu0 0
  %1979 = vmatprep.subr.bf16.mxu0 0
  %1980 = vmatpush2.bf16.msra.mxu0 0
  %1981 = vmatprep.subr.bf16.mxu0 0
  %1982 = vmatpush2.bf16.msra.mxu0 0
  %1983 = vmatprep.subr.bf16.mxu0 0
  %1984 = vmatpush2.bf16.msra.mxu0 0
  %1985 = vmatprep.subr.bf16.mxu0 0
  %1986 = vmatpush2.bf16.msra.mxu0 0
  %1987 = vmatprep.subr.bf16.mxu0 0
  %1988 = vmatpush2.bf16.msra.mxu0 0
  %1989 = vmatprep.subr.bf16.mxu0 0
  %1990 = vmatpush2.bf16.msra.mxu0 0
  %1991 = vmatprep.subr.bf16.mxu0 0
  %1992 = vmatpush2.bf16.msra.mxu0 0
  %1993 = vmatprep.mubr.bf16.mxu0 0
  %1994 = vmatmul.mubr.bf16.gmra.mxu0 %v1960
  %v1995 = vpop.f32.mrf.mxu0
  %v1996 = vadd.f32 0.0, %v1995
  %v1997 = vpop.f32.mrf.mxu0
  %v1998 = vadd.f32 0.0, %v1997
  %v1999 = vpop.f32.mrf.mxu0
  %v2000 = vpop.f32.mrf.mxu0
  %2001 = vdwg.mxu0
  %2002 = vmatprep.subr.bf16.mxu0 %v1016
  %2003 = vmatpush1.bf16.msra.mxu0 %v1015
  %2004 = vmatprep.subr.bf16.mxu0 %v1012
  %2005 = vmatpush1.bf16.msra.mxu0 %v1011
  %2006 = vmatprep.subr.bf16.mxu0 %v1008
  %2007 = vmatpush1.bf16.msra.mxu0 %v1007
  %2008 = vmatprep.subr.bf16.mxu0 %v1004
  %2009 = vmatpush1.bf16.msra.mxu0 %v1003
  %2010 = vmatprep.subr.bf16.mxu0 %v1000
  %2011 = vmatpush1.bf16.msra.mxu0 %v999
  %2012 = vmatprep.subr.bf16.mxu0 %v996
  %2013 = vmatpush1.bf16.msra.mxu0 %v995
  %2014 = vmatprep.subr.bf16.mxu0 %v992
  %2015 = vmatpush1.bf16.msra.mxu0 %v991
  %2016 = vmatprep.subr.bf16.mxu0 %v988
  %2017 = vmatpush1.bf16.msra.mxu0 %v987
  %2018 = vmatprep.subr.bf16.mxu0 0
  %2019 = vmatpush2.bf16.msra.mxu0 0
  %2020 = vmatprep.subr.bf16.mxu0 0
  %2021 = vmatpush2.bf16.msra.mxu0 0
  %2022 = vmatprep.subr.bf16.mxu0 0
  %2023 = vmatpush2.bf16.msra.mxu0 0
  %2024 = vmatprep.subr.bf16.mxu0 0
  %2025 = vmatpush2.bf16.msra.mxu0 0
  %2026 = vmatprep.subr.bf16.mxu0 0
  %2027 = vmatpush2.bf16.msra.mxu0 0
  %2028 = vmatprep.subr.bf16.mxu0 0
  %2029 = vmatpush2.bf16.msra.mxu0 0
  %2030 = vmatprep.subr.bf16.mxu0 0
  %2031 = vmatpush2.bf16.msra.mxu0 0
  %2032 = vmatprep.subr.bf16.mxu0 0
  %2033 = vmatpush2.bf16.msra.mxu0 0
  %2034 = vmatprep.mubr.bf16.mxu0 0
  %2035 = vmatmul.mubr.bf16.gmra.mxu0 %v1960
  %v2036 = vpop.f32.mrf.mxu0
  %v2037 = vadd.f32 0.0, %v2036
  %v2038 = vpop.f32.mrf.mxu0
  %v2039 = vadd.f32 0.0, %v2038
  %v2040 = vpop.f32.mrf.mxu0
  %v2041 = vpop.f32.mrf.mxu0
  %2042 = vdwg.mxu0
  %v2043 = vadd.f32 %v1913, %v1996
  %v2044 = vadd.f32 %v1915, %v1998
  %v2045 = vadd.f32 %v1954, %v2037
  %v2046 = vadd.f32 %v1956, %v2039
  %v2047 = vxor.u32 %v2043, 2147483648
  %v2048 = vxor.u32 %v2044, 2147483648
  %v2049 = vmul.f32 %v2047, 1.442695
  %v2050 = vpow.pop %v2049
  %v2051 = vmul.f32 %v2048, 1.442695
  %v2052 = vpow.pop %v2051
  %v2053 = vadd.f32 %v2050, 1.0
  %v2054 = vadd.f32 %v2052, 1.0
  %v2055 = vrcp.pop %v2053
  %v2056 = vmul.f32 1.0, %v2055
  %v2057 = vrcp.pop %v2054
  %v2058 = vmul.f32 1.0, %v2057
  %v2059 = vtanh.pop %v2045
  %v2060 = vxor.u32 %v2046, 2147483648
  %v2061 = vmul.f32 %v2060, 1.442695
  %v2062 = vpow.pop %v2061
  %v2063 = vadd.f32 %v2062, 1.0
  %v2064 = vrcp.pop %v2063
  %v2065 = vmul.f32 1.0, %v2064
  %v2066 = vmul.f32 %v2058, %v1764
  %v2067 = vmul.f32 %v2056, %v2059
  %v2068 = vadd.f32 %v2066, %v2067
  %v2069 = vtanh.pop %v2068
  %v2070 = vmul.f32 %v2065, %v2069
  %2071 = vmatprep.subr.bf16.mxu0 %v480
  %2072 = vmatpush1.bf16.msra.mxu0 %v479
  %2073 = vmatprep.subr.bf16.mxu0 %v476
  %2074 = vmatpush1.bf16.msra.mxu0 %v475
  %2075 = vmatprep.subr.bf16.mxu0 %v472
  %2076 = vmatpush1.bf16.msra.mxu0 %v471
  %2077 = vmatprep.subr.bf16.mxu0 %v468
  %2078 = vmatpush1.bf16.msra.mxu0 %v467
  %2079 = vmatprep.subr.bf16.mxu0 %v464
  %2080 = vmatpush1.bf16.msra.mxu0 %v463
  %2081 = vmatprep.subr.bf16.mxu0 %v460
  %2082 = vmatpush1.bf16.msra.mxu0 %v459
  %2083 = vmatprep.subr.bf16.mxu0 %v456
  %2084 = vmatpush1.bf16.msra.mxu0 %v455
  %2085 = vmatprep.subr.bf16.mxu0 %v452
  %2086 = vmatpush1.bf16.msra.mxu0 %v451
  %2087 = vmatprep.subr.bf16.mxu0 0
  %2088 = vmatpush2.bf16.msra.mxu0 0
  %2089 = vmatprep.subr.bf16.mxu0 0
  %2090 = vmatpush2.bf16.msra.mxu0 0
  %2091 = vmatprep.subr.bf16.mxu0 0
  %2092 = vmatpush2.bf16.msra.mxu0 0
  %2093 = vmatprep.subr.bf16.mxu0 0
  %2094 = vmatpush2.bf16.msra.mxu0 0
  %2095 = vmatprep.subr.bf16.mxu0 0
  %2096 = vmatpush2.bf16.msra.mxu0 0
  %2097 = vmatprep.subr.bf16.mxu0 0
  %2098 = vmatpush2.bf16.msra.mxu0 0
  %2099 = vmatprep.subr.bf16.mxu0 0
  %2100 = vmatpush2.bf16.msra.mxu0 0
  %2101 = vmatprep.subr.bf16.mxu0 0
  %2102 = vmatpush2.bf16.msra.mxu0 0
  %2103 = vmatprep.mubr.bf16.mxu0 0
  %2104 = vmatmul.mubr.bf16.gmra.mxu0 %v1877
  %v2105 = vpop.f32.mrf.mxu0
  %v2106 = vadd.f32 0.0, %v2105
  %v2107 = vpop.f32.mrf.mxu0
  %v2108 = vadd.f32 0.0, %v2107
  %v2109 = vpop.f32.mrf.mxu0
  %v2110 = vpop.f32.mrf.mxu0
  %2111 = vdwg.mxu0
  %2112 = vmatprep.subr.bf16.mxu0 %v482
  %2113 = vmatpush1.bf16.msra.mxu0 %v481
  %2114 = vmatprep.subr.bf16.mxu0 %v478
  %2115 = vmatpush1.bf16.msra.mxu0 %v477
  %2116 = vmatprep.subr.bf16.mxu0 %v474
  %2117 = vmatpush1.bf16.msra.mxu0 %v473
  %2118 = vmatprep.subr.bf16.mxu0 %v470
  %2119 = vmatpush1.bf16.msra.mxu0 %v469
  %2120 = vmatprep.subr.bf16.mxu0 %v466
  %2121 = vmatpush1.bf16.msra.mxu0 %v465
  %2122 = vmatprep.subr.bf16.mxu0 %v462
  %2123 = vmatpush1.bf16.msra.mxu0 %v461
  %2124 = vmatprep.subr.bf16.mxu0 %v458
  %2125 = vmatpush1.bf16.msra.mxu0 %v457
  %2126 = vmatprep.subr.bf16.mxu0 %v454
  %2127 = vmatpush1.bf16.msra.mxu0 %v453
  %2128 = vmatprep.subr.bf16.mxu0 0
  %2129 = vmatpush2.bf16.msra.mxu0 0
  %2130 = vmatprep.subr.bf16.mxu0 0
  %2131 = vmatpush2.bf16.msra.mxu0 0
  %2132 = vmatprep.subr.bf16.mxu0 0
  %2133 = vmatpush2.bf16.msra.mxu0 0
  %2134 = vmatprep.subr.bf16.mxu0 0
  %2135 = vmatpush2.bf16.msra.mxu0 0
  %2136 = vmatprep.subr.bf16.mxu0 0
  %2137 = vmatpush2.bf16.msra.mxu0 0
  %2138 = vmatprep.subr.bf16.mxu0 0
  %2139 = vmatpush2.bf16.msra.mxu0 0
  %2140 = vmatprep.subr.bf16.mxu0 0
  %2141 = vmatpush2.bf16.msra.mxu0 0
  %2142 = vmatprep.subr.bf16.mxu0 0
  %2143 = vmatpush2.bf16.msra.mxu0 0
  %2144 = vmatprep.mubr.bf16.mxu0 0
  %2145 = vmatmul.mubr.bf16.gmra.mxu0 %v1877
  %v2146 = vpop.f32.mrf.mxu0
  %v2147 = vadd.f32 0.0, %v2146
  %v2148 = vpop.f32.mrf.mxu0
  %v2149 = vadd.f32 0.0, %v2148
  %v2150 = vpop.f32.mrf.mxu0
  %v2151 = vpop.f32.mrf.mxu0
  %2152 = vdwg.mxu0
  %v2153 = vadd.f32 %v264, %v2106
  %v2154 = vadd.f32 %v266, %v2108
  %v2155 = vadd.f32 %v337, %v2147
  %v2156 = vadd.f32 %v339, %v2149
  %v2157 = vxor.u32 %v2153, 2147483648
  %v2158 = vxor.u32 %v2154, 2147483648
  %v2159 = vmul.f32 %v2157, 1.442695
  %v2160 = vpow.pop %v2159
  %v2161 = vmul.f32 %v2158, 1.442695
  %v2162 = vpow.pop %v2161
  %v2163 = vadd.f32 %v2160, 1.0
  %v2164 = vadd.f32 %v2162, 1.0
  %v2165 = vrcp.pop %v2163
  %v2166 = vmul.f32 1.0, %v2165
  %v2167 = vrcp.pop %v2164
  %v2168 = vmul.f32 1.0, %v2167
  %v2169 = vtanh.pop %v2155
  %v2170 = vxor.u32 %v2156, 2147483648
  %v2171 = vmul.f32 %v2170, 1.442695
  %v2172 = vpow.pop %v2171
  %v2173 = vadd.f32 %v2172, 1.0
  %v2174 = vrcp.pop %v2173
  %v2175 = vmul.f32 1.0, %v2174
  %v2176 = vmul.f32 %v2168, %v1874
  %v2177 = vmul.f32 %v2166, %v2169
  %v2178 = vadd.f32 %v2176, %v2177
  %v2179 = vtanh.pop %v2178
  %v2180 = vmul.f32 %v2175, %v2179
  %v2181 = vpack.c.bf16 %v2180, %v2180
  %2182 = vmatprep.subr.bf16.mxu0 %v772
  %2183 = vmatpush1.bf16.msra.mxu0 %v771
  %2184 = vmatprep.subr.bf16.mxu0 %v768
  %2185 = vmatpush1.bf16.msra.mxu0 %v767
  %2186 = vmatprep.subr.bf16.mxu0 %v764
  %2187 = vmatpush1.bf16.msra.mxu0 %v763
  %2188 = vmatprep.subr.bf16.mxu0 %v760
  %2189 = vmatpush1.bf16.msra.mxu0 %v759
  %2190 = vmatprep.subr.bf16.mxu0 %v756
  %2191 = vmatpush1.bf16.msra.mxu0 %v755
  %2192 = vmatprep.subr.bf16.mxu0 %v752
  %2193 = vmatpush1.bf16.msra.mxu0 %v751
  %2194 = vmatprep.subr.bf16.mxu0 %v748
  %2195 = vmatpush1.bf16.msra.mxu0 %v747
  %2196 = vmatprep.subr.bf16.mxu0 %v744
  %2197 = vmatpush1.bf16.msra.mxu0 %v743
  %2198 = vmatprep.subr.bf16.mxu0 0
  %2199 = vmatpush2.bf16.msra.mxu0 0
  %2200 = vmatprep.subr.bf16.mxu0 0
  %2201 = vmatpush2.bf16.msra.mxu0 0
  %2202 = vmatprep.subr.bf16.mxu0 0
  %2203 = vmatpush2.bf16.msra.mxu0 0
  %2204 = vmatprep.subr.bf16.mxu0 0
  %2205 = vmatpush2.bf16.msra.mxu0 0
  %2206 = vmatprep.subr.bf16.mxu0 0
  %2207 = vmatpush2.bf16.msra.mxu0 0
  %2208 = vmatprep.subr.bf16.mxu0 0
  %2209 = vmatpush2.bf16.msra.mxu0 0
  %2210 = vmatprep.subr.bf16.mxu0 0
  %2211 = vmatpush2.bf16.msra.mxu0 0
  %2212 = vmatprep.subr.bf16.mxu0 0
  %2213 = vmatpush2.bf16.msra.mxu0 0
  %2214 = vmatprep.mubr.bf16.mxu0 0
  %2215 = vmatmul.mubr.bf16.gmra.mxu0 %v2181
  %v2216 = vpop.f32.mrf.mxu0
  %v2217 = vadd.f32 %v630, %v2216
  %v2218 = vpop.f32.mrf.mxu0
  %v2219 = vadd.f32 %v634, %v2218
  %v2220 = vpop.f32.mrf.mxu0
  %v2221 = vpop.f32.mrf.mxu0
  %2222 = vdwg.mxu0
  %2223 = vmatprep.subr.bf16.mxu0 %v774
  %2224 = vmatpush1.bf16.msra.mxu0 %v773
  %2225 = vmatprep.subr.bf16.mxu0 %v770
  %2226 = vmatpush1.bf16.msra.mxu0 %v769
  %2227 = vmatprep.subr.bf16.mxu0 %v766
  %2228 = vmatpush1.bf16.msra.mxu0 %v765
  %2229 = vmatprep.subr.bf16.mxu0 %v762
  %2230 = vmatpush1.bf16.msra.mxu0 %v761
  %2231 = vmatprep.subr.bf16.mxu0 %v758
  %2232 = vmatpush1.bf16.msra.mxu0 %v757
  %2233 = vmatprep.subr.bf16.mxu0 %v754
  %2234 = vmatpush1.bf16.msra.mxu0 %v753
  %2235 = vmatprep.subr.bf16.mxu0 %v750
  %2236 = vmatpush1.bf16.msra.mxu0 %v749
  %2237 = vmatprep.subr.bf16.mxu0 %v746
  %2238 = vmatpush1.bf16.msra.mxu0 %v745
  %2239 = vmatprep.subr.bf16.mxu0 0
  %2240 = vmatpush2.bf16.msra.mxu0 0
  %2241 = vmatprep.subr.bf16.mxu0 0
  %2242 = vmatpush2.bf16.msra.mxu0 0
  %2243 = vmatprep.subr.bf16.mxu0 0
  %2244 = vmatpush2.bf16.msra.mxu0 0
  %2245 = vmatprep.subr.bf16.mxu0 0
  %2246 = vmatpush2.bf16.msra.mxu0 0
  %2247 = vmatprep.subr.bf16.mxu0 0
  %2248 = vmatpush2.bf16.msra.mxu0 0
  %2249 = vmatprep.subr.bf16.mxu0 0
  %2250 = vmatpush2.bf16.msra.mxu0 0
  %2251 = vmatprep.subr.bf16.mxu0 0
  %2252 = vmatpush2.bf16.msra.mxu0 0
  %2253 = vmatprep.subr.bf16.mxu0 0
  %2254 = vmatpush2.bf16.msra.mxu0 0
  %2255 = vmatprep.mubr.bf16.mxu0 0
  %2256 = vmatmul.mubr.bf16.gmra.mxu0 %v2181
  %v2257 = vpop.f32.mrf.mxu0
  %v2258 = vadd.f32 %v638, %v2257
  %v2259 = vpop.f32.mrf.mxu0
  %v2260 = vadd.f32 %v642, %v2259
  %v2261 = vpop.f32.mrf.mxu0
  %v2262 = vpop.f32.mrf.mxu0
  %2263 = vdwg.mxu0
  %v2264 = vpack.c.bf16 %v2070, %v2070
  %2265 = vmatprep.subr.bf16.mxu0 %v1014
  %2266 = vmatpush1.bf16.msra.mxu0 %v1013
  %2267 = vmatprep.subr.bf16.mxu0 %v1010
  %2268 = vmatpush1.bf16.msra.mxu0 %v1009
  %2269 = vmatprep.subr.bf16.mxu0 %v1006
  %2270 = vmatpush1.bf16.msra.mxu0 %v1005
  %2271 = vmatprep.subr.bf16.mxu0 %v1002
  %2272 = vmatpush1.bf16.msra.mxu0 %v1001
  %2273 = vmatprep.subr.bf16.mxu0 %v998
  %2274 = vmatpush1.bf16.msra.mxu0 %v997
  %2275 = vmatprep.subr.bf16.mxu0 %v994
  %2276 = vmatpush1.bf16.msra.mxu0 %v993
  %2277 = vmatprep.subr.bf16.mxu0 %v990
  %2278 = vmatpush1.bf16.msra.mxu0 %v989
  %2279 = vmatprep.subr.bf16.mxu0 %v986
  %2280 = vmatpush1.bf16.msra.mxu0 %v985
  %2281 = vmatprep.subr.bf16.mxu0 0
  %2282 = vmatpush2.bf16.msra.mxu0 0
  %2283 = vmatprep.subr.bf16.mxu0 0
  %2284 = vmatpush2.bf16.msra.mxu0 0
  %2285 = vmatprep.subr.bf16.mxu0 0
  %2286 = vmatpush2.bf16.msra.mxu0 0
  %2287 = vmatprep.subr.bf16.mxu0 0
  %2288 = vmatpush2.bf16.msra.mxu0 0
  %2289 = vmatprep.subr.bf16.mxu0 0
  %2290 = vmatpush2.bf16.msra.mxu0 0
  %2291 = vmatprep.subr.bf16.mxu0 0
  %2292 = vmatpush2.bf16.msra.mxu0 0
  %2293 = vmatprep.subr.bf16.mxu0 0
  %2294 = vmatpush2.bf16.msra.mxu0 0
  %2295 = vmatprep.subr.bf16.mxu0 0
  %2296 = vmatpush2.bf16.msra.mxu0 0
  %2297 = vmatprep.mubr.bf16.mxu0 0
  %2298 = vmatmul.mubr.bf16.gmra.mxu0 %v2264
  %v2299 = vpop.f32.mrf.mxu0
  %v2300 = vadd.f32 0.0, %v2299
  %v2301 = vpop.f32.mrf.mxu0
  %v2302 = vadd.f32 0.0, %v2301
  %v2303 = vpop.f32.mrf.mxu0
  %v2304 = vpop.f32.mrf.mxu0
  %2305 = vdwg.mxu0
  %2306 = vmatprep.subr.bf16.mxu0 %v1016
  %2307 = vmatpush1.bf16.msra.mxu0 %v1015
  %2308 = vmatprep.subr.bf16.mxu0 %v1012
  %2309 = vmatpush1.bf16.msra.mxu0 %v1011
  %2310 = vmatprep.subr.bf16.mxu0 %v1008
  %2311 = vmatpush1.bf16.msra.mxu0 %v1007
  %2312 = vmatprep.subr.bf16.mxu0 %v1004
  %2313 = vmatpush1.bf16.msra.mxu0 %v1003
  %2314 = vmatprep.subr.bf16.mxu0 %v1000
  %2315 = vmatpush1.bf16.msra.mxu0 %v999
  %2316 = vmatprep.subr.bf16.mxu0 %v996
  %2317 = vmatpush1.bf16.msra.mxu0 %v995
  %2318 = vmatprep.subr.bf16.mxu0 %v992
  %2319 = vmatpush1.bf16.msra.mxu0 %v991
  %2320 = vmatprep.subr.bf16.mxu0 %v988
  %2321 = vmatpush1.bf16.msra.mxu0 %v987
  %2322 = vmatprep.subr.bf16.mxu0 0
  %2323 = vmatpush2.bf16.msra.mxu0 0
  %2324 = vmatprep.subr.bf16.mxu0 0
  %2325 = vmatpush2.bf16.msra.mxu0 0
  %2326 = vmatprep.subr.bf16.mxu0 0
  %2327 = vmatpush2.bf16.msra.mxu0 0
  %2328 = vmatprep.subr.bf16.mxu0 0
  %2329 = vmatpush2.bf16.msra.mxu0 0
  %2330 = vmatprep.subr.bf16.mxu0 0
  %2331 = vmatpush2.bf16.msra.mxu0 0
  %2332 = vmatprep.subr.bf16.mxu0 0
  %2333 = vmatpush2.bf16.msra.mxu0 0
  %2334 = vmatprep.subr.bf16.mxu0 0
  %2335 = vmatpush2.bf16.msra.mxu0 0
  %2336 = vmatprep.subr.bf16.mxu0 0
  %2337 = vmatpush2.bf16.msra.mxu0 0
  %2338 = vmatprep.mubr.bf16.mxu0 0
  %2339 = vmatmul.mubr.bf16.gmra.mxu0 %v2264
  %v2340 = vpop.f32.mrf.mxu0
  %v2341 = vadd.f32 0.0, %v2340
  %v2342 = vpop.f32.mrf.mxu0
  %v2343 = vadd.f32 0.0, %v2342
  %v2344 = vpop.f32.mrf.mxu0
  %v2345 = vpop.f32.mrf.mxu0
  %2346 = vdwg.mxu0
  %v2347 = vadd.f32 %v2217, %v2300
  %v2348 = vadd.f32 %v2219, %v2302
  %v2349 = vadd.f32 %v2258, %v2341
  %v2350 = vadd.f32 %v2260, %v2343
  %v2351 = vxor.u32 %v2347, 2147483648
  %v2352 = vxor.u32 %v2348, 2147483648
  %v2353 = vmul.f32 %v2351, 1.442695
  %v2354 = vpow.pop %v2353
  %v2355 = vmul.f32 %v2352, 1.442695
  %v2356 = vpow.pop %v2355
  %v2357 = vadd.f32 %v2354, 1.0
  %v2358 = vadd.f32 %v2356, 1.0
  %v2359 = vrcp.pop %v2357
  %v2360 = vmul.f32 1.0, %v2359
  %v2361 = vrcp.pop %v2358
  %v2362 = vmul.f32 1.0, %v2361
  %v2363 = vtanh.pop %v2349
  %v2364 = vxor.u32 %v2350, 2147483648
  %v2365 = vmul.f32 %v2364, 1.442695
  %v2366 = vpow.pop %v2365
  %v2367 = vadd.f32 %v2366, 1.0
  %v2368 = vrcp.pop %v2367
  %v2369 = vmul.f32 1.0, %v2368
  %v2370 = vmul.f32 %v2362, %v2068
  %v2371 = vmul.f32 %v2360, %v2363
  %v2372 = vadd.f32 %v2370, %v2371
  %v2373 = vtanh.pop %v2372
  %v2374 = vmul.f32 %v2369, %v2373
  %2375 = vmatprep.subr.bf16.mxu0 %v480
  %2376 = vmatpush1.bf16.msra.mxu0 %v479
  %2377 = vmatprep.subr.bf16.mxu0 %v476
  %2378 = vmatpush1.bf16.msra.mxu0 %v475
  %2379 = vmatprep.subr.bf16.mxu0 %v472
  %2380 = vmatpush1.bf16.msra.mxu0 %v471
  %2381 = vmatprep.subr.bf16.mxu0 %v468
  %2382 = vmatpush1.bf16.msra.mxu0 %v467
  %2383 = vmatprep.subr.bf16.mxu0 %v464
  %2384 = vmatpush1.bf16.msra.mxu0 %v463
  %2385 = vmatprep.subr.bf16.mxu0 %v460
  %2386 = vmatpush1.bf16.msra.mxu0 %v459
  %2387 = vmatprep.subr.bf16.mxu0 %v456
  %2388 = vmatpush1.bf16.msra.mxu0 %v455
  %2389 = vmatprep.subr.bf16.mxu0 %v452
  %2390 = vmatpush1.bf16.msra.mxu0 %v451
  %2391 = vmatprep.subr.bf16.mxu0 0
  %2392 = vmatpush2.bf16.msra.mxu0 0
  %2393 = vmatprep.subr.bf16.mxu0 0
  %2394 = vmatpush2.bf16.msra.mxu0 0
  %2395 = vmatprep.subr.bf16.mxu0 0
  %2396 = vmatpush2.bf16.msra.mxu0 0
  %2397 = vmatprep.subr.bf16.mxu0 0
  %2398 = vmatpush2.bf16.msra.mxu0 0
  %2399 = vmatprep.subr.bf16.mxu0 0
  %2400 = vmatpush2.bf16.msra.mxu0 0
  %2401 = vmatprep.subr.bf16.mxu0 0
  %2402 = vmatpush2.bf16.msra.mxu0 0
  %2403 = vmatprep.subr.bf16.mxu0 0
  %2404 = vmatpush2.bf16.msra.mxu0 0
  %2405 = vmatprep.subr.bf16.mxu0 0
  %2406 = vmatpush2.bf16.msra.mxu0 0
  %2407 = vmatprep.mubr.bf16.mxu0 0
  %2408 = vmatmul.mubr.bf16.gmra.mxu0 %v2181
  %v2409 = vpop.f32.mrf.mxu0
  %v2410 = vadd.f32 0.0, %v2409
  %v2411 = vpop.f32.mrf.mxu0
  %v2412 = vadd.f32 0.0, %v2411
  %v2413 = vpop.f32.mrf.mxu0
  %v2414 = vpop.f32.mrf.mxu0
  %2415 = vdwg.mxu0
  %2416 = vmatprep.subr.bf16.mxu0 %v482
  %2417 = vmatpush1.bf16.msra.mxu0 %v481
  %2418 = vmatprep.subr.bf16.mxu0 %v478
  %2419 = vmatpush1.bf16.msra.mxu0 %v477
  %2420 = vmatprep.subr.bf16.mxu0 %v474
  %2421 = vmatpush1.bf16.msra.mxu0 %v473
  %2422 = vmatprep.subr.bf16.mxu0 %v470
  %2423 = vmatpush1.bf16.msra.mxu0 %v469
  %2424 = vmatprep.subr.bf16.mxu0 %v466
  %2425 = vmatpush1.bf16.msra.mxu0 %v465
  %2426 = vmatprep.subr.bf16.mxu0 %v462
  %2427 = vmatpush1.bf16.msra.mxu0 %v461
  %2428 = vmatprep.subr.bf16.mxu0 %v458
  %2429 = vmatpush1.bf16.msra.mxu0 %v457
  %2430 = vmatprep.subr.bf16.mxu0 %v454
  %2431 = vmatpush1.bf16.msra.mxu0 %v453
  %2432 = vmatprep.subr.bf16.mxu0 0
  %2433 = vmatpush2.bf16.msra.mxu0 0
  %2434 = vmatprep.subr.bf16.mxu0 0
  %2435 = vmatpush2.bf16.msra.mxu0 0
  %2436 = vmatprep.subr.bf16.mxu0 0
  %2437 = vmatpush2.bf16.msra.mxu0 0
  %2438 = vmatprep.subr.bf16.mxu0 0
  %2439 = vmatpush2.bf16.msra.mxu0 0
  %2440 = vmatprep.subr.bf16.mxu0 0
  %2441 = vmatpush2.bf16.msra.mxu0 0
  %2442 = vmatprep.subr.bf16.mxu0 0
  %2443 = vmatpush2.bf16.msra.mxu0 0
  %2444 = vmatprep.subr.bf16.mxu0 0
  %2445 = vmatpush2.bf16.msra.mxu0 0
  %2446 = vmatprep.subr.bf16.mxu0 0
  %2447 = vmatpush2.bf16.msra.mxu0 0
  %2448 = vmatprep.mubr.bf16.mxu0 0
  %2449 = vmatmul.mubr.bf16.gmra.mxu0 %v2181
  %v2450 = vpop.f32.mrf.mxu0
  %v2451 = vadd.f32 0.0, %v2450
  %v2452 = vpop.f32.mrf.mxu0
  %v2453 = vadd.f32 0.0, %v2452
  %v2454 = vpop.f32.mrf.mxu0
  %v2455 = vpop.f32.mrf.mxu0
  %2456 = vdwg.mxu0
  %v2457 = vadd.f32 %v268, %v2410
  %v2458 = vadd.f32 %v270, %v2412
  %v2459 = vadd.f32 %v341, %v2451
  %v2460 = vadd.f32 %v343, %v2453
  %v2461 = vxor.u32 %v2457, 2147483648
  %v2462 = vxor.u32 %v2458, 2147483648
  %v2463 = vmul.f32 %v2461, 1.442695
  %v2464 = vpow.pop %v2463
  %v2465 = vmul.f32 %v2462, 1.442695
  %v2466 = vpow.pop %v2465
  %v2467 = vadd.f32 %v2464, 1.0
  %v2468 = vadd.f32 %v2466, 1.0
  %v2469 = vrcp.pop %v2467
  %v2470 = vmul.f32 1.0, %v2469
  %v2471 = vrcp.pop %v2468
  %v2472 = vmul.f32 1.0, %v2471
  %v2473 = vtanh.pop %v2459
  %v2474 = vxor.u32 %v2460, 2147483648
  %v2475 = vmul.f32 %v2474, 1.442695
  %v2476 = vpow.pop %v2475
  %v2477 = vadd.f32 %v2476, 1.0
  %v2478 = vrcp.pop %v2477
  %v2479 = vmul.f32 1.0, %v2478
  %v2480 = vmul.f32 %v2472, %v2178
  %v2481 = vmul.f32 %v2470, %v2473
  %v2482 = vadd.f32 %v2480, %v2481
  %v2483 = vtanh.pop %v2482
  %v2484 = vmul.f32 %v2479, %v2483
  %v2485 = vpack.c.bf16 %v2484, %v2484
  %2486 = vmatprep.subr.bf16.mxu0 %v772
  %2487 = vmatpush1.bf16.msra.mxu0 %v771
  %2488 = vmatprep.subr.bf16.mxu0 %v768
  %2489 = vmatpush1.bf16.msra.mxu0 %v767
  %2490 = vmatprep.subr.bf16.mxu0 %v764
  %2491 = vmatpush1.bf16.msra.mxu0 %v763
  %2492 = vmatprep.subr.bf16.mxu0 %v760
  %2493 = vmatpush1.bf16.msra.mxu0 %v759
  %2494 = vmatprep.subr.bf16.mxu0 %v756
  %2495 = vmatpush1.bf16.msra.mxu0 %v755
  %2496 = vmatprep.subr.bf16.mxu0 %v752
  %2497 = vmatpush1.bf16.msra.mxu0 %v751
  %2498 = vmatprep.subr.bf16.mxu0 %v748
  %2499 = vmatpush1.bf16.msra.mxu0 %v747
  %2500 = vmatprep.subr.bf16.mxu0 %v744
  %2501 = vmatpush1.bf16.msra.mxu0 %v743
  %2502 = vmatprep.subr.bf16.mxu0 0
  %2503 = vmatpush2.bf16.msra.mxu0 0
  %2504 = vmatprep.subr.bf16.mxu0 0
  %2505 = vmatpush2.bf16.msra.mxu0 0
  %2506 = vmatprep.subr.bf16.mxu0 0
  %2507 = vmatpush2.bf16.msra.mxu0 0
  %2508 = vmatprep.subr.bf16.mxu0 0
  %2509 = vmatpush2.bf16.msra.mxu0 0
  %2510 = vmatprep.subr.bf16.mxu0 0
  %2511 = vmatpush2.bf16.msra.mxu0 0
  %2512 = vmatprep.subr.bf16.mxu0 0
  %2513 = vmatpush2.bf16.msra.mxu0 0
  %2514 = vmatprep.subr.bf16.mxu0 0
  %2515 = vmatpush2.bf16.msra.mxu0 0
  %2516 = vmatprep.subr.bf16.mxu0 0
  %2517 = vmatpush2.bf16.msra.mxu0 0
  %2518 = vmatprep.mubr.bf16.mxu0 0
  %2519 = vmatmul.mubr.bf16.gmra.mxu0 %v2485
  %v2520 = vpop.f32.mrf.mxu0
  %v2521 = vadd.f32 %v630, %v2520
  %v2522 = vpop.f32.mrf.mxu0
  %v2523 = vadd.f32 %v634, %v2522
  %v2524 = vpop.f32.mrf.mxu0
  %v2525 = vpop.f32.mrf.mxu0
  %2526 = vdwg.mxu0
  %2527 = vmatprep.subr.bf16.mxu0 %v774
  %2528 = vmatpush1.bf16.msra.mxu0 %v773
  %2529 = vmatprep.subr.bf16.mxu0 %v770
  %2530 = vmatpush1.bf16.msra.mxu0 %v769
  %2531 = vmatprep.subr.bf16.mxu0 %v766
  %2532 = vmatpush1.bf16.msra.mxu0 %v765
  %2533 = vmatprep.subr.bf16.mxu0 %v762
  %2534 = vmatpush1.bf16.msra.mxu0 %v761
  %2535 = vmatprep.subr.bf16.mxu0 %v758
  %2536 = vmatpush1.bf16.msra.mxu0 %v757
  %2537 = vmatprep.subr.bf16.mxu0 %v754
  %2538 = vmatpush1.bf16.msra.mxu0 %v753
  %2539 = vmatprep.subr.bf16.mxu0 %v750
  %2540 = vmatpush1.bf16.msra.mxu0 %v749
  %2541 = vmatprep.subr.bf16.mxu0 %v746
  %2542 = vmatpush1.bf16.msra.mxu0 %v745
  %2543 = vmatprep.subr.bf16.mxu0 0
  %2544 = vmatpush2.bf16.msra.mxu0 0
  %2545 = vmatprep.subr.bf16.mxu0 0
  %2546 = vmatpush2.bf16.msra.mxu0 0
  %2547 = vmatprep.subr.bf16.mxu0 0
  %2548 = vmatpush2.bf16.msra.mxu0 0
  %2549 = vmatprep.subr.bf16.mxu0 0
  %2550 = vmatpush2.bf16.msra.mxu0 0
  %2551 = vmatprep.subr.bf16.mxu0 0
  %2552 = vmatpush2.bf16.msra.mxu0 0
  %2553 = vmatprep.subr.bf16.mxu0 0
  %2554 = vmatpush2.bf16.msra.mxu0 0
  %2555 = vmatprep.subr.bf16.mxu0 0
  %2556 = vmatpush2.bf16.msra.mxu0 0
  %2557 = vmatprep.subr.bf16.mxu0 0
  %2558 = vmatpush2.bf16.msra.mxu0 0
  %2559 = vmatprep.mubr.bf16.mxu0 0
  %2560 = vmatmul.mubr.bf16.gmra.mxu0 %v2485
  %v2561 = vpop.f32.mrf.mxu0
  %v2562 = vadd.f32 %v638, %v2561
  %v2563 = vpop.f32.mrf.mxu0
  %v2564 = vadd.f32 %v642, %v2563
  %v2565 = vpop.f32.mrf.mxu0
  %v2566 = vpop.f32.mrf.mxu0
  %2567 = vdwg.mxu0
  %v2568 = vpack.c.bf16 %v2374, %v2374
  %2569 = vmatprep.subr.bf16.mxu0 %v1014
  %2570 = vmatpush1.bf16.msra.mxu0 %v1013
  %2571 = vmatprep.subr.bf16.mxu0 %v1010
  %2572 = vmatpush1.bf16.msra.mxu0 %v1009
  %2573 = vmatprep.subr.bf16.mxu0 %v1006
  %2574 = vmatpush1.bf16.msra.mxu0 %v1005
  %2575 = vmatprep.subr.bf16.mxu0 %v1002
  %2576 = vmatpush1.bf16.msra.mxu0 %v1001
  %2577 = vmatprep.subr.bf16.mxu0 %v998
  %2578 = vmatpush1.bf16.msra.mxu0 %v997
  %2579 = vmatprep.subr.bf16.mxu0 %v994
  %2580 = vmatpush1.bf16.msra.mxu0 %v993
  %2581 = vmatprep.subr.bf16.mxu0 %v990
  %2582 = vmatpush1.bf16.msra.mxu0 %v989
  %2583 = vmatprep.subr.bf16.mxu0 %v986
  %2584 = vmatpush1.bf16.msra.mxu0 %v985
  %2585 = vmatprep.subr.bf16.mxu0 0
  %2586 = vmatpush2.bf16.msra.mxu0 0
  %2587 = vmatprep.subr.bf16.mxu0 0
  %2588 = vmatpush2.bf16.msra.mxu0 0
  %2589 = vmatprep.subr.bf16.mxu0 0
  %2590 = vmatpush2.bf16.msra.mxu0 0
  %2591 = vmatprep.subr.bf16.mxu0 0
  %2592 = vmatpush2.bf16.msra.mxu0 0
  %2593 = vmatprep.subr.bf16.mxu0 0
  %2594 = vmatpush2.bf16.msra.mxu0 0
  %2595 = vmatprep.subr.bf16.mxu0 0
  %2596 = vmatpush2.bf16.msra.mxu0 0
  %2597 = vmatprep.subr.bf16.mxu0 0
  %2598 = vmatpush2.bf16.msra.mxu0 0
  %2599 = vmatprep.subr.bf16.mxu0 0
  %2600 = vmatpush2.bf16.msra.mxu0 0
  %2601 = vmatprep.mubr.bf16.mxu0 0
  %2602 = vmatmul.mubr.bf16.gmra.mxu0 %v2568
  %v2603 = vpop.f32.mrf.mxu0
  %v2604 = vadd.f32 0.0, %v2603
  %v2605 = vpop.f32.mrf.mxu0
  %v2606 = vadd.f32 0.0, %v2605
  %v2607 = vpop.f32.mrf.mxu0
  %v2608 = vpop.f32.mrf.mxu0
  %2609 = vdwg.mxu0
  %2610 = vmatprep.subr.bf16.mxu0 %v1016
  %2611 = vmatpush1.bf16.msra.mxu0 %v1015
  %2612 = vmatprep.subr.bf16.mxu0 %v1012
  %2613 = vmatpush1.bf16.msra.mxu0 %v1011
  %2614 = vmatprep.subr.bf16.mxu0 %v1008
  %2615 = vmatpush1.bf16.msra.mxu0 %v1007
  %2616 = vmatprep.subr.bf16.mxu0 %v1004
  %2617 = vmatpush1.bf16.msra.mxu0 %v1003
  %2618 = vmatprep.subr.bf16.mxu0 %v1000
  %2619 = vmatpush1.bf16.msra.mxu0 %v999
  %2620 = vmatprep.subr.bf16.mxu0 %v996
  %2621 = vmatpush1.bf16.msra.mxu0 %v995
  %2622 = vmatprep.subr.bf16.mxu0 %v992
  %2623 = vmatpush1.bf16.msra.mxu0 %v991
  %2624 = vmatprep.subr.bf16.mxu0 %v988
  %2625 = vmatpush1.bf16.msra.mxu0 %v987
  %2626 = vmatprep.subr.bf16.mxu0 0
  %2627 = vmatpush2.bf16.msra.mxu0 0
  %2628 = vmatprep.subr.bf16.mxu0 0
  %2629 = vmatpush2.bf16.msra.mxu0 0
  %2630 = vmatprep.subr.bf16.mxu0 0
  %2631 = vmatpush2.bf16.msra.mxu0 0
  %2632 = vmatprep.subr.bf16.mxu0 0
  %2633 = vmatpush2.bf16.msra.mxu0 0
  %2634 = vmatprep.subr.bf16.mxu0 0
  %2635 = vmatpush2.bf16.msra.mxu0 0
  %2636 = vmatprep.subr.bf16.mxu0 0
  %2637 = vmatpush2.bf16.msra.mxu0 0
  %2638 = vmatprep.subr.bf16.mxu0 0
  %2639 = vmatpush2.bf16.msra.mxu0 0
  %2640 = vmatprep.subr.bf16.mxu0 0
  %2641 = vmatpush2.bf16.msra.mxu0 0
  %2642 = vmatprep.mubr.bf16.mxu0 0
  %2643 = vmatmul.mubr.bf16.gmra.mxu0 %v2568
  %v2644 = vpop.f32.mrf.mxu0
  %v2645 = vadd.f32 0.0, %v2644
  %v2646 = vpop.f32.mrf.mxu0
  %v2647 = vadd.f32 0.0, %v2646
  %v2648 = vpop.f32.mrf.mxu0
  %v2649 = vpop.f32.mrf.mxu0
  %2650 = vdwg.mxu0
  %v2651 = vadd.f32 %v2521, %v2604
  %v2652 = vadd.f32 %v2523, %v2606
  %v2653 = vadd.f32 %v2562, %v2645
  %v2654 = vadd.f32 %v2564, %v2647
  %v2655 = vxor.u32 %v2651, 2147483648
  %v2656 = vxor.u32 %v2652, 2147483648
  %v2657 = vmul.f32 %v2655, 1.442695
  %v2658 = vpow.pop %v2657
  %v2659 = vmul.f32 %v2656, 1.442695
  %v2660 = vpow.pop %v2659
  %v2661 = vadd.f32 %v2658, 1.0
  %v2662 = vadd.f32 %v2660, 1.0
  %v2663 = vrcp.pop %v2661
  %v2664 = vmul.f32 1.0, %v2663
  %v2665 = vrcp.pop %v2662
  %v2666 = vmul.f32 1.0, %v2665
  %v2667 = vtanh.pop %v2653
  %v2668 = vxor.u32 %v2654, 2147483648
  %v2669 = vmul.f32 %v2668, 1.442695
  %v2670 = vpow.pop %v2669
  %v2671 = vadd.f32 %v2670, 1.0
  %v2672 = vrcp.pop %v2671
  %v2673 = vmul.f32 1.0, %v2672
  %v2674 = vmul.f32 %v2666, %v2372
  %v2675 = vmul.f32 %v2664, %v2667
  %v2676 = vadd.f32 %v2674, %v2675
  %v2677 = vtanh.pop %v2676
  %v2678 = vmul.f32 %v2673, %v2677
  %2679 = vmatprep.subr.bf16.mxu0 %v480
  %2680 = vmatpush1.bf16.msra.mxu0 %v479
  %2681 = vmatprep.subr.bf16.mxu0 %v476
  %2682 = vmatpush1.bf16.msra.mxu0 %v475
  %2683 = vmatprep.subr.bf16.mxu0 %v472
  %2684 = vmatpush1.bf16.msra.mxu0 %v471
  %2685 = vmatprep.subr.bf16.mxu0 %v468
  %2686 = vmatpush1.bf16.msra.mxu0 %v467
  %2687 = vmatprep.subr.bf16.mxu0 %v464
  %2688 = vmatpush1.bf16.msra.mxu0 %v463
  %2689 = vmatprep.subr.bf16.mxu0 %v460
  %2690 = vmatpush1.bf16.msra.mxu0 %v459
  %2691 = vmatprep.subr.bf16.mxu0 %v456
  %2692 = vmatpush1.bf16.msra.mxu0 %v455
  %2693 = vmatprep.subr.bf16.mxu0 %v452
  %2694 = vmatpush1.bf16.msra.mxu0 %v451
  %2695 = vmatprep.subr.bf16.mxu0 0
  %2696 = vmatpush2.bf16.msra.mxu0 0
  %2697 = vmatprep.subr.bf16.mxu0 0
  %2698 = vmatpush2.bf16.msra.mxu0 0
  %2699 = vmatprep.subr.bf16.mxu0 0
  %2700 = vmatpush2.bf16.msra.mxu0 0
  %2701 = vmatprep.subr.bf16.mxu0 0
  %2702 = vmatpush2.bf16.msra.mxu0 0
  %2703 = vmatprep.subr.bf16.mxu0 0
  %2704 = vmatpush2.bf16.msra.mxu0 0
  %2705 = vmatprep.subr.bf16.mxu0 0
  %2706 = vmatpush2.bf16.msra.mxu0 0
  %2707 = vmatprep.subr.bf16.mxu0 0
  %2708 = vmatpush2.bf16.msra.mxu0 0
  %2709 = vmatprep.subr.bf16.mxu0 0
  %2710 = vmatpush2.bf16.msra.mxu0 0
  %2711 = vmatprep.mubr.bf16.mxu0 0
  %2712 = vmatmul.mubr.bf16.gmra.mxu0 %v2485
  %v2713 = vpop.f32.mrf.mxu0
  %v2714 = vadd.f32 0.0, %v2713
  %v2715 = vpop.f32.mrf.mxu0
  %v2716 = vadd.f32 0.0, %v2715
  %v2717 = vpop.f32.mrf.mxu0
  %v2718 = vpop.f32.mrf.mxu0
  %2719 = vdwg.mxu0
  %2720 = vmatprep.subr.bf16.mxu0 %v482
  %2721 = vmatpush1.bf16.msra.mxu0 %v481
  %2722 = vmatprep.subr.bf16.mxu0 %v478
  %2723 = vmatpush1.bf16.msra.mxu0 %v477
  %2724 = vmatprep.subr.bf16.mxu0 %v474
  %2725 = vmatpush1.bf16.msra.mxu0 %v473
  %2726 = vmatprep.subr.bf16.mxu0 %v470
  %2727 = vmatpush1.bf16.msra.mxu0 %v469
  %2728 = vmatprep.subr.bf16.mxu0 %v466
  %2729 = vmatpush1.bf16.msra.mxu0 %v465
  %2730 = vmatprep.subr.bf16.mxu0 %v462
  %2731 = vmatpush1.bf16.msra.mxu0 %v461
  %2732 = vmatprep.subr.bf16.mxu0 %v458
  %2733 = vmatpush1.bf16.msra.mxu0 %v457
  %2734 = vmatprep.subr.bf16.mxu0 %v454
  %2735 = vmatpush1.bf16.msra.mxu0 %v453
  %2736 = vmatprep.subr.bf16.mxu0 0
  %2737 = vmatpush2.bf16.msra.mxu0 0
  %2738 = vmatprep.subr.bf16.mxu0 0
  %2739 = vmatpush2.bf16.msra.mxu0 0
  %2740 = vmatprep.subr.bf16.mxu0 0
  %2741 = vmatpush2.bf16.msra.mxu0 0
  %2742 = vmatprep.subr.bf16.mxu0 0
  %2743 = vmatpush2.bf16.msra.mxu0 0
  %2744 = vmatprep.subr.bf16.mxu0 0
  %2745 = vmatpush2.bf16.msra.mxu0 0
  %2746 = vmatprep.subr.bf16.mxu0 0
  %2747 = vmatpush2.bf16.msra.mxu0 0
  %2748 = vmatprep.subr.bf16.mxu0 0
  %2749 = vmatpush2.bf16.msra.mxu0 0
  %2750 = vmatprep.subr.bf16.mxu0 0
  %2751 = vmatpush2.bf16.msra.mxu0 0
  %2752 = vmatprep.mubr.bf16.mxu0 0
  %2753 = vmatmul.mubr.bf16.gmra.mxu0 %v2485
  %v2754 = vpop.f32.mrf.mxu0
  %v2755 = vadd.f32 0.0, %v2754
  %v2756 = vpop.f32.mrf.mxu0
  %v2757 = vadd.f32 0.0, %v2756
  %v2758 = vpop.f32.mrf.mxu0
  %v2759 = vpop.f32.mrf.mxu0
  %2760 = vdwg.mxu0
  %v2761 = vadd.f32 %v274, %v2714
  %v2762 = vadd.f32 %v276, %v2716
  %v2763 = vadd.f32 %v347, %v2755
  %v2764 = vadd.f32 %v349, %v2757
  %v2765 = vxor.u32 %v2761, 2147483648
  %v2766 = vxor.u32 %v2762, 2147483648
  %v2767 = vmul.f32 %v2765, 1.442695
  %v2768 = vpow.pop %v2767
  %v2769 = vmul.f32 %v2766, 1.442695
  %v2770 = vpow.pop %v2769
  %v2771 = vadd.f32 %v2768, 1.0
  %v2772 = vadd.f32 %v2770, 1.0
  %v2773 = vrcp.pop %v2771
  %v2774 = vmul.f32 1.0, %v2773
  %v2775 = vrcp.pop %v2772
  %v2776 = vmul.f32 1.0, %v2775
  %v2777 = vtanh.pop %v2763
  %v2778 = vxor.u32 %v2764, 2147483648
  %v2779 = vmul.f32 %v2778, 1.442695
  %v2780 = vpow.pop %v2779
  %v2781 = vadd.f32 %v2780, 1.0
  %v2782 = vrcp.pop %v2781
  %v2783 = vmul.f32 1.0, %v2782
  %v2784 = vmul.f32 %v2776, %v2482
  %v2785 = vmul.f32 %v2774, %v2777
  %v2786 = vadd.f32 %v2784, %v2785
  %v2787 = vtanh.pop %v2786
  %v2788 = vmul.f32 %v2783, %v2787
  %v2789 = vpack.c.bf16 %v2788, %v2788
  %2790 = vmatprep.subr.bf16.mxu0 %v772
  %2791 = vmatpush1.bf16.msra.mxu0 %v771
  %2792 = vmatprep.subr.bf16.mxu0 %v768
  %2793 = vmatpush1.bf16.msra.mxu0 %v767
  %2794 = vmatprep.subr.bf16.mxu0 %v764
  %2795 = vmatpush1.bf16.msra.mxu0 %v763
  %2796 = vmatprep.subr.bf16.mxu0 %v760
  %2797 = vmatpush1.bf16.msra.mxu0 %v759
  %2798 = vmatprep.subr.bf16.mxu0 %v756
  %2799 = vmatpush1.bf16.msra.mxu0 %v755
  %2800 = vmatprep.subr.bf16.mxu0 %v752
  %2801 = vmatpush1.bf16.msra.mxu0 %v751
  %2802 = vmatprep.subr.bf16.mxu0 %v748
  %2803 = vmatpush1.bf16.msra.mxu0 %v747
  %2804 = vmatprep.subr.bf16.mxu0 %v744
  %2805 = vmatpush1.bf16.msra.mxu0 %v743
  %2806 = vmatprep.subr.bf16.mxu0 0
  %2807 = vmatpush2.bf16.msra.mxu0 0
  %2808 = vmatprep.subr.bf16.mxu0 0
  %2809 = vmatpush2.bf16.msra.mxu0 0
  %2810 = vmatprep.subr.bf16.mxu0 0
  %2811 = vmatpush2.bf16.msra.mxu0 0
  %2812 = vmatprep.subr.bf16.mxu0 0
  %2813 = vmatpush2.bf16.msra.mxu0 0
  %2814 = vmatprep.subr.bf16.mxu0 0
  %2815 = vmatpush2.bf16.msra.mxu0 0
  %2816 = vmatprep.subr.bf16.mxu0 0
  %2817 = vmatpush2.bf16.msra.mxu0 0
  %2818 = vmatprep.subr.bf16.mxu0 0
  %2819 = vmatpush2.bf16.msra.mxu0 0
  %2820 = vmatprep.subr.bf16.mxu0 0
  %2821 = vmatpush2.bf16.msra.mxu0 0
  %2822 = vmatprep.mubr.bf16.mxu0 0
  %2823 = vmatmul.mubr.bf16.gmra.mxu0 %v2789
  %v2824 = vpop.f32.mrf.mxu0
  %v2825 = vadd.f32 %v630, %v2824
  %v2826 = vpop.f32.mrf.mxu0
  %v2827 = vadd.f32 %v634, %v2826
  %v2828 = vpop.f32.mrf.mxu0
  %v2829 = vpop.f32.mrf.mxu0
  %2830 = vdwg.mxu0
  %2831 = vmatprep.subr.bf16.mxu0 %v774
  %2832 = vmatpush1.bf16.msra.mxu0 %v773
  %2833 = vmatprep.subr.bf16.mxu0 %v770
  %2834 = vmatpush1.bf16.msra.mxu0 %v769
  %2835 = vmatprep.subr.bf16.mxu0 %v766
  %2836 = vmatpush1.bf16.msra.mxu0 %v765
  %2837 = vmatprep.subr.bf16.mxu0 %v762
  %2838 = vmatpush1.bf16.msra.mxu0 %v761
  %2839 = vmatprep.subr.bf16.mxu0 %v758
  %2840 = vmatpush1.bf16.msra.mxu0 %v757
  %2841 = vmatprep.subr.bf16.mxu0 %v754
  %2842 = vmatpush1.bf16.msra.mxu0 %v753
  %2843 = vmatprep.subr.bf16.mxu0 %v750
  %2844 = vmatpush1.bf16.msra.mxu0 %v749
  %2845 = vmatprep.subr.bf16.mxu0 %v746
  %2846 = vmatpush1.bf16.msra.mxu0 %v745
  %2847 = vmatprep.subr.bf16.mxu0 0
  %2848 = vmatpush2.bf16.msra.mxu0 0
  %2849 = vmatprep.subr.bf16.mxu0 0
  %2850 = vmatpush2.bf16.msra.mxu0 0
  %2851 = vmatprep.subr.bf16.mxu0 0
  %2852 = vmatpush2.bf16.msra.mxu0 0
  %2853 = vmatprep.subr.bf16.mxu0 0
  %2854 = vmatpush2.bf16.msra.mxu0 0
  %2855 = vmatprep.subr.bf16.mxu0 0
  %2856 = vmatpush2.bf16.msra.mxu0 0
  %2857 = vmatprep.subr.bf16.mxu0 0
  %2858 = vmatpush2.bf16.msra.mxu0 0
  %2859 = vmatprep.subr.bf16.mxu0 0
  %2860 = vmatpush2.bf16.msra.mxu0 0
  %2861 = vmatprep.subr.bf16.mxu0 0
  %2862 = vmatpush2.bf16.msra.mxu0 0
  %2863 = vmatprep.mubr.bf16.mxu0 0
  %2864 = vmatmul.mubr.bf16.gmra.mxu0 %v2789
  %v2865 = vpop.f32.mrf.mxu0
  %v2866 = vadd.f32 %v638, %v2865
  %v2867 = vpop.f32.mrf.mxu0
  %v2868 = vadd.f32 %v642, %v2867
  %v2869 = vpop.f32.mrf.mxu0
  %v2870 = vpop.f32.mrf.mxu0
  %2871 = vdwg.mxu0
  %v2872 = vpack.c.bf16 %v2678, %v2678
  %2873 = vmatprep.subr.bf16.mxu0 %v1014
  %2874 = vmatpush1.bf16.msra.mxu0 %v1013
  %2875 = vmatprep.subr.bf16.mxu0 %v1010
  %2876 = vmatpush1.bf16.msra.mxu0 %v1009
  %2877 = vmatprep.subr.bf16.mxu0 %v1006
  %2878 = vmatpush1.bf16.msra.mxu0 %v1005
  %2879 = vmatprep.subr.bf16.mxu0 %v1002
  %2880 = vmatpush1.bf16.msra.mxu0 %v1001
  %2881 = vmatprep.subr.bf16.mxu0 %v998
  %2882 = vmatpush1.bf16.msra.mxu0 %v997
  %2883 = vmatprep.subr.bf16.mxu0 %v994
  %2884 = vmatpush1.bf16.msra.mxu0 %v993
  %2885 = vmatprep.subr.bf16.mxu0 %v990
  %2886 = vmatpush1.bf16.msra.mxu0 %v989
  %2887 = vmatprep.subr.bf16.mxu0 %v986
  %2888 = vmatpush1.bf16.msra.mxu0 %v985
  %2889 = vmatprep.subr.bf16.mxu0 0
  %2890 = vmatpush2.bf16.msra.mxu0 0
  %2891 = vmatprep.subr.bf16.mxu0 0
  %2892 = vmatpush2.bf16.msra.mxu0 0
  %2893 = vmatprep.subr.bf16.mxu0 0
  %2894 = vmatpush2.bf16.msra.mxu0 0
  %2895 = vmatprep.subr.bf16.mxu0 0
  %2896 = vmatpush2.bf16.msra.mxu0 0
  %2897 = vmatprep.subr.bf16.mxu0 0
  %2898 = vmatpush2.bf16.msra.mxu0 0
  %2899 = vmatprep.subr.bf16.mxu0 0
  %2900 = vmatpush2.bf16.msra.mxu0 0
  %2901 = vmatprep.subr.bf16.mxu0 0
  %2902 = vmatpush2.bf16.msra.mxu0 0
  %2903 = vmatprep.subr.bf16.mxu0 0
  %2904 = vmatpush2.bf16.msra.mxu0 0
  %2905 = vmatprep.mubr.bf16.mxu0 0
  %2906 = vmatmul.mubr.bf16.gmra.mxu0 %v2872
  %v2907 = vpop.f32.mrf.mxu0
  %v2908 = vadd.f32 0.0, %v2907
  %v2909 = vpop.f32.mrf.mxu0
  %v2910 = vadd.f32 0.0, %v2909
  %v2911 = vpop.f32.mrf.mxu0
  %v2912 = vpop.f32.mrf.mxu0
  %2913 = vdwg.mxu0
  %2914 = vmatprep.subr.bf16.mxu0 %v1016
  %2915 = vmatpush1.bf16.msra.mxu0 %v1015
  %2916 = vmatprep.subr.bf16.mxu0 %v1012
  %2917 = vmatpush1.bf16.msra.mxu0 %v1011
  %2918 = vmatprep.subr.bf16.mxu0 %v1008
  %2919 = vmatpush1.bf16.msra.mxu0 %v1007
  %2920 = vmatprep.subr.bf16.mxu0 %v1004
  %2921 = vmatpush1.bf16.msra.mxu0 %v1003
  %2922 = vmatprep.subr.bf16.mxu0 %v1000
  %2923 = vmatpush1.bf16.msra.mxu0 %v999
  %2924 = vmatprep.subr.bf16.mxu0 %v996
  %2925 = vmatpush1.bf16.msra.mxu0 %v995
  %2926 = vmatprep.subr.bf16.mxu0 %v992
  %2927 = vmatpush1.bf16.msra.mxu0 %v991
  %2928 = vmatprep.subr.bf16.mxu0 %v988
  %2929 = vmatpush1.bf16.msra.mxu0 %v987
  %2930 = vmatprep.subr.bf16.mxu0 0
  %2931 = vmatpush2.bf16.msra.mxu0 0
  %2932 = vmatprep.subr.bf16.mxu0 0
  %2933 = vmatpush2.bf16.msra.mxu0 0
  %2934 = vmatprep.subr.bf16.mxu0 0
  %2935 = vmatpush2.bf16.msra.mxu0 0
  %2936 = vmatprep.subr.bf16.mxu0 0
  %2937 = vmatpush2.bf16.msra.mxu0 0
  %2938 = vmatprep.subr.bf16.mxu0 0
  %2939 = vmatpush2.bf16.msra.mxu0 0
  %2940 = vmatprep.subr.bf16.mxu0 0
  %2941 = vmatpush2.bf16.msra.mxu0 0
  %2942 = vmatprep.subr.bf16.mxu0 0
  %2943 = vmatpush2.bf16.msra.mxu0 0
  %2944 = vmatprep.subr.bf16.mxu0 0
  %2945 = vmatpush2.bf16.msra.mxu0 0
  %2946 = vmatprep.mubr.bf16.mxu0 0
  %2947 = vmatmul.mubr.bf16.gmra.mxu0 %v2872
  %v2948 = vpop.f32.mrf.mxu0
  %v2949 = vadd.f32 0.0, %v2948
  %v2950 = vpop.f32.mrf.mxu0
  %v2951 = vadd.f32 0.0, %v2950
  %v2952 = vpop.f32.mrf.mxu0
  %v2953 = vpop.f32.mrf.mxu0
  %2954 = vdwg.mxu0
  %v2955 = vadd.f32 %v2825, %v2908
  %v2956 = vadd.f32 %v2827, %v2910
  %v2957 = vadd.f32 %v2866, %v2949
  %v2958 = vadd.f32 %v2868, %v2951
  %v2959 = vxor.u32 %v2955, 2147483648
  %v2960 = vxor.u32 %v2956, 2147483648
  %v2961 = vmul.f32 %v2959, 1.442695
  %v2962 = vpow.pop %v2961
  %v2963 = vmul.f32 %v2960, 1.442695
  %v2964 = vpow.pop %v2963
  %v2965 = vadd.f32 %v2962, 1.0
  %v2966 = vadd.f32 %v2964, 1.0
  %v2967 = vrcp.pop %v2965
  %v2968 = vmul.f32 1.0, %v2967
  %v2969 = vrcp.pop %v2966
  %v2970 = vmul.f32 1.0, %v2969
  %v2971 = vtanh.pop %v2957
  %v2972 = vxor.u32 %v2958, 2147483648
  %v2973 = vmul.f32 %v2972, 1.442695
  %v2974 = vpow.pop %v2973
  %v2975 = vadd.f32 %v2974, 1.0
  %v2976 = vrcp.pop %v2975
  %v2977 = vmul.f32 1.0, %v2976
  %v2978 = vmul.f32 %v2970, %v2676
  %v2979 = vmul.f32 %v2968, %v2971
  %v2980 = vadd.f32 %v2978, %v2979
  %v2981 = vtanh.pop %v2980
  %v2982 = vmul.f32 %v2977, %v2981
  %2983 = vmatprep.subr.bf16.mxu0 %v480
  %2984 = vmatpush1.bf16.msra.mxu0 %v479
  %2985 = vmatprep.subr.bf16.mxu0 %v476
  %2986 = vmatpush1.bf16.msra.mxu0 %v475
  %2987 = vmatprep.subr.bf16.mxu0 %v472
  %2988 = vmatpush1.bf16.msra.mxu0 %v471
  %2989 = vmatprep.subr.bf16.mxu0 %v468
  %2990 = vmatpush1.bf16.msra.mxu0 %v467
  %2991 = vmatprep.subr.bf16.mxu0 %v464
  %2992 = vmatpush1.bf16.msra.mxu0 %v463
  %2993 = vmatprep.subr.bf16.mxu0 %v460
  %2994 = vmatpush1.bf16.msra.mxu0 %v459
  %2995 = vmatprep.subr.bf16.mxu0 %v456
  %2996 = vmatpush1.bf16.msra.mxu0 %v455
  %2997 = vmatprep.subr.bf16.mxu0 %v452
  %2998 = vmatpush1.bf16.msra.mxu0 %v451
  %2999 = vmatprep.subr.bf16.mxu0 0
  %3000 = vmatpush2.bf16.msra.mxu0 0
  %3001 = vmatprep.subr.bf16.mxu0 0
  %3002 = vmatpush2.bf16.msra.mxu0 0
  %3003 = vmatprep.subr.bf16.mxu0 0
  %3004 = vmatpush2.bf16.msra.mxu0 0
  %3005 = vmatprep.subr.bf16.mxu0 0
  %3006 = vmatpush2.bf16.msra.mxu0 0
  %3007 = vmatprep.subr.bf16.mxu0 0
  %3008 = vmatpush2.bf16.msra.mxu0 0
  %3009 = vmatprep.subr.bf16.mxu0 0
  %3010 = vmatpush2.bf16.msra.mxu0 0
  %3011 = vmatprep.subr.bf16.mxu0 0
  %3012 = vmatpush2.bf16.msra.mxu0 0
  %3013 = vmatprep.subr.bf16.mxu0 0
  %3014 = vmatpush2.bf16.msra.mxu0 0
  %3015 = vmatprep.mubr.bf16.mxu0 0
  %3016 = vmatmul.mubr.bf16.gmra.mxu0 %v2789
  %v3017 = vpop.f32.mrf.mxu0
  %v3018 = vadd.f32 0.0, %v3017
  %v3019 = vpop.f32.mrf.mxu0
  %v3020 = vadd.f32 0.0, %v3019
  %v3021 = vpop.f32.mrf.mxu0
  %v3022 = vpop.f32.mrf.mxu0
  %3023 = vdwg.mxu0
  %3024 = vmatprep.subr.bf16.mxu0 %v482
  %3025 = vmatpush1.bf16.msra.mxu0 %v481
  %3026 = vmatprep.subr.bf16.mxu0 %v478
  %3027 = vmatpush1.bf16.msra.mxu0 %v477
  %3028 = vmatprep.subr.bf16.mxu0 %v474
  %3029 = vmatpush1.bf16.msra.mxu0 %v473
  %3030 = vmatprep.subr.bf16.mxu0 %v470
  %3031 = vmatpush1.bf16.msra.mxu0 %v469
  %3032 = vmatprep.subr.bf16.mxu0 %v466
  %3033 = vmatpush1.bf16.msra.mxu0 %v465
  %3034 = vmatprep.subr.bf16.mxu0 %v462
  %3035 = vmatpush1.bf16.msra.mxu0 %v461
  %3036 = vmatprep.subr.bf16.mxu0 %v458
  %3037 = vmatpush1.bf16.msra.mxu0 %v457
  %3038 = vmatprep.subr.bf16.mxu0 %v454
  %3039 = vmatpush1.bf16.msra.mxu0 %v453
  %3040 = vmatprep.subr.bf16.mxu0 0
  %3041 = vmatpush2.bf16.msra.mxu0 0
  %3042 = vmatprep.subr.bf16.mxu0 0
  %3043 = vmatpush2.bf16.msra.mxu0 0
  %3044 = vmatprep.subr.bf16.mxu0 0
  %3045 = vmatpush2.bf16.msra.mxu0 0
  %3046 = vmatprep.subr.bf16.mxu0 0
  %3047 = vmatpush2.bf16.msra.mxu0 0
  %3048 = vmatprep.subr.bf16.mxu0 0
  %3049 = vmatpush2.bf16.msra.mxu0 0
  %3050 = vmatprep.subr.bf16.mxu0 0
  %3051 = vmatpush2.bf16.msra.mxu0 0
  %3052 = vmatprep.subr.bf16.mxu0 0
  %3053 = vmatpush2.bf16.msra.mxu0 0
  %3054 = vmatprep.subr.bf16.mxu0 0
  %3055 = vmatpush2.bf16.msra.mxu0 0
  %3056 = vmatprep.mubr.bf16.mxu0 0
  %3057 = vmatmul.mubr.bf16.gmra.mxu0 %v2789
  %v3058 = vpop.f32.mrf.mxu0
  %v3059 = vadd.f32 0.0, %v3058
  %v3060 = vpop.f32.mrf.mxu0
  %v3061 = vadd.f32 0.0, %v3060
  %v3062 = vpop.f32.mrf.mxu0
  %v3063 = vpop.f32.mrf.mxu0
  %3064 = vdwg.mxu0
  %v3065 = vadd.f32 %v278, %v3018
  %v3066 = vadd.f32 %v280, %v3020
  %v3067 = vadd.f32 %v351, %v3059
  %v3068 = vadd.f32 %v353, %v3061
  %v3069 = vxor.u32 %v3065, 2147483648
  %v3070 = vxor.u32 %v3066, 2147483648
  %v3071 = vmul.f32 %v3069, 1.442695
  %v3072 = vpow.pop %v3071
  %v3073 = vmul.f32 %v3070, 1.442695
  %v3074 = vpow.pop %v3073
  %v3075 = vadd.f32 %v3072, 1.0
  %v3076 = vadd.f32 %v3074, 1.0
  %v3077 = vrcp.pop %v3075
  %v3078 = vmul.f32 1.0, %v3077
  %v3079 = vrcp.pop %v3076
  %v3080 = vmul.f32 1.0, %v3079
  %v3081 = vtanh.pop %v3067
  %v3082 = vxor.u32 %v3068, 2147483648
  %v3083 = vmul.f32 %v3082, 1.442695
  %v3084 = vpow.pop %v3083
  %v3085 = vadd.f32 %v3084, 1.0
  %v3086 = vrcp.pop %v3085
  %v3087 = vmul.f32 1.0, %v3086
  %v3088 = vmul.f32 %v3080, %v2786
  %v3089 = vmul.f32 %v3078, %v3081
  %v3090 = vadd.f32 %v3088, %v3089
  %v3091 = vtanh.pop %v3090
  %v3092 = vmul.f32 %v3087, %v3091
  %v3093 = vpack.c.bf16 %v3092, %v3092
  %3094 = vmatprep.subr.bf16.mxu0 %v772
  %3095 = vmatpush1.bf16.msra.mxu0 %v771
  %3096 = vmatprep.subr.bf16.mxu0 %v768
  %3097 = vmatpush1.bf16.msra.mxu0 %v767
  %3098 = vmatprep.subr.bf16.mxu0 %v764
  %3099 = vmatpush1.bf16.msra.mxu0 %v763
  %3100 = vmatprep.subr.bf16.mxu0 %v760
  %3101 = vmatpush1.bf16.msra.mxu0 %v759
  %3102 = vmatprep.subr.bf16.mxu0 %v756
  %3103 = vmatpush1.bf16.msra.mxu0 %v755
  %3104 = vmatprep.subr.bf16.mxu0 %v752
  %3105 = vmatpush1.bf16.msra.mxu0 %v751
  %3106 = vmatprep.subr.bf16.mxu0 %v748
  %3107 = vmatpush1.bf16.msra.mxu0 %v747
  %3108 = vmatprep.subr.bf16.mxu0 %v744
  %3109 = vmatpush1.bf16.msra.mxu0 %v743
  %3110 = vmatprep.subr.bf16.mxu0 0
  %3111 = vmatpush2.bf16.msra.mxu0 0
  %3112 = vmatprep.subr.bf16.mxu0 0
  %3113 = vmatpush2.bf16.msra.mxu0 0
  %3114 = vmatprep.subr.bf16.mxu0 0
  %3115 = vmatpush2.bf16.msra.mxu0 0
  %3116 = vmatprep.subr.bf16.mxu0 0
  %3117 = vmatpush2.bf16.msra.mxu0 0
  %3118 = vmatprep.subr.bf16.mxu0 0
  %3119 = vmatpush2.bf16.msra.mxu0 0
  %3120 = vmatprep.subr.bf16.mxu0 0
  %3121 = vmatpush2.bf16.msra.mxu0 0
  %3122 = vmatprep.subr.bf16.mxu0 0
  %3123 = vmatpush2.bf16.msra.mxu0 0
  %3124 = vmatprep.subr.bf16.mxu0 0
  %3125 = vmatpush2.bf16.msra.mxu0 0
  %3126 = vmatprep.mubr.bf16.mxu0 0
  %3127 = vmatmul.mubr.bf16.gmra.mxu0 %v3093
  %v3128 = vpop.f32.mrf.mxu0
  %v3129 = vadd.f32 %v630, %v3128
  %v3130 = vpop.f32.mrf.mxu0
  %v3131 = vadd.f32 %v634, %v3130
  %v3132 = vpop.f32.mrf.mxu0
  %v3133 = vpop.f32.mrf.mxu0
  %3134 = vdwg.mxu0
  %3135 = vmatprep.subr.bf16.mxu0 %v774
  %3136 = vmatpush1.bf16.msra.mxu0 %v773
  %3137 = vmatprep.subr.bf16.mxu0 %v770
  %3138 = vmatpush1.bf16.msra.mxu0 %v769
  %3139 = vmatprep.subr.bf16.mxu0 %v766
  %3140 = vmatpush1.bf16.msra.mxu0 %v765
  %3141 = vmatprep.subr.bf16.mxu0 %v762
  %3142 = vmatpush1.bf16.msra.mxu0 %v761
  %3143 = vmatprep.subr.bf16.mxu0 %v758
  %3144 = vmatpush1.bf16.msra.mxu0 %v757
  %3145 = vmatprep.subr.bf16.mxu0 %v754
  %3146 = vmatpush1.bf16.msra.mxu0 %v753
  %3147 = vmatprep.subr.bf16.mxu0 %v750
  %3148 = vmatpush1.bf16.msra.mxu0 %v749
  %3149 = vmatprep.subr.bf16.mxu0 %v746
  %3150 = vmatpush1.bf16.msra.mxu0 %v745
  %3151 = vmatprep.subr.bf16.mxu0 0
  %3152 = vmatpush2.bf16.msra.mxu0 0
  %3153 = vmatprep.subr.bf16.mxu0 0
  %3154 = vmatpush2.bf16.msra.mxu0 0
  %3155 = vmatprep.subr.bf16.mxu0 0
  %3156 = vmatpush2.bf16.msra.mxu0 0
  %3157 = vmatprep.subr.bf16.mxu0 0
  %3158 = vmatpush2.bf16.msra.mxu0 0
  %3159 = vmatprep.subr.bf16.mxu0 0
  %3160 = vmatpush2.bf16.msra.mxu0 0
  %3161 = vmatprep.subr.bf16.mxu0 0
  %3162 = vmatpush2.bf16.msra.mxu0 0
  %3163 = vmatprep.subr.bf16.mxu0 0
  %3164 = vmatpush2.bf16.msra.mxu0 0
  %3165 = vmatprep.subr.bf16.mxu0 0
  %3166 = vmatpush2.bf16.msra.mxu0 0
  %3167 = vmatprep.mubr.bf16.mxu0 0
  %3168 = vmatmul.mubr.bf16.gmra.mxu0 %v3093
  %v3169 = vpop.f32.mrf.mxu0
  %v3170 = vadd.f32 %v638, %v3169
  %v3171 = vpop.f32.mrf.mxu0
  %v3172 = vadd.f32 %v642, %v3171
  %v3173 = vpop.f32.mrf.mxu0
  %v3174 = vpop.f32.mrf.mxu0
  %3175 = vdwg.mxu0
  %v3176 = vpack.c.bf16 %v2982, %v2982
  %3177 = vmatprep.subr.bf16.mxu0 %v1014
  %3178 = vmatpush1.bf16.msra.mxu0 %v1013
  %3179 = vmatprep.subr.bf16.mxu0 %v1010
  %3180 = vmatpush1.bf16.msra.mxu0 %v1009
  %3181 = vmatprep.subr.bf16.mxu0 %v1006
  %3182 = vmatpush1.bf16.msra.mxu0 %v1005
  %3183 = vmatprep.subr.bf16.mxu0 %v1002
  %3184 = vmatpush1.bf16.msra.mxu0 %v1001
  %3185 = vmatprep.subr.bf16.mxu0 %v998
  %3186 = vmatpush1.bf16.msra.mxu0 %v997
  %3187 = vmatprep.subr.bf16.mxu0 %v994
  %3188 = vmatpush1.bf16.msra.mxu0 %v993
  %3189 = vmatprep.subr.bf16.mxu0 %v990
  %3190 = vmatpush1.bf16.msra.mxu0 %v989
  %3191 = vmatprep.subr.bf16.mxu0 %v986
  %3192 = vmatpush1.bf16.msra.mxu0 %v985
  %3193 = vmatprep.subr.bf16.mxu0 0
  %3194 = vmatpush2.bf16.msra.mxu0 0
  %3195 = vmatprep.subr.bf16.mxu0 0
  %3196 = vmatpush2.bf16.msra.mxu0 0
  %3197 = vmatprep.subr.bf16.mxu0 0
  %3198 = vmatpush2.bf16.msra.mxu0 0
  %3199 = vmatprep.subr.bf16.mxu0 0
  %3200 = vmatpush2.bf16.msra.mxu0 0
  %3201 = vmatprep.subr.bf16.mxu0 0
  %3202 = vmatpush2.bf16.msra.mxu0 0
  %3203 = vmatprep.subr.bf16.mxu0 0
  %3204 = vmatpush2.bf16.msra.mxu0 0
  %3205 = vmatprep.subr.bf16.mxu0 0
  %3206 = vmatpush2.bf16.msra.mxu0 0
  %3207 = vmatprep.subr.bf16.mxu0 0
  %3208 = vmatpush2.bf16.msra.mxu0 0
  %3209 = vmatprep.mubr.bf16.mxu0 0
  %3210 = vmatmul.mubr.bf16.gmra.mxu0 %v3176
  %v3211 = vpop.f32.mrf.mxu0
  %v3212 = vadd.f32 0.0, %v3211
  %v3213 = vpop.f32.mrf.mxu0
  %v3214 = vadd.f32 0.0, %v3213
  %v3215 = vpop.f32.mrf.mxu0
  %v3216 = vpop.f32.mrf.mxu0
  %3217 = vdwg.mxu0
  %3218 = vmatprep.subr.bf16.mxu0 %v1016
  %3219 = vmatpush1.bf16.msra.mxu0 %v1015
  %3220 = vmatprep.subr.bf16.mxu0 %v1012
  %3221 = vmatpush1.bf16.msra.mxu0 %v1011
  %3222 = vmatprep.subr.bf16.mxu0 %v1008
  %3223 = vmatpush1.bf16.msra.mxu0 %v1007
  %3224 = vmatprep.subr.bf16.mxu0 %v1004
  %3225 = vmatpush1.bf16.msra.mxu0 %v1003
  %3226 = vmatprep.subr.bf16.mxu0 %v1000
  %3227 = vmatpush1.bf16.msra.mxu0 %v999
  %3228 = vmatprep.subr.bf16.mxu0 %v996
  %3229 = vmatpush1.bf16.msra.mxu0 %v995
  %3230 = vmatprep.subr.bf16.mxu0 %v992
  %3231 = vmatpush1.bf16.msra.mxu0 %v991
  %3232 = vmatprep.subr.bf16.mxu0 %v988
  %3233 = vmatpush1.bf16.msra.mxu0 %v987
  %3234 = vmatprep.subr.bf16.mxu0 0
  %3235 = vmatpush2.bf16.msra.mxu0 0
  %3236 = vmatprep.subr.bf16.mxu0 0
  %3237 = vmatpush2.bf16.msra.mxu0 0
  %3238 = vmatprep.subr.bf16.mxu0 0
  %3239 = vmatpush2.bf16.msra.mxu0 0
  %3240 = vmatprep.subr.bf16.mxu0 0
  %3241 = vmatpush2.bf16.msra.mxu0 0
  %3242 = vmatprep.subr.bf16.mxu0 0
  %3243 = vmatpush2.bf16.msra.mxu0 0
  %3244 = vmatprep.subr.bf16.mxu0 0
  %3245 = vmatpush2.bf16.msra.mxu0 0
  %3246 = vmatprep.subr.bf16.mxu0 0
  %3247 = vmatpush2.bf16.msra.mxu0 0
  %3248 = vmatprep.subr.bf16.mxu0 0
  %3249 = vmatpush2.bf16.msra.mxu0 0
  %3250 = vmatprep.mubr.bf16.mxu0 0
  %3251 = vmatmul.mubr.bf16.gmra.mxu0 %v3176
  %v3252 = vpop.f32.mrf.mxu0
  %v3253 = vadd.f32 0.0, %v3252
  %v3254 = vpop.f32.mrf.mxu0
  %v3255 = vadd.f32 0.0, %v3254
  %v3256 = vpop.f32.mrf.mxu0
  %v3257 = vpop.f32.mrf.mxu0
  %3258 = vdwg.mxu0
  %v3259 = vadd.f32 %v3129, %v3212
  %v3260 = vadd.f32 %v3131, %v3214
  %v3261 = vadd.f32 %v3170, %v3253
  %v3262 = vadd.f32 %v3172, %v3255
  %v3263 = vxor.u32 %v3259, 2147483648
  %v3264 = vxor.u32 %v3260, 2147483648
  %v3265 = vmul.f32 %v3263, 1.442695
  %v3266 = vpow.pop %v3265
  %v3267 = vmul.f32 %v3264, 1.442695
  %v3268 = vpow.pop %v3267
  %v3269 = vadd.f32 %v3266, 1.0
  %v3270 = vadd.f32 %v3268, 1.0
  %v3271 = vrcp.pop %v3269
  %v3272 = vmul.f32 1.0, %v3271
  %v3273 = vrcp.pop %v3270
  %v3274 = vmul.f32 1.0, %v3273
  %v3275 = vtanh.pop %v3261
  %v3276 = vxor.u32 %v3262, 2147483648
  %v3277 = vmul.f32 %v3276, 1.442695
  %v3278 = vpow.pop %v3277
  %v3279 = vadd.f32 %v3278, 1.0
  %v3280 = vrcp.pop %v3279
  %v3281 = vmul.f32 1.0, %v3280
  %v3282 = vmul.f32 %v3274, %v2980
  %v3283 = vmul.f32 %v3272, %v3275
  %v3284 = vadd.f32 %v3282, %v3283
  %v3285 = vtanh.pop %v3284
  %v3286 = vmul.f32 %v3281, %v3285
  %v3287 = vld [vmem:[%s7] sm:$0xf]
  %v3288 = vld [vmem:[%s7 + $0x4] sm:$0xf]
  %v3289 = vld [vmem:[%s7 + $0x8] sm:$0xf]
  %v3290 = vld [vmem:[%s7 + $0xc] sm:$0xf]
  %v3291 = vld [vmem:[%s7 + $0x10] sm:$0xf]
  %v3292 = vld [vmem:[%s7 + $0x14] sm:$0xf]
  %v3293 = vld [vmem:[%s7 + $0x18] sm:$0xf]
  %v3294 = vld [vmem:[%s7 + $0x1c] sm:$0xf]
  %v3295 = vld [vmem:[%s7 + $0x20] sm:$0xf]
  %v3296 = vld [vmem:[%s7 + $0x24] sm:$0xf]
  %v3297 = vld [vmem:[%s7 + $0x28] sm:$0xf]
  %v3298 = vld [vmem:[%s7 + $0x2c] sm:$0xf]
  %v3299 = vld [vmem:[%s7 + $0x30] sm:$0xf]
  %v3300 = vld [vmem:[%s7 + $0x34] sm:$0xf]
  %v3301 = vld [vmem:[%s7 + $0x38] sm:$0xf]
  %v3302 = vld [vmem:[%s7 + $0x3c] sm:$0xf]
  %v3303 = vpack.c.bf16 %v3286, %v3286
  %v3304 = vld [vmem:[%s8] sm:$0x1]
  %v3306 = vlaneseq
  %v3307 = vshrl.u32 %v3306, 7
  %v3308 = vsub.s32 0, %v3307
  %v3309 = vrot.slane %v3304, %v3308
  %v3327 = vunpack.c.l.b16 %v3287
  %v3328 = vunpack.c.l.b16 %v3288
  %v3329 = vunpack.c.l.b16 %v3289
  %v3330 = vunpack.c.l.b16 %v3290
  %v3331 = vunpack.c.l.b16 %v3291
  %v3332 = vunpack.c.l.b16 %v3292
  %v3333 = vunpack.c.l.b16 %v3293
  %v3334 = vunpack.c.l.b16 %v3294
  %v3335 = vunpack.c.l.b16 %v3295
  %v3336 = vunpack.c.l.b16 %v3296
  %v3337 = vunpack.c.l.b16 %v3297
  %v3338 = vunpack.c.l.b16 %v3298
  %v3339 = vunpack.c.l.b16 %v3299
  %v3340 = vunpack.c.l.b16 %v3300
  %v3341 = vunpack.c.l.b16 %v3301
  %v3342 = vunpack.c.l.b16 %v3302
  %v3343 = vpack.c.b16 %v3328, %v3327
  %v3344 = vpack.c.b16 %v3330, %v3329
  %v3345 = vpack.c.b16 %v3332, %v3331
  %v3346 = vpack.c.b16 %v3334, %v3333
  %v3347 = vpack.c.b16 %v3336, %v3335
  %v3348 = vpack.c.b16 %v3338, %v3337
  %v3349 = vpack.c.b16 %v3340, %v3339
  %v3350 = vpack.c.b16 %v3342, %v3341
  %3359 = vmatprep.subr.bf16.mxu0 0
  %3360 = vmatpush1.bf16.msra.mxu0 %v3350
  %3361 = vmatprep.subr.bf16.mxu0 0
  %3362 = vmatpush1.bf16.msra.mxu0 %v3349
  %3363 = vmatprep.subr.bf16.mxu0 0
  %3364 = vmatpush1.bf16.msra.mxu0 %v3348
  %3365 = vmatprep.subr.bf16.mxu0 0
  %3366 = vmatpush1.bf16.msra.mxu0 %v3347
  %3367 = vmatprep.subr.bf16.mxu0 0
  %3368 = vmatpush1.bf16.msra.mxu0 %v3346
  %3369 = vmatprep.subr.bf16.mxu0 0
  %3370 = vmatpush1.bf16.msra.mxu0 %v3345
  %3371 = vmatprep.subr.bf16.mxu0 0
  %3372 = vmatpush1.bf16.msra.mxu0 %v3344
  %3373 = vmatprep.subr.bf16.mxu0 0
  %3374 = vmatpush1.bf16.msra.mxu0 %v3343
  %3375 = vmatprep.subr.bf16.mxu0 0
  %3376 = vmatpush2.bf16.msra.mxu0 0
  %3377 = vmatprep.subr.bf16.mxu0 0
  %3378 = vmatpush2.bf16.msra.mxu0 0
  %3379 = vmatprep.subr.bf16.mxu0 0
  %3380 = vmatpush2.bf16.msra.mxu0 0
  %3381 = vmatprep.subr.bf16.mxu0 0
  %3382 = vmatpush2.bf16.msra.mxu0 0
  %3383 = vmatprep.subr.bf16.mxu0 0
  %3384 = vmatpush2.bf16.msra.mxu0 0
  %3385 = vmatprep.subr.bf16.mxu0 0
  %3386 = vmatpush2.bf16.msra.mxu0 0
  %3387 = vmatprep.subr.bf16.mxu0 0
  %3388 = vmatpush2.bf16.msra.mxu0 0
  %3389 = vmatprep.subr.bf16.mxu0 0
  %3390 = vmatpush2.bf16.msra.mxu0 0
  %3391 = vmatprep.mubr.bf16.mxu0 0
  %3392 = vmatmul.mubr.bf16.gmra.mxu0 %v3303
  %v3393 = vpop.f32.mrf.mxu0
  %v3394 = vadd.f32 %v3309, %v3393
  %v3395 = vpop.f32.mrf.mxu0
  %v3396 = vpop.f32.mrf.mxu0
  %v3397 = vpop.f32.mrf.mxu0
  %3398 = vdwg.mxu0
  %v3399 = vmax.f32 %v3394, 0.0
  %v3400 = vld [vmem:[%s9] sm:$0x1]
  %v3402 = vlaneseq
  %v3403 = vshrl.u32 %v3402, 7
  %v3404 = vsub.s32 0, %v3403
  %v3405 = vrot.slane %v3400, %v3404
  %v3407 = vmul.f32 %v3399, %v3405
  %vm3408 = vcmask 523264
  %v3409 = vsel %vm3408, %v3407, 0.0
  %3410 = vadd.xlane.f32.xlu0 %v3409
  %v3411 = vpop.xlane.xlu0 %3410
  %v3412 = vld [vmem:[#allocation2] sm:$0x1]
  %v3414 = vlaneseq
  %v3415 = vshrl.u32 %v3414, 7
  %v3416 = vsub.s32 0, %v3415
  %v3417 = vrot.slane %v3412, %v3416
  %v3419 = vadd.f32 %v3411, %v3417
  %v3420 = vxor.u32 %v3419, 2147483648
  %v3421 = vmul.f32 %v3420, 1.442695
  %v3422 = vpow.pop %v3421
  %v3423 = vadd.f32 %v3422, 1.0
  %v3424 = vrcp.pop %v3423
  %v3425 = vmul.f32 1.0, %v3424
  %vm3426 = vcmask 7168
  %3427 = vst.msk [vmem:[%s11] sm:$0xff] %vm3426, %v3425
  // Predicated region
  $region46: #{simple_lstm_forward.1} parent=0 // pred_check
    _
  $region47: #{simple_lstm_forward.1} parent=0 // pred_check_branch
    %3429 = sbr.rel (0) target = $region49
  $region48: #{simple_lstm_forward.1} parent=0 // pred_region
    _
  $region49: #{simple_lstm_forward.1} parent=0 // pred_fallthru
    _
  // Predicated region
  $region50: #{simple_lstm_forward.1} parent=0 // pred_check
    _
  $region51: #{simple_lstm_forward.1} parent=0 // pred_check_branch
    %3431 = sbr.rel (0) target = $region53
  $region52: #{simple_lstm_forward.1} parent=0 // pred_region
    _
  $region53: #{simple_lstm_forward.1} parent=0 // pred_fallthru
    _

</llo_original>
